<compile_context>
chip_gen: v5e
topology: v5e:2x2
jax: 0.10.0
libtpu: 0.0.40
codegen_flags: <defaults>
</compile_context>

<pallas_src>
import jax
import jax.numpy as jnp
from jax.experimental import pallas as pl
from jax.experimental.pallas import tpu as pltpu


# ---------------------------------------------------------------------------
# Fused Pallas kernel: whole forward pass, everything resident in VMEM.
# ---------------------------------------------------------------------------
def _lenet_fused_kernel(
    x_ref,              # (B, 32, 96)   input, layout [b, h, w*3 + ci]
    m1_ref, b1_ref,     # (5, 96, 168), (1, 84)   conv1 banded weights / pooled bias row
    s1e_ref, s1o_ref,   # (14, 28)                pool1 row selectors (even/odd)
    t1e_ref, t1o_ref,   # (168, 84)               pool1 column selectors
    m2_ref, b2_ref,     # (5, 84, 160), (1, 80)   conv2 banded weights / pooled bias row
    s2e_ref, s2o_ref,   # (5, 10)                 pool2 row selectors
    t2e_ref, t2o_ref,   # (160, 80)               pool2 column selectors
    w1_ref, fb1_ref,    # (5, 80, 120), (1, 120)  fc1 (flatten folded into per-row blocks)
    w2_ref, fb2_ref,    # (120, 84),    (1, 84)
    w3_ref, fb3_ref,    # (84, 10),     (1, 10)
    out_ref,            # (B, 10)
    act1_ref,           # VMEM scratch (14, 84)   pooled layer-1 activations
    p2_ref,             # VMEM scratch (5, 80)    pooled layer-2 activations
):
  def mm(a, b):
    return jnp.dot(a, b, preferred_element_type=jnp.float32)

  B = x_ref.shape[0]
  K = m1_ref.shape[0]            # 5  (conv kernel size)
  OH1 = s1e_ref.shape[1]         # 28 (conv1 output rows)
  OH2 = s2e_ref.shape[1]         # 10 (conv2 output rows)
  PH2 = s2e_ref.shape[0]         # 5  (pooled layer-2 rows)

  for b in range(B):
    # ---- conv1 as K shifted banded matmuls (bias/relu deferred past the pool) ----
    acc1 = mm(x_ref[b, 0:OH1, :], m1_ref[0])
    for di in range(1, K):
      acc1 = acc1 + mm(x_ref[b, di:di + OH1, :], m1_ref[di])           # (28, 168)

    # ---- 2x2 max-pool via one-hot selection matmuls, then bias + relu ----
    r1 = jnp.maximum(mm(s1e_ref[...], acc1), mm(s1o_ref[...], acc1))   # (14, 168)
    p1 = jnp.maximum(mm(r1, t1e_ref[...]), mm(r1, t1o_ref[...]))       # (14, 84)
    act1_ref[...] = jnp.maximum(p1 + b1_ref[...], 0.0)

    # ---- conv2 ----
    acc2 = mm(act1_ref[0:OH2, :], m2_ref[0])
    for di in range(1, K):
      acc2 = acc2 + mm(act1_ref[di:di + OH2, :], m2_ref[di])           # (10, 160)

    r2 = jnp.maximum(mm(s2e_ref[...], acc2), mm(s2o_ref[...], acc2))   # (5, 160)
    p2 = jnp.maximum(mm(r2, t2e_ref[...]), mm(r2, t2o_ref[...]))       # (5, 80)
    p2_ref[...] = jnp.maximum(p2 + b2_ref[...], 0.0)

    # ---- fc1: torch NCHW flatten folded into w1's per-row (80 -> 120) blocks ----
    z = mm(p2_ref[0:1, :], w1_ref[0])
    for h in range(1, PH2):
      z = z + mm(p2_ref[h:h + 1, :], w1_ref[h])                        # (1, 120)
    h1 = jnp.maximum(z + fb1_ref[...], 0.0)

    # ---- fc2 / fc3 ----
    h2 = jnp.maximum(mm(h1, w2_ref[...]) + fb2_ref[...], 0.0)          # (1, 84)
    out_ref[b:b + 1, :] = mm(h2, w3_ref[...]) + fb3_ref[...]           # (1, 10)


# ---------------------------------------------------------------------------
# Host-side (plain JAX) weight reshaping: conv -> banded matmul matrices, etc.
# ---------------------------------------------------------------------------
def _banded_conv_weight(w, w_in):
  """(Cout, Cin, k, k) torch conv weight -> (k, w_in*Cin, w_out*Cout) banded matrices
  with M[di, wi*Cin+ci, ow*Cout+co] = w[co, ci, di, wi-ow] when 0 <= wi-ow < k,
  so that conv(x)[oh, ow*Cout+co] == sum_di x2d[oh+di, :] @ M[di]."""
  cout, cin, k, _ = w.shape
  w_out = w_in - k + 1
  shift = (jnp.arange(w_in)[None, :, None]
           == jnp.arange(w_out)[None, None, :] + jnp.arange(k)[:, None, None])
  m5 = jnp.einsum("jwo,uvij->iwvou", shift.astype(jnp.float32), w.astype(jnp.float32))
  return m5.reshape(k, w_in * cin, w_out * cout)


def _pool_selectors(n_in, channels):
  """One-hot matrices implementing 2x2/stride-2 max pooling as matmuls.
  Se/So: (n_in//2, n_in) pick even/odd rows.
  Te/To: (n_in*C, (n_in//2)*C) pick even/odd spatial columns (channel-interleaved)."""
  n_out = n_in // 2
  cols = jnp.arange(n_in)[None, :]
  rows = jnp.arange(n_out)[:, None]
  se = (cols == 2 * rows).astype(jnp.float32)
  so = (cols == 2 * rows + 1).astype(jnp.float32)
  eye_c = jnp.eye(channels, dtype=jnp.float32)
  te = jnp.kron(se.T, eye_c)
  to = jnp.kron(so.T, eye_c)
  return se, so, te, to


def net_forward(params, x):
  """Forward pass of Net for NCHW float32 x of shape (B, 3, 32, 32)."""
  B = x.shape[0]
  # NCHW -> (B, H, W*Cin) channel-interleaved row layout (single cheap host op).
  x2d = x.transpose(0, 2, 3, 1).reshape(B, 32, 32 * 3)

  m1 = _banded_conv_weight(params["conv1_w"], 32)          # (5, 96, 168)
  m2 = _banded_conv_weight(params["conv2_w"], 14)          # (5, 84, 160)
  b1 = jnp.tile(params["conv1_b"], 14)[None, :]            # (1, 84)  (bias after pooling)
  b2 = jnp.tile(params["conv2_b"], 5)[None, :]             # (1, 80)

  s1e, s1o, t1e, t1o = _pool_selectors(28, 6)
  s2e, s2o, t2e, t2o = _pool_selectors(10, 16)

  # fc1 weight permuted so torch's NCHW flatten becomes 5 per-row (80 -> 120) blocks.
  w1 = params["fc1_w"].reshape(120, 16, 5, 5).transpose(2, 3, 1, 0).reshape(5, 80, 120)
  fb1 = params["fc1_b"][None, :]
  w2 = params["fc2_w"].T
  fb2 = params["fc2_b"][None, :]
  w3 = params["fc3_w"].T
  fb3 = params["fc3_b"][None, :]

  operands = (x2d, m1, b1, s1e, s1o, t1e, t1o,
              m2, b2, s2e, s2o, t2e, t2o,
              w1, fb1, w2, fb2, w3, fb3)
  vmem_specs = [pl.BlockSpec(memory_space=pltpu.MemorySpace.VMEM) for _ in operands]

  return pl.pallas_call(
      _lenet_fused_kernel,
      out_shape=jax.ShapeDtypeStruct((B, 10), jnp.float32),
      in_specs=vmem_specs,
      out_specs=pl.BlockSpec(memory_space=pltpu.MemorySpace.VMEM),
      scratch_shapes=[pltpu.VMEM((14, 84), jnp.float32),
                      pltpu.VMEM((5, 80), jnp.float32)],
  )(*operands)


# ---------------------------------------------------------------------------
# Parameters (PyTorch layouts, uniform(+-1/sqrt(fan_in)) like nn.Conv2d / nn.Linear)
# ---------------------------------------------------------------------------
def init_params(key):
  def uniform(k, shape, fan_in):
    bound = 1.0 / float(fan_in) ** 0.5
    return jax.random.uniform(k, shape, jnp.float32, -bound, bound)

  keys = jax.random.split(key, 10)
  return {
      "conv1_w": uniform(keys[0], (6, 3, 5, 5), 3 * 5 * 5),
      "conv1_b": uniform(keys[1], (6,), 3 * 5 * 5),
      "conv2_w": uniform(keys[2], (16, 6, 5, 5), 6 * 5 * 5),
      "conv2_b": uniform(keys[3], (16,), 6 * 5 * 5),
      "fc1_w": uniform(keys[4], (120, 16 * 5 * 5), 16 * 5 * 5),
      "fc1_b": uniform(keys[5], (120,), 16 * 5 * 5),
      "fc2_w": uniform(keys[6], (84, 120), 120),
      "fc2_b": uniform(keys[7], (84,), 120),
      "fc3_w": uniform(keys[8], (10, 84), 84),
      "fc3_b": uniform(keys[9], (10,), 84),
  }


# ---------------------------------------------------------------------------
# Pure-JAX reference (matches torch Net.forward) for a correctness check.
# ---------------------------------------------------------------------------
def net_forward_ref(params, x):
  def conv(a, w):
    return jax.lax.conv_general_dilated(
        a, w, (1, 1), "VALID",
        dimension_numbers=("NCHW", "OIHW", "NCHW"),
        precision=jax.lax.Precision.HIGHEST)

  def pool(a):
    return jax.lax.reduce_window(a, -jnp.inf, jax.lax.max,
                                 (1, 1, 2, 2), (1, 1, 2, 2), "VALID")

  a = pool(jax.nn.relu(conv(x, params["conv1_w"]) + params["conv1_b"][None, :, None, None]))
  a = pool(jax.nn.relu(conv(a, params["conv2_w"]) + params["conv2_b"][None, :, None, None]))
  a = a.reshape(a.shape[0], -1)                       # torch .view(-1, 16*5*5)
  a = jax.nn.relu(a @ params["fc1_w"].T + params["fc1_b"])
  a = jax.nn.relu(a @ params["fc2_w"].T + params["fc2_b"])
  return a @ params["fc3_w"].T + params["fc3_b"]


if __name__ == "__main__":
  key = jax.random.PRNGKey(0)
  k_params, k_x = jax.random.split(key)
  params = init_params(k_params)
  # Net's 16*5*5 flatten implies a 32x32 input (CIFAR-like). Batch = 2.
  x = jax.random.normal(k_x, (2, 3, 32, 32), dtype=jnp.float32)

  out = jax.block_until_ready(jax.jit(net_forward)(params, x))
  assert out.shape == (2, 10), out.shape
  assert out.dtype == jnp.float32

  with jax.default_matmul_precision("highest"):
    ref = jax.block_until_ready(jax.jit(net_forward_ref)(params, x))
  max_err = float(jnp.max(jnp.abs(out - ref)))
  assert max_err < 2e-3, f"kernel vs reference mismatch: max abs err = {max_err}"

  print("KERNEL_OK")
</pallas_src>

<mosaic_0001>
module attributes {stable_mosaic.version = 11 : i64} {
  func.func @_lenet_fused_kernel(%arg0: memref<2x32x96xf32, #tpu.memory_space<vmem>>, %arg1: memref<5x96x168xf32, #tpu.memory_space<vmem>>, %arg2: memref<1x84xf32, #tpu.memory_space<vmem>>, %arg3: memref<14x28xf32, #tpu.memory_space<vmem>>, %arg4: memref<14x28xf32, #tpu.memory_space<vmem>>, %arg5: memref<168x84xf32, #tpu.memory_space<vmem>>, %arg6: memref<168x84xf32, #tpu.memory_space<vmem>>, %arg7: memref<5x84x160xf32, #tpu.memory_space<vmem>>, %arg8: memref<1x80xf32, #tpu.memory_space<vmem>>, %arg9: memref<5x10xf32, #tpu.memory_space<vmem>>, %arg10: memref<5x10xf32, #tpu.memory_space<vmem>>, %arg11: memref<160x80xf32, #tpu.memory_space<vmem>>, %arg12: memref<160x80xf32, #tpu.memory_space<vmem>>, %arg13: memref<5x80x120xf32, #tpu.memory_space<vmem>>, %arg14: memref<1x120xf32, #tpu.memory_space<vmem>>, %arg15: memref<120x84xf32, #tpu.memory_space<vmem>>, %arg16: memref<1x84xf32, #tpu.memory_space<vmem>>, %arg17: memref<84x10xf32, #tpu.memory_space<vmem>>, %arg18: memref<1x10xf32, #tpu.memory_space<vmem>>, %arg19: memref<2x10xf32, #tpu.memory_space<vmem>>, %arg20: memref<14x84xf32, #tpu.memory_space<vmem>>, %arg21: memref<5x80xf32, #tpu.memory_space<vmem>>) attributes {dimension_semantics = [], scalar_prefetch = 0 : i64, scratch_operands = 2 : i64, tpu.core_type = #tpu.core_type<tc>} {
    %c0 = arith.constant 0 : index
    %c0_0 = arith.constant 0 : index
    %c0_1 = arith.constant 0 : index
    %0 = vector.load %arg0[%c0, %c0_0, %c0_1] : memref<2x32x96xf32, #tpu.memory_space<vmem>>, vector<1x28x96xf32>
    %1 = vector.shape_cast %0 : vector<1x28x96xf32> to vector<28x96xf32>
    %c0_2 = arith.constant 0 : index
    %c0_3 = arith.constant 0 : index
    %c0_4 = arith.constant 0 : index
    %2 = vector.load %arg1[%c0_2, %c0_3, %c0_4] : memref<5x96x168xf32, #tpu.memory_space<vmem>>, vector<1x96x168xf32>
    %3 = vector.shape_cast %2 : vector<1x96x168xf32> to vector<96x168xf32>
    %cst = arith.constant dense<0.000000e+00> : vector<28x168xf32>
    %4 = tpu.matmul %1, %3, %cst {dimension_numbers = #tpu.dot_dimension_numbers<[1], [0], [0], [1], [0, 0, 1, 1], [], []>} : vector<28x96xf32>, vector<96x168xf32>, vector<28x168xf32> -> vector<28x168xf32>
    %c0_5 = arith.constant 0 : index
    %c1 = arith.constant 1 : index
    %c0_6 = arith.constant 0 : index
    %5 = vector.load %arg0[%c0_5, %c1, %c0_6] : memref<2x32x96xf32, #tpu.memory_space<vmem>>, vector<1x28x96xf32>
    %6 = vector.shape_cast %5 : vector<1x28x96xf32> to vector<28x96xf32>
    %c1_7 = arith.constant 1 : index
    %c0_8 = arith.constant 0 : index
    %c0_9 = arith.constant 0 : index
    %7 = vector.load %arg1[%c1_7, %c0_8, %c0_9] : memref<5x96x168xf32, #tpu.memory_space<vmem>>, vector<1x96x168xf32>
    %8 = vector.shape_cast %7 : vector<1x96x168xf32> to vector<96x168xf32>
    %cst_10 = arith.constant dense<0.000000e+00> : vector<28x168xf32>
    %9 = tpu.matmul %6, %8, %cst_10 {dimension_numbers = #tpu.dot_dimension_numbers<[1], [0], [0], [1], [0, 0, 1, 1], [], []>} : vector<28x96xf32>, vector<96x168xf32>, vector<28x168xf32> -> vector<28x168xf32>
    %10 = arith.addf %4, %9 : vector<28x168xf32>
    %c0_11 = arith.constant 0 : index
    %c2 = arith.constant 2 : index
    %c0_12 = arith.constant 0 : index
    %11 = vector.load %arg0[%c0_11, %c2, %c0_12] : memref<2x32x96xf32, #tpu.memory_space<vmem>>, vector<1x28x96xf32>
    %12 = vector.shape_cast %11 : vector<1x28x96xf32> to vector<28x96xf32>
    %c2_13 = arith.constant 2 : index
    %c0_14 = arith.constant 0 : index
    %c0_15 = arith.constant 0 : index
    %13 = vector.load %arg1[%c2_13, %c0_14, %c0_15] : memref<5x96x168xf32, #tpu.memory_space<vmem>>, vector<1x96x168xf32>
    %14 = vector.shape_cast %13 : vector<1x96x168xf32> to vector<96x168xf32>
    %cst_16 = arith.constant dense<0.000000e+00> : vector<28x168xf32>
    %15 = tpu.matmul %12, %14, %cst_16 {dimension_numbers = #tpu.dot_dimension_numbers<[1], [0], [0], [1], [0, 0, 1, 1], [], []>} : vector<28x96xf32>, vector<96x168xf32>, vector<28x168xf32> -> vector<28x168xf32>
    %16 = arith.addf %10, %15 : vector<28x168xf32>
    %c0_17 = arith.constant 0 : index
    %c3 = arith.constant 3 : index
    %c0_18 = arith.constant 0 : index
    %17 = vector.load %arg0[%c0_17, %c3, %c0_18] : memref<2x32x96xf32, #tpu.memory_space<vmem>>, vector<1x28x96xf32>
    %18 = vector.shape_cast %17 : vector<1x28x96xf32> to vector<28x96xf32>
    %c3_19 = arith.constant 3 : index
    %c0_20 = arith.constant 0 : index
    %c0_21 = arith.constant 0 : index
    %19 = vector.load %arg1[%c3_19, %c0_20, %c0_21] : memref<5x96x168xf32, #tpu.memory_space<vmem>>, vector<1x96x168xf32>
    %20 = vector.shape_cast %19 : vector<1x96x168xf32> to vector<96x168xf32>
    %cst_22 = arith.constant dense<0.000000e+00> : vector<28x168xf32>
    %21 = tpu.matmul %18, %20, %cst_22 {dimension_numbers = #tpu.dot_dimension_numbers<[1], [0], [0], [1], [0, 0, 1, 1], [], []>} : vector<28x96xf32>, vector<96x168xf32>, vector<28x168xf32> -> vector<28x168xf32>
    %22 = arith.addf %16, %21 : vector<28x168xf32>
    %c0_23 = arith.constant 0 : index
    %c4 = arith.constant 4 : index
    %c0_24 = arith.constant 0 : index
    %23 = vector.load %arg0[%c0_23, %c4, %c0_24] : memref<2x32x96xf32, #tpu.memory_space<vmem>>, vector<1x28x96xf32>
    %24 = vector.shape_cast %23 : vector<1x28x96xf32> to vector<28x96xf32>
    %c4_25 = arith.constant 4 : index
    %c0_26 = arith.constant 0 : index
    %c0_27 = arith.constant 0 : index
    %25 = vector.load %arg1[%c4_25, %c0_26, %c0_27] : memref<5x96x168xf32, #tpu.memory_space<vmem>>, vector<1x96x168xf32>
    %26 = vector.shape_cast %25 : vector<1x96x168xf32> to vector<96x168xf32>
    %cst_28 = arith.constant dense<0.000000e+00> : vector<28x168xf32>
    %27 = tpu.matmul %24, %26, %cst_28 {dimension_numbers = #tpu.dot_dimension_numbers<[1], [0], [0], [1], [0, 0, 1, 1], [], []>} : vector<28x96xf32>, vector<96x168xf32>, vector<28x168xf32> -> vector<28x168xf32>
    %28 = arith.addf %22, %27 : vector<28x168xf32>
    %c0_29 = arith.constant 0 : index
    %c0_30 = arith.constant 0 : index
    %29 = vector.load %arg3[%c0_29, %c0_30] : memref<14x28xf32, #tpu.memory_space<vmem>>, vector<14x28xf32>
    %cst_31 = arith.constant dense<0.000000e+00> : vector<14x168xf32>
    %30 = tpu.matmul %29, %28, %cst_31 {dimension_numbers = #tpu.dot_dimension_numbers<[1], [0], [0], [1], [0, 0, 1, 1], [], []>} : vector<14x28xf32>, vector<28x168xf32>, vector<14x168xf32> -> vector<14x168xf32>
    %c0_32 = arith.constant 0 : index
    %c0_33 = arith.constant 0 : index
    %31 = vector.load %arg4[%c0_32, %c0_33] : memref<14x28xf32, #tpu.memory_space<vmem>>, vector<14x28xf32>
    %cst_34 = arith.constant dense<0.000000e+00> : vector<14x168xf32>
    %32 = tpu.matmul %31, %28, %cst_34 {dimension_numbers = #tpu.dot_dimension_numbers<[1], [0], [0], [1], [0, 0, 1, 1], [], []>} : vector<14x28xf32>, vector<28x168xf32>, vector<14x168xf32> -> vector<14x168xf32>
    %33 = arith.maximumf %30, %32 : vector<14x168xf32>
    %c0_35 = arith.constant 0 : index
    %c0_36 = arith.constant 0 : index
    %34 = vector.load %arg5[%c0_35, %c0_36] : memref<168x84xf32, #tpu.memory_space<vmem>>, vector<168x84xf32>
    %cst_37 = arith.constant dense<0.000000e+00> : vector<14x84xf32>
    %35 = tpu.matmul %33, %34, %cst_37 {dimension_numbers = #tpu.dot_dimension_numbers<[1], [0], [0], [1], [0, 0, 1, 1], [], []>} : vector<14x168xf32>, vector<168x84xf32>, vector<14x84xf32> -> vector<14x84xf32>
    %c0_38 = arith.constant 0 : index
    %c0_39 = arith.constant 0 : index
    %36 = vector.load %arg6[%c0_38, %c0_39] : memref<168x84xf32, #tpu.memory_space<vmem>>, vector<168x84xf32>
    %cst_40 = arith.constant dense<0.000000e+00> : vector<14x84xf32>
    %37 = tpu.matmul %33, %36, %cst_40 {dimension_numbers = #tpu.dot_dimension_numbers<[1], [0], [0], [1], [0, 0, 1, 1], [], []>} : vector<14x168xf32>, vector<168x84xf32>, vector<14x84xf32> -> vector<14x84xf32>
    %38 = arith.maximumf %35, %37 : vector<14x84xf32>
    %c0_41 = arith.constant 0 : index
    %c0_42 = arith.constant 0 : index
    %39 = vector.load %arg2[%c0_41, %c0_42] : memref<1x84xf32, #tpu.memory_space<vmem>>, vector<1x84xf32>
    %40 = vector.broadcast %39 : vector<1x84xf32> to vector<14x84xf32>
    %41 = arith.addf %38, %40 : vector<14x84xf32>
    %cst_43 = arith.constant 0.000000e+00 : f32
    %42 = vector.broadcast %cst_43 : f32 to vector<14x84xf32>
    %43 = arith.maximumf %41, %42 : vector<14x84xf32>
    %c0_44 = arith.constant 0 : index
    %c0_45 = arith.constant 0 : index
    %44 = vector.load %arg20[%c0_44, %c0_45] : memref<14x84xf32, #tpu.memory_space<vmem>>, vector<14x84xf32>
    tpu.vector_store %arg20[%c0_44, %c0_45], %43 {strides = array<i32>} : memref<14x84xf32, #tpu.memory_space<vmem>>, vector<14x84xf32>,
    %c0_46 = arith.constant 0 : index
    %c0_47 = arith.constant 0 : index
    %45 = vector.load %arg20[%c0_46, %c0_47] : memref<14x84xf32, #tpu.memory_space<vmem>>, vector<10x84xf32>
    %c0_48 = arith.constant 0 : index
    %c0_49 = arith.constant 0 : index
    %c0_50 = arith.constant 0 : index
    %46 = vector.load %arg7[%c0_48, %c0_49, %c0_50] : memref<5x84x160xf32, #tpu.memory_space<vmem>>, vector<1x84x160xf32>
    %47 = vector.shape_cast %46 : vector<1x84x160xf32> to vector<84x160xf32>
    %cst_51 = arith.constant dense<0.000000e+00> : vector<10x160xf32>
    %48 = tpu.matmul %45, %47, %cst_51 {dimension_numbers = #tpu.dot_dimension_numbers<[1], [0], [0], [1], [0, 0, 1, 1], [], []>} : vector<10x84xf32>, vector<84x160xf32>, vector<10x160xf32> -> vector<10x160xf32>
    %c1_52 = arith.constant 1 : index
    %c0_53 = arith.constant 0 : index
    %49 = vector.load %arg20[%c1_52, %c0_53] : memref<14x84xf32, #tpu.memory_space<vmem>>, vector<10x84xf32>
    %c1_54 = arith.constant 1 : index
    %c0_55 = arith.constant 0 : index
    %c0_56 = arith.constant 0 : index
    %50 = vector.load %arg7[%c1_54, %c0_55, %c0_56] : memref<5x84x160xf32, #tpu.memory_space<vmem>>, vector<1x84x160xf32>
    %51 = vector.shape_cast %50 : vector<1x84x160xf32> to vector<84x160xf32>
    %cst_57 = arith.constant dense<0.000000e+00> : vector<10x160xf32>
    %52 = tpu.matmul %49, %51, %cst_57 {dimension_numbers = #tpu.dot_dimension_numbers<[1], [0], [0], [1], [0, 0, 1, 1], [], []>} : vector<10x84xf32>, vector<84x160xf32>, vector<10x160xf32> -> vector<10x160xf32>
    %53 = arith.addf %48, %52 : vector<10x160xf32>
    %c2_58 = arith.constant 2 : index
    %c0_59 = arith.constant 0 : index
    %54 = vector.load %arg20[%c2_58, %c0_59] : memref<14x84xf32, #tpu.memory_space<vmem>>, vector<10x84xf32>
    %c2_60 = arith.constant 2 : index
    %c0_61 = arith.constant 0 : index
    %c0_62 = arith.constant 0 : index
    %55 = vector.load %arg7[%c2_60, %c0_61, %c0_62] : memref<5x84x160xf32, #tpu.memory_space<vmem>>, vector<1x84x160xf32>
    %56 = vector.shape_cast %55 : vector<1x84x160xf32> to vector<84x160xf32>
    %cst_63 = arith.constant dense<0.000000e+00> : vector<10x160xf32>
    %57 = tpu.matmul %54, %56, %cst_63 {dimension_numbers = #tpu.dot_dimension_numbers<[1], [0], [0], [1], [0, 0, 1, 1], [], []>} : vector<10x84xf32>, vector<84x160xf32>, vector<10x160xf32> -> vector<10x160xf32>
    %58 = arith.addf %53, %57 : vector<10x160xf32>
    %c3_64 = arith.constant 3 : index
    %c0_65 = arith.constant 0 : index
    %59 = vector.load %arg20[%c3_64, %c0_65] : memref<14x84xf32, #tpu.memory_space<vmem>>, vector<10x84xf32>
    %c3_66 = arith.constant 3 : index
    %c0_67 = arith.constant 0 : index
    %c0_68 = arith.constant 0 : index
    %60 = vector.load %arg7[%c3_66, %c0_67, %c0_68] : memref<5x84x160xf32, #tpu.memory_space<vmem>>, vector<1x84x160xf32>
    %61 = vector.shape_cast %60 : vector<1x84x160xf32> to vector<84x160xf32>
    %cst_69 = arith.constant dense<0.000000e+00> : vector<10x160xf32>
    %62 = tpu.matmul %59, %61, %cst_69 {dimension_numbers = #tpu.dot_dimension_numbers<[1], [0], [0], [1], [0, 0, 1, 1], [], []>} : vector<10x84xf32>, vector<84x160xf32>, vector<10x160xf32> -> vector<10x160xf32>
    %63 = arith.addf %58, %62 : vector<10x160xf32>
    %c4_70 = arith.constant 4 : index
    %c0_71 = arith.constant 0 : index
    %64 = vector.load %arg20[%c4_70, %c0_71] : memref<14x84xf32, #tpu.memory_space<vmem>>, vector<10x84xf32>
    %c4_72 = arith.constant 4 : index
    %c0_73 = arith.constant 0 : index
    %c0_74 = arith.constant 0 : index
    %65 = vector.load %arg7[%c4_72, %c0_73, %c0_74] : memref<5x84x160xf32, #tpu.memory_space<vmem>>, vector<1x84x160xf32>
    %66 = vector.shape_cast %65 : vector<1x84x160xf32> to vector<84x160xf32>
    %cst_75 = arith.constant dense<0.000000e+00> : vector<10x160xf32>
    %67 = tpu.matmul %64, %66, %cst_75 {dimension_numbers = #tpu.dot_dimension_numbers<[1], [0], [0], [1], [0, 0, 1, 1], [], []>} : vector<10x84xf32>, vector<84x160xf32>, vector<10x160xf32> -> vector<10x160xf32>
    %68 = arith.addf %63, %67 : vector<10x160xf32>
    %c0_76 = arith.constant 0 : index
    %c0_77 = arith.constant 0 : index
    %69 = vector.load %arg9[%c0_76, %c0_77] : memref<5x10xf32, #tpu.memory_space<vmem>>, vector<5x10xf32>
    %cst_78 = arith.constant dense<0.000000e+00> : vector<5x160xf32>
    %70 = tpu.matmul %69, %68, %cst_78 {dimension_numbers = #tpu.dot_dimension_numbers<[1], [0], [0], [1], [0, 0, 1, 1], [], []>} : vector<5x10xf32>, vector<10x160xf32>, vector<5x160xf32> -> vector<5x160xf32>
    %c0_79 = arith.constant 0 : index
    %c0_80 = arith.constant 0 : index
    %71 = vector.load %arg10[%c0_79, %c0_80] : memref<5x10xf32, #tpu.memory_space<vmem>>, vector<5x10xf32>
    %cst_81 = arith.constant dense<0.000000e+00> : vector<5x160xf32>
    %72 = tpu.matmul %71, %68, %cst_81 {dimension_numbers = #tpu.dot_dimension_numbers<[1], [0], [0], [1], [0, 0, 1, 1], [], []>} : vector<5x10xf32>, vector<10x160xf32>, vector<5x160xf32> -> vector<5x160xf32>
    %73 = arith.maximumf %70, %72 : vector<5x160xf32>
    %c0_82 = arith.constant 0 : index
    %c0_83 = arith.constant 0 : index
    %74 = vector.load %arg11[%c0_82, %c0_83] : memref<160x80xf32, #tpu.memory_space<vmem>>, vector<160x80xf32>
    %cst_84 = arith.constant dense<0.000000e+00> : vector<5x80xf32>
    %75 = tpu.matmul %73, %74, %cst_84 {dimension_numbers = #tpu.dot_dimension_numbers<[1], [0], [0], [1], [0, 0, 1, 1], [], []>} : vector<5x160xf32>, vector<160x80xf32>, vector<5x80xf32> -> vector<5x80xf32>
    %c0_85 = arith.constant 0 : index
    %c0_86 = arith.constant 0 : index
    %76 = vector.load %arg12[%c0_85, %c0_86] : memref<160x80xf32, #tpu.memory_space<vmem>>, vector<160x80xf32>
    %cst_87 = arith.constant dense<0.000000e+00> : vector<5x80xf32>
    %77 = tpu.matmul %73, %76, %cst_87 {dimension_numbers = #tpu.dot_dimension_numbers<[1], [0], [0], [1], [0, 0, 1, 1], [], []>} : vector<5x160xf32>, vector<160x80xf32>, vector<5x80xf32> -> vector<5x80xf32>
    %78 = arith.maximumf %75, %77 : vector<5x80xf32>
    %c0_88 = arith.constant 0 : index
    %c0_89 = arith.constant 0 : index
    %79 = vector.load %arg8[%c0_88, %c0_89] : memref<1x80xf32, #tpu.memory_space<vmem>>, vector<1x80xf32>
    %80 = vector.broadcast %79 : vector<1x80xf32> to vector<5x80xf32>
    %81 = arith.addf %78, %80 : vector<5x80xf32>
    %cst_90 = arith.constant 0.000000e+00 : f32
    %82 = vector.broadcast %cst_90 : f32 to vector<5x80xf32>
    %83 = arith.maximumf %81, %82 : vector<5x80xf32>
    %c0_91 = arith.constant 0 : index
    %c0_92 = arith.constant 0 : index
    %84 = vector.load %arg21[%c0_91, %c0_92] : memref<5x80xf32, #tpu.memory_space<vmem>>, vector<5x80xf32>
    tpu.vector_store %arg21[%c0_91, %c0_92], %83 {strides = array<i32>} : memref<5x80xf32, #tpu.memory_space<vmem>>, vector<5x80xf32>,
    %c0_93 = arith.constant 0 : index
    %c0_94 = arith.constant 0 : index
    %85 = vector.load %arg21[%c0_93, %c0_94] : memref<5x80xf32, #tpu.memory_space<vmem>>, vector<1x80xf32>
    %c0_95 = arith.constant 0 : index
    %c0_96 = arith.constant 0 : index
    %c0_97 = arith.constant 0 : index
    %86 = vector.load %arg13[%c0_95, %c0_96, %c0_97] : memref<5x80x120xf32, #tpu.memory_space<vmem>>, vector<1x80x120xf32>
    %87 = vector.shape_cast %86 : vector<1x80x120xf32> to vector<80x120xf32>
    %cst_98 = arith.constant dense<0.000000e+00> : vector<1x120xf32>
    %88 = tpu.matmul %85, %87, %cst_98 {dimension_numbers = #tpu.dot_dimension_numbers<[1], [0], [0], [1], [0, 0, 1, 1], [], []>} : vector<1x80xf32>, vector<80x120xf32>, vector<1x120xf32> -> vector<1x120xf32>
    %c1_99 = arith.constant 1 : index
    %c0_100 = arith.constant 0 : index
    %89 = vector.load %arg21[%c1_99, %c0_100] : memref<5x80xf32, #tpu.memory_space<vmem>>, vector<1x80xf32>
    %c1_101 = arith.constant 1 : index
    %c0_102 = arith.constant 0 : index
    %c0_103 = arith.constant 0 : index
    %90 = vector.load %arg13[%c1_101, %c0_102, %c0_103] : memref<5x80x120xf32, #tpu.memory_space<vmem>>, vector<1x80x120xf32>
    %91 = vector.shape_cast %90 : vector<1x80x120xf32> to vector<80x120xf32>
    %cst_104 = arith.constant dense<0.000000e+00> : vector<1x120xf32>
    %92 = tpu.matmul %89, %91, %cst_104 {dimension_numbers = #tpu.dot_dimension_numbers<[1], [0], [0], [1], [0, 0, 1, 1], [], []>} : vector<1x80xf32>, vector<80x120xf32>, vector<1x120xf32> -> vector<1x120xf32>
    %93 = arith.addf %88, %92 : vector<1x120xf32>
    %c2_105 = arith.constant 2 : index
    %c0_106 = arith.constant 0 : index
    %94 = vector.load %arg21[%c2_105, %c0_106] : memref<5x80xf32, #tpu.memory_space<vmem>>, vector<1x80xf32>
    %c2_107 = arith.constant 2 : index
    %c0_108 = arith.constant 0 : index
    %c0_109 = arith.constant 0 : index
    %95 = vector.load %arg13[%c2_107, %c0_108, %c0_109] : memref<5x80x120xf32, #tpu.memory_space<vmem>>, vector<1x80x120xf32>
    %96 = vector.shape_cast %95 : vector<1x80x120xf32> to vector<80x120xf32>
    %cst_110 = arith.constant dense<0.000000e+00> : vector<1x120xf32>
    %97 = tpu.matmul %94, %96, %cst_110 {dimension_numbers = #tpu.dot_dimension_numbers<[1], [0], [0], [1], [0, 0, 1, 1], [], []>} : vector<1x80xf32>, vector<80x120xf32>, vector<1x120xf32> -> vector<1x120xf32>
    %98 = arith.addf %93, %97 : vector<1x120xf32>
    %c3_111 = arith.constant 3 : index
    %c0_112 = arith.constant 0 : index
    %99 = vector.load %arg21[%c3_111, %c0_112] : memref<5x80xf32, #tpu.memory_space<vmem>>, vector<1x80xf32>
    %c3_113 = arith.constant 3 : index
    %c0_114 = arith.constant 0 : index
    %c0_115 = arith.constant 0 : index
    %100 = vector.load %arg13[%c3_113, %c0_114, %c0_115] : memref<5x80x120xf32, #tpu.memory_space<vmem>>, vector<1x80x120xf32>
    %101 = vector.shape_cast %100 : vector<1x80x120xf32> to vector<80x120xf32>
    %cst_116 = arith.constant dense<0.000000e+00> : vector<1x120xf32>
    %102 = tpu.matmul %99, %101, %cst_116 {dimension_numbers = #tpu.dot_dimension_numbers<[1], [0], [0], [1], [0, 0, 1, 1], [], []>} : vector<1x80xf32>, vector<80x120xf32>, vector<1x120xf32> -> vector<1x120xf32>
    %103 = arith.addf %98, %102 : vector<1x120xf32>
    %c4_117 = arith.constant 4 : index
    %c0_118 = arith.constant 0 : index
    %104 = vector.load %arg21[%c4_117, %c0_118] : memref<5x80xf32, #tpu.memory_space<vmem>>, vector<1x80xf32>
    %c4_119 = arith.constant 4 : index
    %c0_120 = arith.constant 0 : index
    %c0_121 = arith.constant 0 : index
    %105 = vector.load %arg13[%c4_119, %c0_120, %c0_121] : memref<5x80x120xf32, #tpu.memory_space<vmem>>, vector<1x80x120xf32>
    %106 = vector.shape_cast %105 : vector<1x80x120xf32> to vector<80x120xf32>
    %cst_122 = arith.constant dense<0.000000e+00> : vector<1x120xf32>
    %107 = tpu.matmul %104, %106, %cst_122 {dimension_numbers = #tpu.dot_dimension_numbers<[1], [0], [0], [1], [0, 0, 1, 1], [], []>} : vector<1x80xf32>, vector<80x120xf32>, vector<1x120xf32> -> vector<1x120xf32>
    %108 = arith.addf %103, %107 : vector<1x120xf32>
    %c0_123 = arith.constant 0 : index
    %c0_124 = arith.constant 0 : index
    %109 = vector.load %arg14[%c0_123, %c0_124] : memref<1x120xf32, #tpu.memory_space<vmem>>, vector<1x120xf32>
    %110 = arith.addf %108, %109 : vector<1x120xf32>
    %cst_125 = arith.constant 0.000000e+00 : f32
    %111 = vector.broadcast %cst_125 : f32 to vector<1x120xf32>
    %112 = arith.maximumf %110, %111 : vector<1x120xf32>
    %c0_126 = arith.constant 0 : index
    %c0_127 = arith.constant 0 : index
    %113 = vector.load %arg15[%c0_126, %c0_127] : memref<120x84xf32, #tpu.memory_space<vmem>>, vector<120x84xf32>
    %cst_128 = arith.constant dense<0.000000e+00> : vector<1x84xf32>
    %114 = tpu.matmul %112, %113, %cst_128 {dimension_numbers = #tpu.dot_dimension_numbers<[1], [0], [0], [1], [0, 0, 1, 1], [], []>} : vector<1x120xf32>, vector<120x84xf32>, vector<1x84xf32> -> vector<1x84xf32>
    %c0_129 = arith.constant 0 : index
    %c0_130 = arith.constant 0 : index
    %115 = vector.load %arg16[%c0_129, %c0_130] : memref<1x84xf32, #tpu.memory_space<vmem>>, vector<1x84xf32>
    %116 = arith.addf %114, %115 : vector<1x84xf32>
    %cst_131 = arith.constant 0.000000e+00 : f32
    %117 = vector.broadcast %cst_131 : f32 to vector<1x84xf32>
    %118 = arith.maximumf %116, %117 : vector<1x84xf32>
    %c0_132 = arith.constant 0 : index
    %c0_133 = arith.constant 0 : index
    %119 = vector.load %arg17[%c0_132, %c0_133] : memref<84x10xf32, #tpu.memory_space<vmem>>, vector<84x10xf32>
    %cst_134 = arith.constant dense<0.000000e+00> : vector<1x10xf32>
    %120 = tpu.matmul %118, %119, %cst_134 {dimension_numbers = #tpu.dot_dimension_numbers<[1], [0], [0], [1], [0, 0, 1, 1], [], []>} : vector<1x84xf32>, vector<84x10xf32>, vector<1x10xf32> -> vector<1x10xf32>
    %c0_135 = arith.constant 0 : index
    %c0_136 = arith.constant 0 : index
    %121 = vector.load %arg18[%c0_135, %c0_136] : memref<1x10xf32, #tpu.memory_space<vmem>>, vector<1x10xf32>
    %122 = arith.addf %120, %121 : vector<1x10xf32>
    %c0_137 = arith.constant 0 : index
    %c0_138 = arith.constant 0 : index
    %123 = vector.load %arg19[%c0_137, %c0_138] : memref<2x10xf32, #tpu.memory_space<vmem>>, vector<1x10xf32>
    tpu.vector_store %arg19[%c0_137, %c0_138], %122 {strides = array<i32>} : memref<2x10xf32, #tpu.memory_space<vmem>>, vector<1x10xf32>,
    %c1_139 = arith.constant 1 : index
    %c0_140 = arith.constant 0 : index
    %c0_141 = arith.constant 0 : index
    %124 = vector.load %arg0[%c1_139, %c0_140, %c0_141] : memref<2x32x96xf32, #tpu.memory_space<vmem>>, vector<1x28x96xf32>
    %125 = vector.shape_cast %124 : vector<1x28x96xf32> to vector<28x96xf32>
    %c0_142 = arith.constant 0 : index
    %c0_143 = arith.constant 0 : index
    %c0_144 = arith.constant 0 : index
    %126 = vector.load %arg1[%c0_142, %c0_143, %c0_144] : memref<5x96x168xf32, #tpu.memory_space<vmem>>, vector<1x96x168xf32>
    %127 = vector.shape_cast %126 : vector<1x96x168xf32> to vector<96x168xf32>
    %cst_145 = arith.constant dense<0.000000e+00> : vector<28x168xf32>
    %128 = tpu.matmul %125, %127, %cst_145 {dimension_numbers = #tpu.dot_dimension_numbers<[1], [0], [0], [1], [0, 0, 1, 1], [], []>} : vector<28x96xf32>, vector<96x168xf32>, vector<28x168xf32> -> vector<28x168xf32>
    %c1_146 = arith.constant 1 : index
    %c1_147 = arith.constant 1 : index
    %c0_148 = arith.constant 0 : index
    %129 = vector.load %arg0[%c1_146, %c1_147, %c0_148] : memref<2x32x96xf32, #tpu.memory_space<vmem>>, vector<1x28x96xf32>
    %130 = vector.shape_cast %129 : vector<1x28x96xf32> to vector<28x96xf32>
    %c1_149 = arith.constant 1 : index
    %c0_150 = arith.constant 0 : index
    %c0_151 = arith.constant 0 : index
    %131 = vector.load %arg1[%c1_149, %c0_150, %c0_151] : memref<5x96x168xf32, #tpu.memory_space<vmem>>, vector<1x96x168xf32>
    %132 = vector.shape_cast %131 : vector<1x96x168xf32> to vector<96x168xf32>
    %cst_152 = arith.constant dense<0.000000e+00> : vector<28x168xf32>
    %133 = tpu.matmul %130, %132, %cst_152 {dimension_numbers = #tpu.dot_dimension_numbers<[1], [0], [0], [1], [0, 0, 1, 1], [], []>} : vector<28x96xf32>, vector<96x168xf32>, vector<28x168xf32> -> vector<28x168xf32>
    %134 = arith.addf %128, %133 : vector<28x168xf32>
    %c1_153 = arith.constant 1 : index
    %c2_154 = arith.constant 2 : index
    %c0_155 = arith.constant 0 : index
    %135 = vector.load %arg0[%c1_153, %c2_154, %c0_155] : memref<2x32x96xf32, #tpu.memory_space<vmem>>, vector<1x28x96xf32>
    %136 = vector.shape_cast %135 : vector<1x28x96xf32> to vector<28x96xf32>
    %c2_156 = arith.constant 2 : index
    %c0_157 = arith.constant 0 : index
    %c0_158 = arith.constant 0 : index
    %137 = vector.load %arg1[%c2_156, %c0_157, %c0_158] : memref<5x96x168xf32, #tpu.memory_space<vmem>>, vector<1x96x168xf32>
    %138 = vector.shape_cast %137 : vector<1x96x168xf32> to vector<96x168xf32>
    %cst_159 = arith.constant dense<0.000000e+00> : vector<28x168xf32>
    %139 = tpu.matmul %136, %138, %cst_159 {dimension_numbers = #tpu.dot_dimension_numbers<[1], [0], [0], [1], [0, 0, 1, 1], [], []>} : vector<28x96xf32>, vector<96x168xf32>, vector<28x168xf32> -> vector<28x168xf32>
    %140 = arith.addf %134, %139 : vector<28x168xf32>
    %c1_160 = arith.constant 1 : index
    %c3_161 = arith.constant 3 : index
    %c0_162 = arith.constant 0 : index
    %141 = vector.load %arg0[%c1_160, %c3_161, %c0_162] : memref<2x32x96xf32, #tpu.memory_space<vmem>>, vector<1x28x96xf32>
    %142 = vector.shape_cast %141 : vector<1x28x96xf32> to vector<28x96xf32>
    %c3_163 = arith.constant 3 : index
    %c0_164 = arith.constant 0 : index
    %c0_165 = arith.constant 0 : index
    %143 = vector.load %arg1[%c3_163, %c0_164, %c0_165] : memref<5x96x168xf32, #tpu.memory_space<vmem>>, vector<1x96x168xf32>
    %144 = vector.shape_cast %143 : vector<1x96x168xf32> to vector<96x168xf32>
    %cst_166 = arith.constant dense<0.000000e+00> : vector<28x168xf32>
    %145 = tpu.matmul %142, %144, %cst_166 {dimension_numbers = #tpu.dot_dimension_numbers<[1], [0], [0], [1], [0, 0, 1, 1], [], []>} : vector<28x96xf32>, vector<96x168xf32>, vector<28x168xf32> -> vector<28x168xf32>
    %146 = arith.addf %140, %145 : vector<28x168xf32>
    %c1_167 = arith.constant 1 : index
    %c4_168 = arith.constant 4 : index
    %c0_169 = arith.constant 0 : index
    %147 = vector.load %arg0[%c1_167, %c4_168, %c0_169] : memref<2x32x96xf32, #tpu.memory_space<vmem>>, vector<1x28x96xf32>
    %148 = vector.shape_cast %147 : vector<1x28x96xf32> to vector<28x96xf32>
    %c4_170 = arith.constant 4 : index
    %c0_171 = arith.constant 0 : index
    %c0_172 = arith.constant 0 : index
    %149 = vector.load %arg1[%c4_170, %c0_171, %c0_172] : memref<5x96x168xf32, #tpu.memory_space<vmem>>, vector<1x96x168xf32>
    %150 = vector.shape_cast %149 : vector<1x96x168xf32> to vector<96x168xf32>
    %cst_173 = arith.constant dense<0.000000e+00> : vector<28x168xf32>
    %151 = tpu.matmul %148, %150, %cst_173 {dimension_numbers = #tpu.dot_dimension_numbers<[1], [0], [0], [1], [0, 0, 1, 1], [], []>} : vector<28x96xf32>, vector<96x168xf32>, vector<28x168xf32> -> vector<28x168xf32>
    %152 = arith.addf %146, %151 : vector<28x168xf32>
    %c0_174 = arith.constant 0 : index
    %c0_175 = arith.constant 0 : index
    %153 = vector.load %arg3[%c0_174, %c0_175] : memref<14x28xf32, #tpu.memory_space<vmem>>, vector<14x28xf32>
    %cst_176 = arith.constant dense<0.000000e+00> : vector<14x168xf32>
    %154 = tpu.matmul %153, %152, %cst_176 {dimension_numbers = #tpu.dot_dimension_numbers<[1], [0], [0], [1], [0, 0, 1, 1], [], []>} : vector<14x28xf32>, vector<28x168xf32>, vector<14x168xf32> -> vector<14x168xf32>
    %c0_177 = arith.constant 0 : index
    %c0_178 = arith.constant 0 : index
    %155 = vector.load %arg4[%c0_177, %c0_178] : memref<14x28xf32, #tpu.memory_space<vmem>>, vector<14x28xf32>
    %cst_179 = arith.constant dense<0.000000e+00> : vector<14x168xf32>
    %156 = tpu.matmul %155, %152, %cst_179 {dimension_numbers = #tpu.dot_dimension_numbers<[1], [0], [0], [1], [0, 0, 1, 1], [], []>} : vector<14x28xf32>, vector<28x168xf32>, vector<14x168xf32> -> vector<14x168xf32>
    %157 = arith.maximumf %154, %156 : vector<14x168xf32>
    %c0_180 = arith.constant 0 : index
    %c0_181 = arith.constant 0 : index
    %158 = vector.load %arg5[%c0_180, %c0_181] : memref<168x84xf32, #tpu.memory_space<vmem>>, vector<168x84xf32>
    %cst_182 = arith.constant dense<0.000000e+00> : vector<14x84xf32>
    %159 = tpu.matmul %157, %158, %cst_182 {dimension_numbers = #tpu.dot_dimension_numbers<[1], [0], [0], [1], [0, 0, 1, 1], [], []>} : vector<14x168xf32>, vector<168x84xf32>, vector<14x84xf32> -> vector<14x84xf32>
    %c0_183 = arith.constant 0 : index
    %c0_184 = arith.constant 0 : index
    %160 = vector.load %arg6[%c0_183, %c0_184] : memref<168x84xf32, #tpu.memory_space<vmem>>, vector<168x84xf32>
    %cst_185 = arith.constant dense<0.000000e+00> : vector<14x84xf32>
    %161 = tpu.matmul %157, %160, %cst_185 {dimension_numbers = #tpu.dot_dimension_numbers<[1], [0], [0], [1], [0, 0, 1, 1], [], []>} : vector<14x168xf32>, vector<168x84xf32>, vector<14x84xf32> -> vector<14x84xf32>
    %162 = arith.maximumf %159, %161 : vector<14x84xf32>
    %c0_186 = arith.constant 0 : index
    %c0_187 = arith.constant 0 : index
    %163 = vector.load %arg2[%c0_186, %c0_187] : memref<1x84xf32, #tpu.memory_space<vmem>>, vector<1x84xf32>
    %164 = vector.broadcast %163 : vector<1x84xf32> to vector<14x84xf32>
    %165 = arith.addf %162, %164 : vector<14x84xf32>
    %cst_188 = arith.constant 0.000000e+00 : f32
    %166 = vector.broadcast %cst_188 : f32 to vector<14x84xf32>
    %167 = arith.maximumf %165, %166 : vector<14x84xf32>
    %c0_189 = arith.constant 0 : index
    %c0_190 = arith.constant 0 : index
    %168 = vector.load %arg20[%c0_189, %c0_190] : memref<14x84xf32, #tpu.memory_space<vmem>>, vector<14x84xf32>
    tpu.vector_store %arg20[%c0_189, %c0_190], %167 {strides = array<i32>} : memref<14x84xf32, #tpu.memory_space<vmem>>, vector<14x84xf32>,
    %c0_191 = arith.constant 0 : index
    %c0_192 = arith.constant 0 : index
    %169 = vector.load %arg20[%c0_191, %c0_192] : memref<14x84xf32, #tpu.memory_space<vmem>>, vector<10x84xf32>
    %c0_193 = arith.constant 0 : index
    %c0_194 = arith.constant 0 : index
    %c0_195 = arith.constant 0 : index
    %170 = vector.load %arg7[%c0_193, %c0_194, %c0_195] : memref<5x84x160xf32, #tpu.memory_space<vmem>>, vector<1x84x160xf32>
    %171 = vector.shape_cast %170 : vector<1x84x160xf32> to vector<84x160xf32>
    %cst_196 = arith.constant dense<0.000000e+00> : vector<10x160xf32>
    %172 = tpu.matmul %169, %171, %cst_196 {dimension_numbers = #tpu.dot_dimension_numbers<[1], [0], [0], [1], [0, 0, 1, 1], [], []>} : vector<10x84xf32>, vector<84x160xf32>, vector<10x160xf32> -> vector<10x160xf32>
    %c1_197 = arith.constant 1 : index
    %c0_198 = arith.constant 0 : index
    %173 = vector.load %arg20[%c1_197, %c0_198] : memref<14x84xf32, #tpu.memory_space<vmem>>, vector<10x84xf32>
    %c1_199 = arith.constant 1 : index
    %c0_200 = arith.constant 0 : index
    %c0_201 = arith.constant 0 : index
    %174 = vector.load %arg7[%c1_199, %c0_200, %c0_201] : memref<5x84x160xf32, #tpu.memory_space<vmem>>, vector<1x84x160xf32>
    %175 = vector.shape_cast %174 : vector<1x84x160xf32> to vector<84x160xf32>
    %cst_202 = arith.constant dense<0.000000e+00> : vector<10x160xf32>
    %176 = tpu.matmul %173, %175, %cst_202 {dimension_numbers = #tpu.dot_dimension_numbers<[1], [0], [0], [1], [0, 0, 1, 1], [], []>} : vector<10x84xf32>, vector<84x160xf32>, vector<10x160xf32> -> vector<10x160xf32>
    %177 = arith.addf %172, %176 : vector<10x160xf32>
    %c2_203 = arith.constant 2 : index
    %c0_204 = arith.constant 0 : index
    %178 = vector.load %arg20[%c2_203, %c0_204] : memref<14x84xf32, #tpu.memory_space<vmem>>, vector<10x84xf32>
    %c2_205 = arith.constant 2 : index
    %c0_206 = arith.constant 0 : index
    %c0_207 = arith.constant 0 : index
    %179 = vector.load %arg7[%c2_205, %c0_206, %c0_207] : memref<5x84x160xf32, #tpu.memory_space<vmem>>, vector<1x84x160xf32>
    %180 = vector.shape_cast %179 : vector<1x84x160xf32> to vector<84x160xf32>
    %cst_208 = arith.constant dense<0.000000e+00> : vector<10x160xf32>
    %181 = tpu.matmul %178, %180, %cst_208 {dimension_numbers = #tpu.dot_dimension_numbers<[1], [0], [0], [1], [0, 0, 1, 1], [], []>} : vector<10x84xf32>, vector<84x160xf32>, vector<10x160xf32> -> vector<10x160xf32>
    %182 = arith.addf %177, %181 : vector<10x160xf32>
    %c3_209 = arith.constant 3 : index
    %c0_210 = arith.constant 0 : index
    %183 = vector.load %arg20[%c3_209, %c0_210] : memref<14x84xf32, #tpu.memory_space<vmem>>, vector<10x84xf32>
    %c3_211 = arith.constant 3 : index
    %c0_212 = arith.constant 0 : index
    %c0_213 = arith.constant 0 : index
    %184 = vector.load %arg7[%c3_211, %c0_212, %c0_213] : memref<5x84x160xf32, #tpu.memory_space<vmem>>, vector<1x84x160xf32>
    %185 = vector.shape_cast %184 : vector<1x84x160xf32> to vector<84x160xf32>
    %cst_214 = arith.constant dense<0.000000e+00> : vector<10x160xf32>
    %186 = tpu.matmul %183, %185, %cst_214 {dimension_numbers = #tpu.dot_dimension_numbers<[1], [0], [0], [1], [0, 0, 1, 1], [], []>} : vector<10x84xf32>, vector<84x160xf32>, vector<10x160xf32> -> vector<10x160xf32>
    %187 = arith.addf %182, %186 : vector<10x160xf32>
    %c4_215 = arith.constant 4 : index
    %c0_216 = arith.constant 0 : index
    %188 = vector.load %arg20[%c4_215, %c0_216] : memref<14x84xf32, #tpu.memory_space<vmem>>, vector<10x84xf32>
    %c4_217 = arith.constant 4 : index
    %c0_218 = arith.constant 0 : index
    %c0_219 = arith.constant 0 : index
    %189 = vector.load %arg7[%c4_217, %c0_218, %c0_219] : memref<5x84x160xf32, #tpu.memory_space<vmem>>, vector<1x84x160xf32>
    %190 = vector.shape_cast %189 : vector<1x84x160xf32> to vector<84x160xf32>
    %cst_220 = arith.constant dense<0.000000e+00> : vector<10x160xf32>
    %191 = tpu.matmul %188, %190, %cst_220 {dimension_numbers = #tpu.dot_dimension_numbers<[1], [0], [0], [1], [0, 0, 1, 1], [], []>} : vector<10x84xf32>, vector<84x160xf32>, vector<10x160xf32> -> vector<10x160xf32>
    %192 = arith.addf %187, %191 : vector<10x160xf32>
    %c0_221 = arith.constant 0 : index
    %c0_222 = arith.constant 0 : index
    %193 = vector.load %arg9[%c0_221, %c0_222] : memref<5x10xf32, #tpu.memory_space<vmem>>, vector<5x10xf32>
    %cst_223 = arith.constant dense<0.000000e+00> : vector<5x160xf32>
    %194 = tpu.matmul %193, %192, %cst_223 {dimension_numbers = #tpu.dot_dimension_numbers<[1], [0], [0], [1], [0, 0, 1, 1], [], []>} : vector<5x10xf32>, vector<10x160xf32>, vector<5x160xf32> -> vector<5x160xf32>
    %c0_224 = arith.constant 0 : index
    %c0_225 = arith.constant 0 : index
    %195 = vector.load %arg10[%c0_224, %c0_225] : memref<5x10xf32, #tpu.memory_space<vmem>>, vector<5x10xf32>
    %cst_226 = arith.constant dense<0.000000e+00> : vector<5x160xf32>
    %196 = tpu.matmul %195, %192, %cst_226 {dimension_numbers = #tpu.dot_dimension_numbers<[1], [0], [0], [1], [0, 0, 1, 1], [], []>} : vector<5x10xf32>, vector<10x160xf32>, vector<5x160xf32> -> vector<5x160xf32>
    %197 = arith.maximumf %194, %196 : vector<5x160xf32>
    %c0_227 = arith.constant 0 : index
    %c0_228 = arith.constant 0 : index
    %198 = vector.load %arg11[%c0_227, %c0_228] : memref<160x80xf32, #tpu.memory_space<vmem>>, vector<160x80xf32>
    %cst_229 = arith.constant dense<0.000000e+00> : vector<5x80xf32>
    %199 = tpu.matmul %197, %198, %cst_229 {dimension_numbers = #tpu.dot_dimension_numbers<[1], [0], [0], [1], [0, 0, 1, 1], [], []>} : vector<5x160xf32>, vector<160x80xf32>, vector<5x80xf32> -> vector<5x80xf32>
    %c0_230 = arith.constant 0 : index
    %c0_231 = arith.constant 0 : index
    %200 = vector.load %arg12[%c0_230, %c0_231] : memref<160x80xf32, #tpu.memory_space<vmem>>, vector<160x80xf32>
    %cst_232 = arith.constant dense<0.000000e+00> : vector<5x80xf32>
    %201 = tpu.matmul %197, %200, %cst_232 {dimension_numbers = #tpu.dot_dimension_numbers<[1], [0], [0], [1], [0, 0, 1, 1], [], []>} : vector<5x160xf32>, vector<160x80xf32>, vector<5x80xf32> -> vector<5x80xf32>
    %202 = arith.maximumf %199, %201 : vector<5x80xf32>
    %c0_233 = arith.constant 0 : index
    %c0_234 = arith.constant 0 : index
    %203 = vector.load %arg8[%c0_233, %c0_234] : memref<1x80xf32, #tpu.memory_space<vmem>>, vector<1x80xf32>
    %204 = vector.broadcast %203 : vector<1x80xf32> to vector<5x80xf32>
    %205 = arith.addf %202, %204 : vector<5x80xf32>
    %cst_235 = arith.constant 0.000000e+00 : f32
    %206 = vector.broadcast %cst_235 : f32 to vector<5x80xf32>
    %207 = arith.maximumf %205, %206 : vector<5x80xf32>
    %c0_236 = arith.constant 0 : index
    %c0_237 = arith.constant 0 : index
    %208 = vector.load %arg21[%c0_236, %c0_237] : memref<5x80xf32, #tpu.memory_space<vmem>>, vector<5x80xf32>
    tpu.vector_store %arg21[%c0_236, %c0_237], %207 {strides = array<i32>} : memref<5x80xf32, #tpu.memory_space<vmem>>, vector<5x80xf32>,
    %c0_238 = arith.constant 0 : index
    %c0_239 = arith.constant 0 : index
    %209 = vector.load %arg21[%c0_238, %c0_239] : memref<5x80xf32, #tpu.memory_space<vmem>>, vector<1x80xf32>
    %c0_240 = arith.constant 0 : index
    %c0_241 = arith.constant 0 : index
    %c0_242 = arith.constant 0 : index
    %210 = vector.load %arg13[%c0_240, %c0_241, %c0_242] : memref<5x80x120xf32, #tpu.memory_space<vmem>>, vector<1x80x120xf32>
    %211 = vector.shape_cast %210 : vector<1x80x120xf32> to vector<80x120xf32>
    %cst_243 = arith.constant dense<0.000000e+00> : vector<1x120xf32>
    %212 = tpu.matmul %209, %211, %cst_243 {dimension_numbers = #tpu.dot_dimension_numbers<[1], [0], [0], [1], [0, 0, 1, 1], [], []>} : vector<1x80xf32>, vector<80x120xf32>, vector<1x120xf32> -> vector<1x120xf32>
    %c1_244 = arith.constant 1 : index
    %c0_245 = arith.constant 0 : index
    %213 = vector.load %arg21[%c1_244, %c0_245] : memref<5x80xf32, #tpu.memory_space<vmem>>, vector<1x80xf32>
    %c1_246 = arith.constant 1 : index
    %c0_247 = arith.constant 0 : index
    %c0_248 = arith.constant 0 : index
    %214 = vector.load %arg13[%c1_246, %c0_247, %c0_248] : memref<5x80x120xf32, #tpu.memory_space<vmem>>, vector<1x80x120xf32>
    %215 = vector.shape_cast %214 : vector<1x80x120xf32> to vector<80x120xf32>
    %cst_249 = arith.constant dense<0.000000e+00> : vector<1x120xf32>
    %216 = tpu.matmul %213, %215, %cst_249 {dimension_numbers = #tpu.dot_dimension_numbers<[1], [0], [0], [1], [0, 0, 1, 1], [], []>} : vector<1x80xf32>, vector<80x120xf32>, vector<1x120xf32> -> vector<1x120xf32>
    %217 = arith.addf %212, %216 : vector<1x120xf32>
    %c2_250 = arith.constant 2 : index
    %c0_251 = arith.constant 0 : index
    %218 = vector.load %arg21[%c2_250, %c0_251] : memref<5x80xf32, #tpu.memory_space<vmem>>, vector<1x80xf32>
    %c2_252 = arith.constant 2 : index
    %c0_253 = arith.constant 0 : index
    %c0_254 = arith.constant 0 : index
    %219 = vector.load %arg13[%c2_252, %c0_253, %c0_254] : memref<5x80x120xf32, #tpu.memory_space<vmem>>, vector<1x80x120xf32>
    %220 = vector.shape_cast %219 : vector<1x80x120xf32> to vector<80x120xf32>
    %cst_255 = arith.constant dense<0.000000e+00> : vector<1x120xf32>
    %221 = tpu.matmul %218, %220, %cst_255 {dimension_numbers = #tpu.dot_dimension_numbers<[1], [0], [0], [1], [0, 0, 1, 1], [], []>} : vector<1x80xf32>, vector<80x120xf32>, vector<1x120xf32> -> vector<1x120xf32>
    %222 = arith.addf %217, %221 : vector<1x120xf32>
    %c3_256 = arith.constant 3 : index
    %c0_257 = arith.constant 0 : index
    %223 = vector.load %arg21[%c3_256, %c0_257] : memref<5x80xf32, #tpu.memory_space<vmem>>, vector<1x80xf32>
    %c3_258 = arith.constant 3 : index
    %c0_259 = arith.constant 0 : index
    %c0_260 = arith.constant 0 : index
    %224 = vector.load %arg13[%c3_258, %c0_259, %c0_260] : memref<5x80x120xf32, #tpu.memory_space<vmem>>, vector<1x80x120xf32>
    %225 = vector.shape_cast %224 : vector<1x80x120xf32> to vector<80x120xf32>
    %cst_261 = arith.constant dense<0.000000e+00> : vector<1x120xf32>
    %226 = tpu.matmul %223, %225, %cst_261 {dimension_numbers = #tpu.dot_dimension_numbers<[1], [0], [0], [1], [0, 0, 1, 1], [], []>} : vector<1x80xf32>, vector<80x120xf32>, vector<1x120xf32> -> vector<1x120xf32>
    %227 = arith.addf %222, %226 : vector<1x120xf32>
    %c4_262 = arith.constant 4 : index
    %c0_263 = arith.constant 0 : index
    %228 = vector.load %arg21[%c4_262, %c0_263] : memref<5x80xf32, #tpu.memory_space<vmem>>, vector<1x80xf32>
    %c4_264 = arith.constant 4 : index
    %c0_265 = arith.constant 0 : index
    %c0_266 = arith.constant 0 : index
    %229 = vector.load %arg13[%c4_264, %c0_265, %c0_266] : memref<5x80x120xf32, #tpu.memory_space<vmem>>, vector<1x80x120xf32>
    %230 = vector.shape_cast %229 : vector<1x80x120xf32> to vector<80x120xf32>
    %cst_267 = arith.constant dense<0.000000e+00> : vector<1x120xf32>
    %231 = tpu.matmul %228, %230, %cst_267 {dimension_numbers = #tpu.dot_dimension_numbers<[1], [0], [0], [1], [0, 0, 1, 1], [], []>} : vector<1x80xf32>, vector<80x120xf32>, vector<1x120xf32> -> vector<1x120xf32>
    %232 = arith.addf %227, %231 : vector<1x120xf32>
    %c0_268 = arith.constant 0 : index
    %c0_269 = arith.constant 0 : index
    %233 = vector.load %arg14[%c0_268, %c0_269] : memref<1x120xf32, #tpu.memory_space<vmem>>, vector<1x120xf32>
    %234 = arith.addf %232, %233 : vector<1x120xf32>
    %cst_270 = arith.constant 0.000000e+00 : f32
    %235 = vector.broadcast %cst_270 : f32 to vector<1x120xf32>
    %236 = arith.maximumf %234, %235 : vector<1x120xf32>
    %c0_271 = arith.constant 0 : index
    %c0_272 = arith.constant 0 : index
    %237 = vector.load %arg15[%c0_271, %c0_272] : memref<120x84xf32, #tpu.memory_space<vmem>>, vector<120x84xf32>
    %cst_273 = arith.constant dense<0.000000e+00> : vector<1x84xf32>
    %238 = tpu.matmul %236, %237, %cst_273 {dimension_numbers = #tpu.dot_dimension_numbers<[1], [0], [0], [1], [0, 0, 1, 1], [], []>} : vector<1x120xf32>, vector<120x84xf32>, vector<1x84xf32> -> vector<1x84xf32>
    %c0_274 = arith.constant 0 : index
    %c0_275 = arith.constant 0 : index
    %239 = vector.load %arg16[%c0_274, %c0_275] : memref<1x84xf32, #tpu.memory_space<vmem>>, vector<1x84xf32>
    %240 = arith.addf %238, %239 : vector<1x84xf32>
    %cst_276 = arith.constant 0.000000e+00 : f32
    %241 = vector.broadcast %cst_276 : f32 to vector<1x84xf32>
    %242 = arith.maximumf %240, %241 : vector<1x84xf32>
    %c0_277 = arith.constant 0 : index
    %c0_278 = arith.constant 0 : index
    %243 = vector.load %arg17[%c0_277, %c0_278] : memref<84x10xf32, #tpu.memory_space<vmem>>, vector<84x10xf32>
    %cst_279 = arith.constant dense<0.000000e+00> : vector<1x10xf32>
    %244 = tpu.matmul %242, %243, %cst_279 {dimension_numbers = #tpu.dot_dimension_numbers<[1], [0], [0], [1], [0, 0, 1, 1], [], []>} : vector<1x84xf32>, vector<84x10xf32>, vector<1x10xf32> -> vector<1x10xf32>
    %c0_280 = arith.constant 0 : index
    %c0_281 = arith.constant 0 : index
    %245 = vector.load %arg18[%c0_280, %c0_281] : memref<1x10xf32, #tpu.memory_space<vmem>>, vector<1x10xf32>
    %246 = arith.addf %244, %245 : vector<1x10xf32>
    %c1_282 = arith.constant 1 : index
    %c0_283 = arith.constant 0 : index
    %247 = vector.load %arg19[%c1_282, %c0_283] : memref<2x10xf32, #tpu.memory_space<vmem>>, vector<1x10xf32>
    tpu.vector_store %arg19[%c1_282, %c0_283], %246 {strides = array<i32>} : memref<2x10xf32, #tpu.memory_space<vmem>>, vector<1x10xf32>,
    return
  }
}

</mosaic_0001>

<llo_original>
// kernel: tile.13
$region0: #{tile.13}
  #allocation0 [shape = 's32[1]{0}', space=sflag, size = 0x4, scoped, tag = 'scoped memory for tile.13']
  %s0 = inlined_call_operand.vmem [shape: f32[6], index: 0, kind: input, shape index: {}]
  %s1 = inlined_call_operand.vmem [shape: f32[14,6], index: 1, kind: output, shape index: {}]
  // Predicated region
  $region2: #{tile.13} parent=0 // pred_check
    _
  $region3: #{tile.13} parent=0 // pred_check_branch
    %3 = sbr.rel (0) target = $region5
  $region4: #{tile.13} parent=0 // pred_region
    _
  $region5: #{tile.13} parent=0 // pred_fallthru
    _
  %v4 = vld [vmem:[%s0] ss:$0 sm:$0xff]
  %5 = vst [vmem:[%s1] sm:$0xff] %v4
  %s6 = scalar_lea.vmem %s1, 8
  %7 = vst [vmem:[%s6] sm:$0xff] %v4

// kernel: tile.14
$region0: #{tile.14}
  %s0 = inlined_call_operand.vmem [shape: f32[14,6], index: 0, kind: input, shape index: {}]
  %s1 = inlined_call_operand.vmem [shape: f32[1,84], index: 1, kind: output, shape index: {}]
  $region1: #{tile.14} parent=0
    #allocation0 [shape = 'u8[4096]{0}', space=vmem, size = 0x1000, scoped, tag = 'scoped mem for output reshape']
    %v2 = vld [vmem:[%s0] sm:$0x1]
    %vm3 = vcmask 48128
    %4 = vst.msk [vmem:[#allocation0] sm:$0x1] %vm3, %v2
    %s5 = scalar_lea.vmem %s0, 13
    %v6 = vld [vmem:[%s5] sm:$0x1]
    %7 = vrot.lane.b32.xlu0 %v6, 78
    %v8 = vpop.permute.xlu0 %7
    %vm9 = vcmask 687728
    %10 = vst.msk [vmem:[#allocation0] sm:$0x1] %vm9, %v8
    %s11 = scalar_lea.vmem %s0, 12
    %v12 = vld [vmem:[%s11] sm:$0x1]
    %13 = vrot.lane.b32.xlu0 %v12, 72
    %v14 = vpop.permute.xlu0 %13
    %vm15 = vcmask 638528
    %16 = vst.msk [vmem:[#allocation0] sm:$0x1] %vm15, %v14
    %s17 = scalar_lea.vmem %s0, 11
    %v18 = vld [vmem:[%s17] sm:$0x1]
    %19 = vrot.lane.b32.xlu0 %v18, 66
    %v20 = vpop.permute.xlu0 %19
    %vm21 = vcmask 589328
    %22 = vst.msk [vmem:[#allocation0] sm:$0x1] %vm21, %v20
    %s23 = scalar_lea.vmem %s0, 10
    %v24 = vld [vmem:[%s23] sm:$0x1]
    %25 = vrot.lane.b32.xlu0 %v24, 60
    %v26 = vpop.permute.xlu0 %25
    %vm27 = vcmask 540128
    %28 = vst.msk [vmem:[#allocation0] sm:$0x1] %vm27, %v26
    %s29 = scalar_lea.vmem %s0, 9
    %v30 = vld [vmem:[%s29] sm:$0x1]
    %31 = vrot.lane.b32.xlu0 %v30, 54
    %v32 = vpop.permute.xlu0 %31
    %vm33 = vcmask 490928
    %34 = vst.msk [vmem:[#allocation0] sm:$0x1] %vm33, %v32
    %s35 = scalar_lea.vmem %s0, 8
    %v36 = vld [vmem:[%s35] sm:$0x1]
    %37 = vrot.lane.b32.xlu0 %v36, 48
    %v38 = vpop.permute.xlu0 %37
    %vm39 = vcmask 441728
    %40 = vst.msk [vmem:[#allocation0] sm:$0x1] %vm39, %v38
    %s41 = scalar_lea.vmem %s0, 7
    %v42 = vld [vmem:[%s41] sm:$0x1]
    %43 = vrot.lane.b32.xlu0 %v42, 42
    %v44 = vpop.permute.xlu0 %43
    %vm45 = vcmask 392528
    %46 = vst.msk [vmem:[#allocation0] sm:$0x1] %vm45, %v44
    %s47 = scalar_lea.vmem %s0, 6
    %v48 = vld [vmem:[%s47] sm:$0x1]
    %49 = vrot.lane.b32.xlu0 %v48, 36
    %v50 = vpop.permute.xlu0 %49
    %vm51 = vcmask 343328
    %52 = vst.msk [vmem:[#allocation0] sm:$0x1] %vm51, %v50
    %s53 = scalar_lea.vmem %s0, 5
    %v54 = vld [vmem:[%s53] sm:$0x1]
    %55 = vrot.lane.b32.xlu0 %v54, 30
    %v56 = vpop.permute.xlu0 %55
    %vm57 = vcmask 294128
    %58 = vst.msk [vmem:[#allocation0] sm:$0x1] %vm57, %v56
    %s59 = scalar_lea.vmem %s0, 4
    %v60 = vld [vmem:[%s59] sm:$0x1]
    %61 = vrot.lane.b32.xlu0 %v60, 24
    %v62 = vpop.permute.xlu0 %61
    %vm63 = vcmask 244928
    %64 = vst.msk [vmem:[#allocation0] sm:$0x1] %vm63, %v62
    %s65 = scalar_lea.vmem %s0, 3
    %v66 = vld [vmem:[%s65] sm:$0x1]
    %67 = vrot.lane.b32.xlu0 %v66, 18
    %v68 = vpop.permute.xlu0 %67
    %vm69 = vcmask 195728
    %70 = vst.msk [vmem:[#allocation0] sm:$0x1] %vm69, %v68
    %s71 = scalar_lea.vmem %s0, 2
    %v72 = vld [vmem:[%s71] sm:$0x1]
    %73 = vrot.lane.b32.xlu0 %v72, 12
    %v74 = vpop.permute.xlu0 %73
    %vm75 = vcmask 146528
    %76 = vst.msk [vmem:[#allocation0] sm:$0x1] %vm75, %v74
    %s77 = scalar_lea.vmem %s0, 1
    %v78 = vld [vmem:[%s77] sm:$0x1]
    %79 = vrot.lane.b32.xlu0 %v78, 6
    %v80 = vpop.permute.xlu0 %79
    %vm81 = vcmask 97328
    %82 = vst.msk [vmem:[#allocation0] sm:$0x1] %vm81, %v80
    %s84 = ssub.s32 2, 1
    %v85 = vld [vmem:[#allocation0] sm:%s84]
    %s87 = ssub.s32 2, 1
    %88 = vst [vmem:[%s1] sm:%s87] %v85

// kernel: tile.18
$region0: #{tile.18}
  #allocation0 [shape = 's32[1]{0}', space=sflag, size = 0x4, scoped, tag = 'scoped memory for tile.18']
  %s0 = inlined_call_operand.vmem [shape: f32[16], index: 0, kind: input, shape index: {}]
  %s1 = inlined_call_operand.vmem [shape: f32[5,16], index: 1, kind: output, shape index: {}]
  // Predicated region
  $region2: #{tile.18} parent=0 // pred_check
    _
  $region3: #{tile.18} parent=0 // pred_check_branch
    %3 = sbr.rel (0) target = $region5
  $region4: #{tile.18} parent=0 // pred_region
    _
  $region5: #{tile.18} parent=0 // pred_fallthru
    _
  %v4 = vld [vmem:[%s0] ss:$0 sm:$0xff]
  %5 = vst [vmem:[%s1] sm:$0xff] %v4

// kernel: tile.19
$region0: #{tile.19}
  %s0 = inlined_call_operand.vmem [shape: f32[5,16], index: 0, kind: input, shape index: {}]
  %s1 = inlined_call_operand.vmem [shape: f32[1,80], index: 1, kind: output, shape index: {}]
  $region1: #{tile.19} parent=0
    #allocation0 [shape = 'u8[4096]{0}', space=vmem, size = 0x1000, scoped, tag = 'scoped mem for output reshape']
    %v2 = vld [vmem:[%s0] sm:$0x1]
    %vm3 = vcmask 130048
    %4 = vst.msk [vmem:[#allocation0] sm:$0x1] %vm3, %v2
    %s5 = scalar_lea.vmem %s0, 4
    %v6 = vld [vmem:[%s5] sm:$0x1]
    %7 = vrot.lane.b32.xlu0 %v6, 64
    %v8 = vpop.permute.xlu0 %7
    %vm9 = vcmask 654848
    %10 = vst.msk [vmem:[#allocation0] sm:$0x1] %vm9, %v8
    %s11 = scalar_lea.vmem %s0, 3
    %v12 = vld [vmem:[%s11] sm:$0x1]
    %13 = vrot.lane.b32.xlu0 %v12, 48
    %v14 = vpop.permute.xlu0 %13
    %vm15 = vcmask 523648
    %16 = vst.msk [vmem:[#allocation0] sm:$0x1] %vm15, %v14
    %s17 = scalar_lea.vmem %s0, 2
    %v18 = vld [vmem:[%s17] sm:$0x1]
    %19 = vrot.lane.b32.xlu0 %v18, 32
    %v20 = vpop.permute.xlu0 %19
    %vm21 = vcmask 392448
    %22 = vst.msk [vmem:[#allocation0] sm:$0x1] %vm21, %v20
    %s23 = scalar_lea.vmem %s0, 1
    %v24 = vld [vmem:[%s23] sm:$0x1]
    %25 = vrot.lane.b32.xlu0 %v24, 16
    %v26 = vpop.permute.xlu0 %25
    %vm27 = vcmask 261248
    %28 = vst.msk [vmem:[#allocation0] sm:$0x1] %vm27, %v26
    %s30 = ssub.s32 2, 1
    %v31 = vld [vmem:[#allocation0] sm:%s30]
    %s33 = ssub.s32 2, 1
    %34 = vst [vmem:[%s1] sm:%s33] %v31

// kernel: net_forward.1
$region0: #{net_forward.1}
  #allocation0 [shape = 'u32[]', space=smem, size = 0x4, offset = 0x4, fixed_abs, tag = 'smem constant byte address 0x4 - core index']
  #allocation1 [shape = 'u32[72,128]{1,0:T(1,128)}', space=vmem, size = 0x9000, scoped, tag = 'internal scratch']
  #allocation2 [shape = 'f32[14,84]{1,0:T(8,128)}', space=vmem, size = 0x2000, scoped, tag = 'scratch operand']
  #allocation3 [shape = 'f32[5,80]{1,0:T(8,128)}', space=vmem, size = 0x1000, scoped, tag = 'scratch operand']
  %s0 = inlined_call_operand.vmem [shape: f32[2,32,96], index: 0, kind: input, shape index: {}]
  %s1 = inlined_call_operand.vmem [shape: f32[5,96,168], index: 1, kind: input, shape index: {}]
  %s2 = inlined_call_operand.vmem [shape: f32[1,84], index: 2, kind: input, shape index: {}]
  %s3 = inlined_call_operand.vmem [shape: f32[14,28], index: 3, kind: input, shape index: {}]
  %s4 = inlined_call_operand.vmem [shape: f32[14,28], index: 4, kind: input, shape index: {}]
  %s5 = inlined_call_operand.vmem [shape: f32[168,84], index: 5, kind: input, shape index: {}]
  %s6 = inlined_call_operand.vmem [shape: f32[168,84], index: 6, kind: input, shape index: {}]
  %s7 = inlined_call_operand.vmem [shape: f32[5,84,160], index: 7, kind: input, shape index: {}]
  %s8 = inlined_call_operand.vmem [shape: f32[1,80], index: 8, kind: input, shape index: {}]
  %s9 = inlined_call_operand.vmem [shape: f32[5,10], index: 9, kind: input, shape index: {}]
  %s10 = inlined_call_operand.vmem [shape: f32[5,10], index: 10, kind: input, shape index: {}]
  %s11 = inlined_call_operand.vmem [shape: f32[160,80], index: 11, kind: input, shape index: {}]
  %s12 = inlined_call_operand.vmem [shape: f32[160,80], index: 12, kind: input, shape index: {}]
  %s13 = inlined_call_operand.vmem [shape: f32[5,80,120], index: 13, kind: input, shape index: {}]
  %s14 = inlined_call_operand.vmem [shape: f32[1,120], index: 14, kind: input, shape index: {}]
  %s15 = inlined_call_operand.vmem [shape: f32[120,84], index: 15, kind: input, shape index: {}]
  %s16 = inlined_call_operand.vmem [shape: f32[1,84], index: 16, kind: input, shape index: {}]
  %s17 = inlined_call_operand.vmem [shape: f32[84,10], index: 17, kind: input, shape index: {}]
  %s18 = inlined_call_operand.vmem [shape: f32[1,10], index: 18, kind: input, shape index: {}]
  %s19 = inlined_call_operand.hbm [shape: f32[2,10], index: 19, kind: output, shape index: {}]
  %s20 = sld [smem:[#allocation0]]
  $region86: #{net_forward.1} parent=0
    _
  %s22 = ssub.s32 1, %s20
  %s23 = scalar_select 0, %s22, %s20
  $region1: #{net_forward.1} parent=0
    #allocation4 [shape = 'u8[1024]{0}', space=vmem, size = 0x400, scoped, tag = 'output window, operand 0, single buffered']
    #allocation5 [shape = 's32[1]{0}', space=sflag, size = 0x4, scoped, tag = 'scoped memory for net_forward.1']
    %24 = vsyncpa [#allocation5], 0
    // Predicated region
    $region2: #{net_forward.1} parent=1 // pred_check
      _
    $region3: #{net_forward.1} parent=1 // pred_check_branch
      %26 = sbr.rel (0) target = $region5
    $region4: #{net_forward.1} parent=1 // pred_region
      _
    $region5: #{net_forward.1} parent=1 // pred_fallthru
      _
    // Predicated region
    $region6: #{net_forward.1} parent=1 // pred_check
      _
    $region7: #{net_forward.1} parent=1 // pred_check_branch
      %28 = sbr.rel (0) target = $region9
    $region8: #{net_forward.1} parent=1 // pred_region
      _
    $region9: #{net_forward.1} parent=1 // pred_fallthru
      _
    // Predicated region
    $region10: #{net_forward.1} parent=1 // pred_check
      _
    $region11: #{net_forward.1} parent=1 // pred_check_branch
      %30 = sbr.rel (0) target = $region13
    $region12: #{net_forward.1} parent=1 // pred_region
      _
    $region13: #{net_forward.1} parent=1 // pred_fallthru
      _
    // Predicated region
    $region14: #{net_forward.1} parent=1 // pred_check
      _
    $region15: #{net_forward.1} parent=1 // pred_check_branch
      %32 = sbr.rel (0) target = $region17
    $region16: #{net_forward.1} parent=1 // pred_region
      _
    $region17: #{net_forward.1} parent=1 // pred_fallthru
      _
    // Predicated region
    $region18: #{net_forward.1} parent=1 // pred_check
      _
    $region19: #{net_forward.1} parent=1 // pred_check_branch
      %34 = sbr.rel (0) target = $region21
    $region20: #{net_forward.1} parent=1 // pred_region
      _
    $region21: #{net_forward.1} parent=1 // pred_fallthru
      _
    // Predicated region
    $region22: #{net_forward.1} parent=1 // pred_check
      _
    $region23: #{net_forward.1} parent=1 // pred_check_branch
      %36 = sbr.rel (0) target = $region25
    $region24: #{net_forward.1} parent=1 // pred_region
      _
    $region25: #{net_forward.1} parent=1 // pred_fallthru
      _
    // Predicated region
    $region26: #{net_forward.1} parent=1 // pred_check
      _
    $region27: #{net_forward.1} parent=1 // pred_check_branch
      %38 = sbr.rel (0) target = $region29
    $region28: #{net_forward.1} parent=1 // pred_region
      _
    $region29: #{net_forward.1} parent=1 // pred_fallthru
      _
    // Predicated region
    $region30: #{net_forward.1} parent=1 // pred_check
      _
    $region31: #{net_forward.1} parent=1 // pred_check_branch
      %40 = sbr.rel (0) target = $region33
    $region32: #{net_forward.1} parent=1 // pred_region
      _
    $region33: #{net_forward.1} parent=1 // pred_fallthru
      _
    // Predicated region
    $region34: #{net_forward.1} parent=1 // pred_check
      _
    $region35: #{net_forward.1} parent=1 // pred_check_branch
      %42 = sbr.rel (0) target = $region37
    $region36: #{net_forward.1} parent=1 // pred_region
      _
    $region37: #{net_forward.1} parent=1 // pred_fallthru
      _
    // Predicated region
    $region38: #{net_forward.1} parent=1 // pred_check
      _
    $region39: #{net_forward.1} parent=1 // pred_check_branch
      %44 = sbr.rel (0) target = $region41
    $region40: #{net_forward.1} parent=1 // pred_region
      _
    $region41: #{net_forward.1} parent=1 // pred_fallthru
      _
    // Predicated region
    $region42: #{net_forward.1} parent=1 // pred_check
      _
    $region43: #{net_forward.1} parent=1 // pred_check_branch
      %46 = sbr.rel (0) target = $region45
    $region44: #{net_forward.1} parent=1 // pred_region
      _
    $region45: #{net_forward.1} parent=1 // pred_fallthru
      _
    // Predicated region
    $region46: #{net_forward.1} parent=1 // pred_check
      _
    $region47: #{net_forward.1} parent=1 // pred_check_branch
      %48 = sbr.rel (0) target = $region49
    $region48: #{net_forward.1} parent=1 // pred_region
      _
    $region49: #{net_forward.1} parent=1 // pred_fallthru
      _
    // Predicated region
    $region50: #{net_forward.1} parent=1 // pred_check
      _
    $region51: #{net_forward.1} parent=1 // pred_check_branch
      %50 = sbr.rel (0) target = $region53
    $region52: #{net_forward.1} parent=1 // pred_region
      _
    $region53: #{net_forward.1} parent=1 // pred_fallthru
      _
    // Predicated region
    $region54: #{net_forward.1} parent=1 // pred_check
      _
    $region55: #{net_forward.1} parent=1 // pred_check_branch
      %52 = sbr.rel (0) target = $region57
    $region56: #{net_forward.1} parent=1 // pred_region
      _
    $region57: #{net_forward.1} parent=1 // pred_fallthru
      _
    // Predicated region
    $region58: #{net_forward.1} parent=1 // pred_check
      _
    $region59: #{net_forward.1} parent=1 // pred_check_branch
      %54 = sbr.rel (0) target = $region61
    $region60: #{net_forward.1} parent=1 // pred_region
      _
    $region61: #{net_forward.1} parent=1 // pred_fallthru
      _
    // Predicated region
    $region62: #{net_forward.1} parent=1 // pred_check
      _
    $region63: #{net_forward.1} parent=1 // pred_check_branch
      %56 = sbr.rel (0) target = $region65
    $region64: #{net_forward.1} parent=1 // pred_region
      _
    $region65: #{net_forward.1} parent=1 // pred_fallthru
      _
    // Predicated region
    $region66: #{net_forward.1} parent=1 // pred_check
      _
    $region67: #{net_forward.1} parent=1 // pred_check_branch
      %58 = sbr.rel (0) target = $region69
    $region68: #{net_forward.1} parent=1 // pred_region
      _
    $region69: #{net_forward.1} parent=1 // pred_fallthru
      _
    // Predicated region
    $region70: #{net_forward.1} parent=1 // pred_check
      _
    $region71: #{net_forward.1} parent=1 // pred_check_branch
      %60 = sbr.rel (0) target = $region73
    $region72: #{net_forward.1} parent=1 // pred_region
      _
    $region73: #{net_forward.1} parent=1 // pred_fallthru
      _
    // Predicated region
    $region74: #{net_forward.1} parent=1 // pred_check
      _
    $region75: #{net_forward.1} parent=1 // pred_check_branch
      %62 = sbr.rel (0) target = $region77
    $region76: #{net_forward.1} parent=1 // pred_region
      _
    $region77: #{net_forward.1} parent=1 // pred_fallthru
      _
    %v63 = vld [vmem:[%s0] sm:$0xff]
    %v64 = vld [vmem:[%s0 + $0x8] sm:$0xff]
    %v65 = vld [vmem:[%s0 + $0x10] sm:$0xff]
    %v66 = vld [vmem:[%s0 + $0x18] sm:$0xf]
    %v67 = vld [vmem:[%s1] sm:$0xff]
    %v68 = vld [vmem:[%s1 + $0x8] sm:$0xff]
    %v69 = vld [vmem:[%s1 + $0x10] sm:$0xff]
    %v70 = vld [vmem:[%s1 + $0x18] sm:$0xff]
    %v71 = vld [vmem:[%s1 + $0x20] sm:$0xff]
    %v72 = vld [vmem:[%s1 + $0x28] sm:$0xff]
    %v73 = vld [vmem:[%s1 + $0x30] sm:$0xff]
    %v74 = vld [vmem:[%s1 + $0x38] sm:$0xff]
    %v75 = vld [vmem:[%s1 + $0x40] sm:$0xff]
    %v76 = vld [vmem:[%s1 + $0x48] sm:$0xff]
    %v77 = vld [vmem:[%s1 + $0x50] sm:$0xff]
    %v78 = vld [vmem:[%s1 + $0x58] sm:$0xff]
    %v79 = vld [vmem:[%s1 + $0x60] sm:$0xff]
    %v80 = vld [vmem:[%s1 + $0x68] sm:$0xff]
    %v81 = vld [vmem:[%s1 + $0x70] sm:$0xff]
    %v82 = vld [vmem:[%s1 + $0x78] sm:$0xff]
    %v83 = vld [vmem:[%s1 + $0x80] sm:$0xff]
    %v84 = vld [vmem:[%s1 + $0x88] sm:$0xff]
    %v85 = vld [vmem:[%s1 + $0x90] sm:$0xff]
    %v86 = vld [vmem:[%s1 + $0x98] sm:$0xff]
    %v87 = vld [vmem:[%s1 + $0xa0] sm:$0xff]
    %v88 = vld [vmem:[%s1 + $0xa8] sm:$0xff]
    %v89 = vld [vmem:[%s1 + $0xb0] sm:$0xff]
    %v90 = vld [vmem:[%s1 + $0xb8] sm:$0xff]
    %v91 = vld [vmem:[%s0 + $0x1] sm:$0xff]
    %v92 = vld [vmem:[%s0 + $0x9] sm:$0xff]
    %v93 = vld [vmem:[%s0 + $0x11] sm:$0xff]
    %v94 = vld [vmem:[%s0 + $0x19] sm:$0xf]
    %s95 = scalar_lea.vmem %s1, 192
    %v96 = vld [vmem:[%s95] sm:$0xff]
    %v97 = vld [vmem:[%s95 + $0x8] sm:$0xff]
    %v98 = vld [vmem:[%s95 + $0x10] sm:$0xff]
    %v99 = vld [vmem:[%s95 + $0x18] sm:$0xff]
    %v100 = vld [vmem:[%s95 + $0x20] sm:$0xff]
    %v101 = vld [vmem:[%s95 + $0x28] sm:$0xff]
    %v102 = vld [vmem:[%s95 + $0x30] sm:$0xff]
    %v103 = vld [vmem:[%s95 + $0x38] sm:$0xff]
    %v104 = vld [vmem:[%s95 + $0x40] sm:$0xff]
    %v105 = vld [vmem:[%s95 + $0x48] sm:$0xff]
    %v106 = vld [vmem:[%s95 + $0x50] sm:$0xff]
    %v107 = vld [vmem:[%s95 + $0x58] sm:$0xff]
    %v108 = vld [vmem:[%s95 + $0x60] sm:$0xff]
    %v109 = vld [vmem:[%s95 + $0x68] sm:$0xff]
    %v110 = vld [vmem:[%s95 + $0x70] sm:$0xff]
    %v111 = vld [vmem:[%s95 + $0x78] sm:$0xff]
    %v112 = vld [vmem:[%s95 + $0x80] sm:$0xff]
    %v113 = vld [vmem:[%s95 + $0x88] sm:$0xff]
    %v114 = vld [vmem:[%s95 + $0x90] sm:$0xff]
    %v115 = vld [vmem:[%s95 + $0x98] sm:$0xff]
    %v116 = vld [vmem:[%s95 + $0xa0] sm:$0xff]
    %v117 = vld [vmem:[%s95 + $0xa8] sm:$0xff]
    %v118 = vld [vmem:[%s95 + $0xb0] sm:$0xff]
    %v119 = vld [vmem:[%s95 + $0xb8] sm:$0xff]
    %vm120 = vcmask 785408
    %v122 = vsel %vm120, %v91, 0
    %v125 = vsel %vm120, %v92, 0
    %v128 = vsel %vm120, %v93, 0
    %v131 = vsel %vm120, %v94, 0
    %133 = vmatpush.msra.mxu0 0.0
    %134 = vmatpush.msra.mxu0 0.0
    %135 = vmatpush.msra.mxu0 0.0
    %136 = vmatpush.msra.mxu0 0.0
    %137 = vmatpush.msra.mxu0 %v118
    %138 = vmatpush.msra.mxu0 %v116
    %139 = vmatpush.msra.mxu0 %v114
    %140 = vmatpush.msra.mxu0 %v112
    %141 = vmatpush.msra.mxu0 %v110
    %142 = vmatpush.msra.mxu0 %v108
    %143 = vmatpush.msra.mxu0 %v106
    %144 = vmatpush.msra.mxu0 %v104
    %145 = vmatpush.msra.mxu0 %v102
    %146 = vmatpush.msra.mxu0 %v100
    %147 = vmatpush.msra.mxu0 %v98
    %148 = vmatpush.msra.mxu0 %v96
    %149 = vmatmul.f32.gmra.mxu0 %v122
    %v150 = vpop.f32.mrf.mxu0
    %v151 = vadd.f32 0.0, %v150
    %152 = vmatmul.f32.gmra.mxu0 %v125
    %v153 = vpop.f32.mrf.mxu0
    %v154 = vadd.f32 0.0, %v153
    %155 = vmatmul.f32.gmra.mxu0 %v128
    %v156 = vpop.f32.mrf.mxu0
    %v157 = vadd.f32 0.0, %v156
    %158 = vmatmul.f32.gmra.mxu0 %v131
    %v159 = vpop.f32.mrf.mxu0
    %v160 = vadd.f32 0.0, %v159
    %161 = vdwg.mxu0
    %162 = vmatpush.msra.mxu0 0.0
    %163 = vmatpush.msra.mxu0 0.0
    %164 = vmatpush.msra.mxu0 0.0
    %165 = vmatpush.msra.mxu0 0.0
    %166 = vmatpush.msra.mxu0 %v119
    %167 = vmatpush.msra.mxu0 %v117
    %168 = vmatpush.msra.mxu0 %v115
    %169 = vmatpush.msra.mxu0 %v113
    %170 = vmatpush.msra.mxu0 %v111
    %171 = vmatpush.msra.mxu0 %v109
    %172 = vmatpush.msra.mxu0 %v107
    %173 = vmatpush.msra.mxu0 %v105
    %174 = vmatpush.msra.mxu0 %v103
    %175 = vmatpush.msra.mxu0 %v101
    %176 = vmatpush.msra.mxu0 %v99
    %177 = vmatpush.msra.mxu0 %v97
    %178 = vmatmul.f32.gmra.mxu0 %v122
    %v179 = vpop.f32.mrf.mxu0
    %v180 = vadd.f32 0.0, %v179
    %181 = vmatmul.f32.gmra.mxu0 %v125
    %v182 = vpop.f32.mrf.mxu0
    %v183 = vadd.f32 0.0, %v182
    %184 = vmatmul.f32.gmra.mxu0 %v128
    %v185 = vpop.f32.mrf.mxu0
    %v186 = vadd.f32 0.0, %v185
    %187 = vmatmul.f32.gmra.mxu0 %v131
    %v188 = vpop.f32.mrf.mxu0
    %v189 = vadd.f32 0.0, %v188
    %190 = vdwg.mxu0
    %v192 = vsel %vm120, %v63, 0
    %v195 = vsel %vm120, %v64, 0
    %v198 = vsel %vm120, %v65, 0
    %v201 = vsel %vm120, %v66, 0
    %203 = vmatpush.msra.mxu0 0.0
    %204 = vmatpush.msra.mxu0 0.0
    %205 = vmatpush.msra.mxu0 0.0
    %206 = vmatpush.msra.mxu0 0.0
    %207 = vmatpush.msra.mxu0 %v89
    %208 = vmatpush.msra.mxu0 %v87
    %209 = vmatpush.msra.mxu0 %v85
    %210 = vmatpush.msra.mxu0 %v83
    %211 = vmatpush.msra.mxu0 %v81
    %212 = vmatpush.msra.mxu0 %v79
    %213 = vmatpush.msra.mxu0 %v77
    %214 = vmatpush.msra.mxu0 %v75
    %215 = vmatpush.msra.mxu0 %v73
    %216 = vmatpush.msra.mxu0 %v71
    %217 = vmatpush.msra.mxu0 %v69
    %218 = vmatpush.msra.mxu0 %v67
    %219 = vmatmul.f32.gmra.mxu0 %v192
    %v220 = vpop.f32.mrf.mxu0
    %v221 = vadd.f32 %v151, %v220
    %222 = vmatmul.f32.gmra.mxu0 %v195
    %v223 = vpop.f32.mrf.mxu0
    %v224 = vadd.f32 %v154, %v223
    %225 = vmatmul.f32.gmra.mxu0 %v198
    %v226 = vpop.f32.mrf.mxu0
    %v227 = vadd.f32 %v157, %v226
    %228 = vmatmul.f32.gmra.mxu0 %v201
    %v229 = vpop.f32.mrf.mxu0
    %v230 = vadd.f32 %v160, %v229
    %231 = vdwg.mxu0
    %232 = vmatpush.msra.mxu0 0.0
    %233 = vmatpush.msra.mxu0 0.0
    %234 = vmatpush.msra.mxu0 0.0
    %235 = vmatpush.msra.mxu0 0.0
    %236 = vmatpush.msra.mxu0 %v90
    %237 = vmatpush.msra.mxu0 %v88
    %238 = vmatpush.msra.mxu0 %v86
    %239 = vmatpush.msra.mxu0 %v84
    %240 = vmatpush.msra.mxu0 %v82
    %241 = vmatpush.msra.mxu0 %v80
    %242 = vmatpush.msra.mxu0 %v78
    %243 = vmatpush.msra.mxu0 %v76
    %244 = vmatpush.msra.mxu0 %v74
    %245 = vmatpush.msra.mxu0 %v72
    %246 = vmatpush.msra.mxu0 %v70
    %247 = vmatpush.msra.mxu0 %v68
    %248 = vmatmul.f32.gmra.mxu0 %v192
    %v249 = vpop.f32.mrf.mxu0
    %v250 = vadd.f32 %v180, %v249
    %251 = vmatmul.f32.gmra.mxu0 %v195
    %v252 = vpop.f32.mrf.mxu0
    %v253 = vadd.f32 %v183, %v252
    %254 = vmatmul.f32.gmra.mxu0 %v198
    %v255 = vpop.f32.mrf.mxu0
    %v256 = vadd.f32 %v186, %v255
    %257 = vmatmul.f32.gmra.mxu0 %v201
    %v258 = vpop.f32.mrf.mxu0
    %v259 = vadd.f32 %v189, %v258
    %260 = vdwg.mxu0
    %v261 = vld [vmem:[%s0 + $0x2] sm:$0xff]
    %v262 = vld [vmem:[%s0 + $0xa] sm:$0xff]
    %v263 = vld [vmem:[%s0 + $0x12] sm:$0xff]
    %v264 = vld [vmem:[%s0 + $0x1a] sm:$0xf]
    %s265 = scalar_lea.vmem %s1, 384
    %v266 = vld [vmem:[%s265] sm:$0xff]
    %v267 = vld [vmem:[%s265 + $0x8] sm:$0xff]
    %v268 = vld [vmem:[%s265 + $0x10] sm:$0xff]
    %v269 = vld [vmem:[%s265 + $0x18] sm:$0xff]
    %v270 = vld [vmem:[%s265 + $0x20] sm:$0xff]
    %v271 = vld [vmem:[%s265 + $0x28] sm:$0xff]
    %v272 = vld [vmem:[%s265 + $0x30] sm:$0xff]
    %v273 = vld [vmem:[%s265 + $0x38] sm:$0xff]
    %v274 = vld [vmem:[%s265 + $0x40] sm:$0xff]
    %v275 = vld [vmem:[%s265 + $0x48] sm:$0xff]
    %v276 = vld [vmem:[%s265 + $0x50] sm:$0xff]
    %v277 = vld [vmem:[%s265 + $0x58] sm:$0xff]
    %v278 = vld [vmem:[%s265 + $0x60] sm:$0xff]
    %v279 = vld [vmem:[%s265 + $0x68] sm:$0xff]
    %v280 = vld [vmem:[%s265 + $0x70] sm:$0xff]
    %v281 = vld [vmem:[%s265 + $0x78] sm:$0xff]
    %v282 = vld [vmem:[%s265 + $0x80] sm:$0xff]
    %v283 = vld [vmem:[%s265 + $0x88] sm:$0xff]
    %v284 = vld [vmem:[%s265 + $0x90] sm:$0xff]
    %v285 = vld [vmem:[%s265 + $0x98] sm:$0xff]
    %v286 = vld [vmem:[%s265 + $0xa0] sm:$0xff]
    %v287 = vld [vmem:[%s265 + $0xa8] sm:$0xff]
    %v288 = vld [vmem:[%s265 + $0xb0] sm:$0xff]
    %v289 = vld [vmem:[%s265 + $0xb8] sm:$0xff]
    %v291 = vsel %vm120, %v261, 0
    %v294 = vsel %vm120, %v262, 0
    %v297 = vsel %vm120, %v263, 0
    %v300 = vsel %vm120, %v264, 0
    %302 = vmatpush.msra.mxu0 0.0
    %303 = vmatpush.msra.mxu0 0.0
    %304 = vmatpush.msra.mxu0 0.0
    %305 = vmatpush.msra.mxu0 0.0
    %306 = vmatpush.msra.mxu0 %v288
    %307 = vmatpush.msra.mxu0 %v286
    %308 = vmatpush.msra.mxu0 %v284
    %309 = vmatpush.msra.mxu0 %v282
    %310 = vmatpush.msra.mxu0 %v280
    %311 = vmatpush.msra.mxu0 %v278
    %312 = vmatpush.msra.mxu0 %v276
    %313 = vmatpush.msra.mxu0 %v274
    %314 = vmatpush.msra.mxu0 %v272
    %315 = vmatpush.msra.mxu0 %v270
    %316 = vmatpush.msra.mxu0 %v268
    %317 = vmatpush.msra.mxu0 %v266
    %318 = vmatmul.f32.gmra.mxu0 %v291
    %v319 = vpop.f32.mrf.mxu0
    %v320 = vadd.f32 0.0, %v319
    %321 = vmatmul.f32.gmra.mxu0 %v294
    %v322 = vpop.f32.mrf.mxu0
    %v323 = vadd.f32 0.0, %v322
    %324 = vmatmul.f32.gmra.mxu0 %v297
    %v325 = vpop.f32.mrf.mxu0
    %v326 = vadd.f32 0.0, %v325
    %327 = vmatmul.f32.gmra.mxu0 %v300
    %v328 = vpop.f32.mrf.mxu0
    %v329 = vadd.f32 0.0, %v328
    %330 = vdwg.mxu0
    %331 = vmatpush.msra.mxu0 0.0
    %332 = vmatpush.msra.mxu0 0.0
    %333 = vmatpush.msra.mxu0 0.0
    %334 = vmatpush.msra.mxu0 0.0
    %335 = vmatpush.msra.mxu0 %v289
    %336 = vmatpush.msra.mxu0 %v287
    %337 = vmatpush.msra.mxu0 %v285
    %338 = vmatpush.msra.mxu0 %v283
    %339 = vmatpush.msra.mxu0 %v281
    %340 = vmatpush.msra.mxu0 %v279
    %341 = vmatpush.msra.mxu0 %v277
    %342 = vmatpush.msra.mxu0 %v275
    %343 = vmatpush.msra.mxu0 %v273
    %344 = vmatpush.msra.mxu0 %v271
    %345 = vmatpush.msra.mxu0 %v269
    %346 = vmatpush.msra.mxu0 %v267
    %347 = vmatmul.f32.gmra.mxu0 %v291
    %v348 = vpop.f32.mrf.mxu0
    %v349 = vadd.f32 0.0, %v348
    %350 = vmatmul.f32.gmra.mxu0 %v294
    %v351 = vpop.f32.mrf.mxu0
    %v352 = vadd.f32 0.0, %v351
    %353 = vmatmul.f32.gmra.mxu0 %v297
    %v354 = vpop.f32.mrf.mxu0
    %v355 = vadd.f32 0.0, %v354
    %356 = vmatmul.f32.gmra.mxu0 %v300
    %v357 = vpop.f32.mrf.mxu0
    %v358 = vadd.f32 0.0, %v357
    %359 = vdwg.mxu0
    %v360 = vadd.f32 %v221, %v320
    %v361 = vadd.f32 %v250, %v349
    %v362 = vadd.f32 %v224, %v323
    %v363 = vadd.f32 %v253, %v352
    %v364 = vadd.f32 %v227, %v326
    %v365 = vadd.f32 %v256, %v355
    %v366 = vadd.f32 %v230, %v329
    %v367 = vadd.f32 %v259, %v358
    %v368 = vld [vmem:[%s0 + $0x3] sm:$0xff]
    %v369 = vld [vmem:[%s0 + $0xb] sm:$0xff]
    %v370 = vld [vmem:[%s0 + $0x13] sm:$0xff]
    %v371 = vld [vmem:[%s0 + $0x1b] sm:$0xf]
    %s372 = scalar_lea.vmem %s1, 576
    %v373 = vld [vmem:[%s372] sm:$0xff]
    %v374 = vld [vmem:[%s372 + $0x8] sm:$0xff]
    %v375 = vld [vmem:[%s372 + $0x10] sm:$0xff]
    %v376 = vld [vmem:[%s372 + $0x18] sm:$0xff]
    %v377 = vld [vmem:[%s372 + $0x20] sm:$0xff]
    %v378 = vld [vmem:[%s372 + $0x28] sm:$0xff]
    %v379 = vld [vmem:[%s372 + $0x30] sm:$0xff]
    %v380 = vld [vmem:[%s372 + $0x38] sm:$0xff]
    %v381 = vld [vmem:[%s372 + $0x40] sm:$0xff]
    %v382 = vld [vmem:[%s372 + $0x48] sm:$0xff]
    %v383 = vld [vmem:[%s372 + $0x50] sm:$0xff]
    %v384 = vld [vmem:[%s372 + $0x58] sm:$0xff]
    %v385 = vld [vmem:[%s372 + $0x60] sm:$0xff]
    %v386 = vld [vmem:[%s372 + $0x68] sm:$0xff]
    %v387 = vld [vmem:[%s372 + $0x70] sm:$0xff]
    %v388 = vld [vmem:[%s372 + $0x78] sm:$0xff]
    %v389 = vld [vmem:[%s372 + $0x80] sm:$0xff]
    %v390 = vld [vmem:[%s372 + $0x88] sm:$0xff]
    %v391 = vld [vmem:[%s372 + $0x90] sm:$0xff]
    %v392 = vld [vmem:[%s372 + $0x98] sm:$0xff]
    %v393 = vld [vmem:[%s372 + $0xa0] sm:$0xff]
    %v394 = vld [vmem:[%s372 + $0xa8] sm:$0xff]
    %v395 = vld [vmem:[%s372 + $0xb0] sm:$0xff]
    %v396 = vld [vmem:[%s372 + $0xb8] sm:$0xff]
    %v398 = vsel %vm120, %v368, 0
    %v401 = vsel %vm120, %v369, 0
    %v404 = vsel %vm120, %v370, 0
    %v407 = vsel %vm120, %v371, 0
    %409 = vmatpush.msra.mxu0 0.0
    %410 = vmatpush.msra.mxu0 0.0
    %411 = vmatpush.msra.mxu0 0.0
    %412 = vmatpush.msra.mxu0 0.0
    %413 = vmatpush.msra.mxu0 %v395
    %414 = vmatpush.msra.mxu0 %v393
    %415 = vmatpush.msra.mxu0 %v391
    %416 = vmatpush.msra.mxu0 %v389
    %417 = vmatpush.msra.mxu0 %v387
    %418 = vmatpush.msra.mxu0 %v385
    %419 = vmatpush.msra.mxu0 %v383
    %420 = vmatpush.msra.mxu0 %v381
    %421 = vmatpush.msra.mxu0 %v379
    %422 = vmatpush.msra.mxu0 %v377
    %423 = vmatpush.msra.mxu0 %v375
    %424 = vmatpush.msra.mxu0 %v373
    %425 = vmatmul.f32.gmra.mxu0 %v398
    %v426 = vpop.f32.mrf.mxu0
    %v427 = vadd.f32 0.0, %v426
    %428 = vmatmul.f32.gmra.mxu0 %v401
    %v429 = vpop.f32.mrf.mxu0
    %v430 = vadd.f32 0.0, %v429
    %431 = vmatmul.f32.gmra.mxu0 %v404
    %v432 = vpop.f32.mrf.mxu0
    %v433 = vadd.f32 0.0, %v432
    %434 = vmatmul.f32.gmra.mxu0 %v407
    %v435 = vpop.f32.mrf.mxu0
    %v436 = vadd.f32 0.0, %v435
    %437 = vdwg.mxu0
    %438 = vmatpush.msra.mxu0 0.0
    %439 = vmatpush.msra.mxu0 0.0
    %440 = vmatpush.msra.mxu0 0.0
    %441 = vmatpush.msra.mxu0 0.0
    %442 = vmatpush.msra.mxu0 %v396
    %443 = vmatpush.msra.mxu0 %v394
    %444 = vmatpush.msra.mxu0 %v392
    %445 = vmatpush.msra.mxu0 %v390
    %446 = vmatpush.msra.mxu0 %v388
    %447 = vmatpush.msra.mxu0 %v386
    %448 = vmatpush.msra.mxu0 %v384
    %449 = vmatpush.msra.mxu0 %v382
    %450 = vmatpush.msra.mxu0 %v380
    %451 = vmatpush.msra.mxu0 %v378
    %452 = vmatpush.msra.mxu0 %v376
    %453 = vmatpush.msra.mxu0 %v374
    %454 = vmatmul.f32.gmra.mxu0 %v398
    %v455 = vpop.f32.mrf.mxu0
    %v456 = vadd.f32 0.0, %v455
    %457 = vmatmul.f32.gmra.mxu0 %v401
    %v458 = vpop.f32.mrf.mxu0
    %v459 = vadd.f32 0.0, %v458
    %460 = vmatmul.f32.gmra.mxu0 %v404
    %v461 = vpop.f32.mrf.mxu0
    %v462 = vadd.f32 0.0, %v461
    %463 = vmatmul.f32.gmra.mxu0 %v407
    %v464 = vpop.f32.mrf.mxu0
    %v465 = vadd.f32 0.0, %v464
    %466 = vdwg.mxu0
    %v467 = vadd.f32 %v360, %v427
    %v468 = vadd.f32 %v361, %v456
    %v469 = vadd.f32 %v362, %v430
    %v470 = vadd.f32 %v363, %v459
    %v471 = vadd.f32 %v364, %v433
    %v472 = vadd.f32 %v365, %v462
    %v473 = vadd.f32 %v366, %v436
    %v474 = vadd.f32 %v367, %v465
    %v475 = vld [vmem:[%s0 + $0x4] sm:$0xff]
    %v476 = vld [vmem:[%s0 + $0xc] sm:$0xff]
    %v477 = vld [vmem:[%s0 + $0x14] sm:$0xff]
    %v478 = vld [vmem:[%s0 + $0x1c] sm:$0xf]
    %s479 = scalar_lea.vmem %s1, 768
    %v480 = vld [vmem:[%s479] sm:$0xff]
    %v481 = vld [vmem:[%s479 + $0x8] sm:$0xff]
    %v482 = vld [vmem:[%s479 + $0x10] sm:$0xff]
    %v483 = vld [vmem:[%s479 + $0x18] sm:$0xff]
    %v484 = vld [vmem:[%s479 + $0x20] sm:$0xff]
    %v485 = vld [vmem:[%s479 + $0x28] sm:$0xff]
    %v486 = vld [vmem:[%s479 + $0x30] sm:$0xff]
    %v487 = vld [vmem:[%s479 + $0x38] sm:$0xff]
    %v488 = vld [vmem:[%s479 + $0x40] sm:$0xff]
    %v489 = vld [vmem:[%s479 + $0x48] sm:$0xff]
    %v490 = vld [vmem:[%s479 + $0x50] sm:$0xff]
    %v491 = vld [vmem:[%s479 + $0x58] sm:$0xff]
    %v492 = vld [vmem:[%s479 + $0x60] sm:$0xff]
    %v493 = vld [vmem:[%s479 + $0x68] sm:$0xff]
    %v494 = vld [vmem:[%s479 + $0x70] sm:$0xff]
    %v495 = vld [vmem:[%s479 + $0x78] sm:$0xff]
    %v496 = vld [vmem:[%s479 + $0x80] sm:$0xff]
    %v497 = vld [vmem:[%s479 + $0x88] sm:$0xff]
    %v498 = vld [vmem:[%s479 + $0x90] sm:$0xff]
    %v499 = vld [vmem:[%s479 + $0x98] sm:$0xff]
    %v500 = vld [vmem:[%s479 + $0xa0] sm:$0xff]
    %v501 = vld [vmem:[%s479 + $0xa8] sm:$0xff]
    %v502 = vld [vmem:[%s479 + $0xb0] sm:$0xff]
    %v503 = vld [vmem:[%s479 + $0xb8] sm:$0xff]
    %v505 = vsel %vm120, %v475, 0
    %v508 = vsel %vm120, %v476, 0
    %v511 = vsel %vm120, %v477, 0
    %v514 = vsel %vm120, %v478, 0
    %516 = vmatpush.msra.mxu0 0.0
    %517 = vmatpush.msra.mxu0 0.0
    %518 = vmatpush.msra.mxu0 0.0
    %519 = vmatpush.msra.mxu0 0.0
    %520 = vmatpush.msra.mxu0 %v502
    %521 = vmatpush.msra.mxu0 %v500
    %522 = vmatpush.msra.mxu0 %v498
    %523 = vmatpush.msra.mxu0 %v496
    %524 = vmatpush.msra.mxu0 %v494
    %525 = vmatpush.msra.mxu0 %v492
    %526 = vmatpush.msra.mxu0 %v490
    %527 = vmatpush.msra.mxu0 %v488
    %528 = vmatpush.msra.mxu0 %v486
    %529 = vmatpush.msra.mxu0 %v484
    %530 = vmatpush.msra.mxu0 %v482
    %531 = vmatpush.msra.mxu0 %v480
    %532 = vmatmul.f32.gmra.mxu0 %v505
    %v533 = vpop.f32.mrf.mxu0
    %v534 = vadd.f32 0.0, %v533
    %535 = vmatmul.f32.gmra.mxu0 %v508
    %v536 = vpop.f32.mrf.mxu0
    %v537 = vadd.f32 0.0, %v536
    %538 = vmatmul.f32.gmra.mxu0 %v511
    %v539 = vpop.f32.mrf.mxu0
    %v540 = vadd.f32 0.0, %v539
    %541 = vmatmul.f32.gmra.mxu0 %v514
    %v542 = vpop.f32.mrf.mxu0
    %v543 = vadd.f32 0.0, %v542
    %544 = vdwg.mxu0
    %545 = vmatpush.msra.mxu0 0.0
    %546 = vmatpush.msra.mxu0 0.0
    %547 = vmatpush.msra.mxu0 0.0
    %548 = vmatpush.msra.mxu0 0.0
    %549 = vmatpush.msra.mxu0 %v503
    %550 = vmatpush.msra.mxu0 %v501
    %551 = vmatpush.msra.mxu0 %v499
    %552 = vmatpush.msra.mxu0 %v497
    %553 = vmatpush.msra.mxu0 %v495
    %554 = vmatpush.msra.mxu0 %v493
    %555 = vmatpush.msra.mxu0 %v491
    %556 = vmatpush.msra.mxu0 %v489
    %557 = vmatpush.msra.mxu0 %v487
    %558 = vmatpush.msra.mxu0 %v485
    %559 = vmatpush.msra.mxu0 %v483
    %560 = vmatpush.msra.mxu0 %v481
    %561 = vmatmul.f32.gmra.mxu0 %v505
    %v562 = vpop.f32.mrf.mxu0
    %v563 = vadd.f32 0.0, %v562
    %564 = vmatmul.f32.gmra.mxu0 %v508
    %v565 = vpop.f32.mrf.mxu0
    %v566 = vadd.f32 0.0, %v565
    %567 = vmatmul.f32.gmra.mxu0 %v511
    %v568 = vpop.f32.mrf.mxu0
    %v569 = vadd.f32 0.0, %v568
    %570 = vmatmul.f32.gmra.mxu0 %v514
    %v571 = vpop.f32.mrf.mxu0
    %v572 = vadd.f32 0.0, %v571
    %573 = vdwg.mxu0
    %v574 = vadd.f32 %v467, %v534
    %v575 = vadd.f32 %v468, %v563
    %v576 = vadd.f32 %v469, %v537
    %v577 = vadd.f32 %v470, %v566
    %v578 = vadd.f32 %v471, %v540
    %v579 = vadd.f32 %v472, %v569
    %v580 = vadd.f32 %v473, %v543
    %v581 = vadd.f32 %v474, %v572
    %v582 = vld [vmem:[%s3] sm:$0xff]
    %v583 = vld [vmem:[%s3 + $0x8] sm:$0x3f]
    %vm584 = vcmask 228352
    %v586 = vsel %vm584, %v582, 0
    %v589 = vsel %vm584, %v583, 0
    %vm591 = vcmask 1043456
    %v593 = vsel %vm591, %v580, 0
    %v596 = vsel %vm591, %v581, 0
    %598 = vmatpush.msra.mxu0 0.0
    %599 = vmatpush.msra.mxu0 0.0
    %600 = vmatpush.msra.mxu0 0.0
    %601 = vmatpush.msra.mxu0 0.0
    %602 = vmatpush.msra.mxu0 0.0
    %603 = vmatpush.msra.mxu0 0.0
    %604 = vmatpush.msra.mxu0 0.0
    %605 = vmatpush.msra.mxu0 0.0
    %606 = vmatpush.msra.mxu0 0.0
    %607 = vmatpush.msra.mxu0 0.0
    %608 = vmatpush.msra.mxu0 0.0
    %609 = vmatpush.msra.mxu0 0.0
    %610 = vmatpush.msra.mxu0 %v593
    %611 = vmatpush.msra.mxu0 %v578
    %612 = vmatpush.msra.mxu0 %v576
    %613 = vmatpush.msra.mxu0 %v574
    %614 = vmatmul.f32.gmra.mxu0 %v586
    %v615 = vpop.f32.mrf.mxu0
    %v616 = vadd.f32 0.0, %v615
    %617 = vmatmul.f32.gmra.mxu0 %v589
    %v618 = vpop.f32.mrf.mxu0
    %v619 = vadd.f32 0.0, %v618
    %620 = vdwg.mxu0
    %621 = vmatpush.msra.mxu0 0.0
    %622 = vmatpush.msra.mxu0 0.0
    %623 = vmatpush.msra.mxu0 0.0
    %624 = vmatpush.msra.mxu0 0.0
    %625 = vmatpush.msra.mxu0 0.0
    %626 = vmatpush.msra.mxu0 0.0
    %627 = vmatpush.msra.mxu0 0.0
    %628 = vmatpush.msra.mxu0 0.0
    %629 = vmatpush.msra.mxu0 0.0
    %630 = vmatpush.msra.mxu0 0.0
    %631 = vmatpush.msra.mxu0 0.0
    %632 = vmatpush.msra.mxu0 0.0
    %633 = vmatpush.msra.mxu0 %v596
    %634 = vmatpush.msra.mxu0 %v579
    %635 = vmatpush.msra.mxu0 %v577
    %636 = vmatpush.msra.mxu0 %v575
    %637 = vmatmul.f32.gmra.mxu0 %v586
    %v638 = vpop.f32.mrf.mxu0
    %v639 = vadd.f32 0.0, %v638
    %640 = vmatmul.f32.gmra.mxu0 %v589
    %v641 = vpop.f32.mrf.mxu0
    %v642 = vadd.f32 0.0, %v641
    %643 = vdwg.mxu0
    %v644 = vld [vmem:[%s4] sm:$0xff]
    %v645 = vld [vmem:[%s4 + $0x8] sm:$0x3f]
    %v647 = vsel %vm584, %v644, 0
    %v650 = vsel %vm584, %v645, 0
    %652 = vmatpush.msra.mxu0 0.0
    %653 = vmatpush.msra.mxu0 0.0
    %654 = vmatpush.msra.mxu0 0.0
    %655 = vmatpush.msra.mxu0 0.0
    %656 = vmatpush.msra.mxu0 0.0
    %657 = vmatpush.msra.mxu0 0.0
    %658 = vmatpush.msra.mxu0 0.0
    %659 = vmatpush.msra.mxu0 0.0
    %660 = vmatpush.msra.mxu0 0.0
    %661 = vmatpush.msra.mxu0 0.0
    %662 = vmatpush.msra.mxu0 0.0
    %663 = vmatpush.msra.mxu0 0.0
    %664 = vmatpush.msra.mxu0 %v593
    %665 = vmatpush.msra.mxu0 %v578
    %666 = vmatpush.msra.mxu0 %v576
    %667 = vmatpush.msra.mxu0 %v574
    %668 = vmatmul.f32.gmra.mxu0 %v647
    %v669 = vpop.f32.mrf.mxu0
    %v670 = vadd.f32 0.0, %v669
    %671 = vmatmul.f32.gmra.mxu0 %v650
    %v672 = vpop.f32.mrf.mxu0
    %v673 = vadd.f32 0.0, %v672
    %674 = vdwg.mxu0
    %675 = vmatpush.msra.mxu0 0.0
    %676 = vmatpush.msra.mxu0 0.0
    %677 = vmatpush.msra.mxu0 0.0
    %678 = vmatpush.msra.mxu0 0.0
    %679 = vmatpush.msra.mxu0 0.0
    %680 = vmatpush.msra.mxu0 0.0
    %681 = vmatpush.msra.mxu0 0.0
    %682 = vmatpush.msra.mxu0 0.0
    %683 = vmatpush.msra.mxu0 0.0
    %684 = vmatpush.msra.mxu0 0.0
    %685 = vmatpush.msra.mxu0 0.0
    %686 = vmatpush.msra.mxu0 0.0
    %687 = vmatpush.msra.mxu0 %v596
    %688 = vmatpush.msra.mxu0 %v579
    %689 = vmatpush.msra.mxu0 %v577
    %690 = vmatpush.msra.mxu0 %v575
    %691 = vmatmul.f32.gmra.mxu0 %v647
    %v692 = vpop.f32.mrf.mxu0
    %v693 = vadd.f32 0.0, %v692
    %694 = vmatmul.f32.gmra.mxu0 %v650
    %v695 = vpop.f32.mrf.mxu0
    %v696 = vadd.f32 0.0, %v695
    %697 = vdwg.mxu0
    %v698 = vmax.f32 %v616, %v670
    %v699 = vmax.f32 %v639, %v693
    %v700 = vmax.f32 %v619, %v673
    %v701 = vmax.f32 %v642, %v696
    %v702 = vld [vmem:[%s5] sm:$0xff]
    %v703 = vld [vmem:[%s5 + $0x8] sm:$0xff]
    %v704 = vld [vmem:[%s5 + $0x10] sm:$0xff]
    %v705 = vld [vmem:[%s5 + $0x18] sm:$0xff]
    %v706 = vld [vmem:[%s5 + $0x20] sm:$0xff]
    %v707 = vld [vmem:[%s5 + $0x28] sm:$0xff]
    %v708 = vld [vmem:[%s5 + $0x30] sm:$0xff]
    %v709 = vld [vmem:[%s5 + $0x38] sm:$0xff]
    %v710 = vld [vmem:[%s5 + $0x40] sm:$0xff]
    %v711 = vld [vmem:[%s5 + $0x48] sm:$0xff]
    %v712 = vld [vmem:[%s5 + $0x50] sm:$0xff]
    %v713 = vld [vmem:[%s5 + $0x58] sm:$0xff]
    %v714 = vld [vmem:[%s5 + $0x60] sm:$0xff]
    %v715 = vld [vmem:[%s5 + $0x68] sm:$0xff]
    %v716 = vld [vmem:[%s5 + $0x70] sm:$0xff]
    %v717 = vld [vmem:[%s5 + $0x78] sm:$0xff]
    %v718 = vld [vmem:[%s5 + $0x80] sm:$0xff]
    %v719 = vld [vmem:[%s5 + $0x88] sm:$0xff]
    %v720 = vld [vmem:[%s5 + $0x90] sm:$0xff]
    %v721 = vld [vmem:[%s5 + $0x98] sm:$0xff]
    %v722 = vld [vmem:[%s5 + $0xa0] sm:$0xff]
    %vm723 = vcmask 326656
    %v725 = vsel %vm723, %v699, 0
    %v728 = vsel %vm723, %v701, 0
    %730 = vmatpush.msra.mxu0 %v717
    %731 = vmatpush.msra.mxu0 %v716
    %732 = vmatpush.msra.mxu0 %v715
    %733 = vmatpush.msra.mxu0 %v714
    %734 = vmatpush.msra.mxu0 %v713
    %735 = vmatpush.msra.mxu0 %v712
    %736 = vmatpush.msra.mxu0 %v711
    %737 = vmatpush.msra.mxu0 %v710
    %738 = vmatpush.msra.mxu0 %v709
    %739 = vmatpush.msra.mxu0 %v708
    %740 = vmatpush.msra.mxu0 %v707
    %741 = vmatpush.msra.mxu0 %v706
    %742 = vmatpush.msra.mxu0 %v705
    %743 = vmatpush.msra.mxu0 %v704
    %744 = vmatpush.msra.mxu0 %v703
    %745 = vmatpush.msra.mxu0 %v702
    %746 = vmatmul.f32.gmra.mxu0 %v698
    %v747 = vpop.f32.mrf.mxu0
    %v748 = vadd.f32 0.0, %v747
    %749 = vmatmul.f32.gmra.mxu0 %v700
    %v750 = vpop.f32.mrf.mxu0
    %v751 = vadd.f32 0.0, %v750
    %752 = vdwg.mxu0
    %753 = vmatpush.msra.mxu0 0.0
    %754 = vmatpush.msra.mxu0 0.0
    %755 = vmatpush.msra.mxu0 0.0
    %756 = vmatpush.msra.mxu0 0.0
    %757 = vmatpush.msra.mxu0 0.0
    %758 = vmatpush.msra.mxu0 0.0
    %759 = vmatpush.msra.mxu0 0.0
    %760 = vmatpush.msra.mxu0 0.0
    %761 = vmatpush.msra.mxu0 0.0
    %762 = vmatpush.msra.mxu0 0.0
    %763 = vmatpush.msra.mxu0 0.0
    %764 = vmatpush.msra.mxu0 %v722
    %765 = vmatpush.msra.mxu0 %v721
    %766 = vmatpush.msra.mxu0 %v720
    %767 = vmatpush.msra.mxu0 %v719
    %768 = vmatpush.msra.mxu0 %v718
    %769 = vmatmul.f32.gmra.mxu0 %v725
    %v770 = vpop.f32.mrf.mxu0
    %v771 = vadd.f32 %v748, %v770
    %772 = vmatmul.f32.gmra.mxu0 %v728
    %v773 = vpop.f32.mrf.mxu0
    %v774 = vadd.f32 %v751, %v773
    %775 = vdwg.mxu0
    %v776 = vld [vmem:[%s6] sm:$0xff]
    %v777 = vld [vmem:[%s6 + $0x8] sm:$0xff]
    %v778 = vld [vmem:[%s6 + $0x10] sm:$0xff]
    %v779 = vld [vmem:[%s6 + $0x18] sm:$0xff]
    %v780 = vld [vmem:[%s6 + $0x20] sm:$0xff]
    %v781 = vld [vmem:[%s6 + $0x28] sm:$0xff]
    %v782 = vld [vmem:[%s6 + $0x30] sm:$0xff]
    %v783 = vld [vmem:[%s6 + $0x38] sm:$0xff]
    %v784 = vld [vmem:[%s6 + $0x40] sm:$0xff]
    %v785 = vld [vmem:[%s6 + $0x48] sm:$0xff]
    %v786 = vld [vmem:[%s6 + $0x50] sm:$0xff]
    %v787 = vld [vmem:[%s6 + $0x58] sm:$0xff]
    %v788 = vld [vmem:[%s6 + $0x60] sm:$0xff]
    %v789 = vld [vmem:[%s6 + $0x68] sm:$0xff]
    %v790 = vld [vmem:[%s6 + $0x70] sm:$0xff]
    %v791 = vld [vmem:[%s6 + $0x78] sm:$0xff]
    %v792 = vld [vmem:[%s6 + $0x80] sm:$0xff]
    %v793 = vld [vmem:[%s6 + $0x88] sm:$0xff]
    %v794 = vld [vmem:[%s6 + $0x90] sm:$0xff]
    %v795 = vld [vmem:[%s6 + $0x98] sm:$0xff]
    %v796 = vld [vmem:[%s6 + $0xa0] sm:$0xff]
    %797 = vmatpush.msra.mxu0 %v791
    %798 = vmatpush.msra.mxu0 %v790
    %799 = vmatpush.msra.mxu0 %v789
    %800 = vmatpush.msra.mxu0 %v788
    %801 = vmatpush.msra.mxu0 %v787
    %802 = vmatpush.msra.mxu0 %v786
    %803 = vmatpush.msra.mxu0 %v785
    %804 = vmatpush.msra.mxu0 %v784
    %805 = vmatpush.msra.mxu0 %v783
    %806 = vmatpush.msra.mxu0 %v782
    %807 = vmatpush.msra.mxu0 %v781
    %808 = vmatpush.msra.mxu0 %v780
    %809 = vmatpush.msra.mxu0 %v779
    %810 = vmatpush.msra.mxu0 %v778
    %811 = vmatpush.msra.mxu0 %v777
    %812 = vmatpush.msra.mxu0 %v776
    %813 = vmatmul.f32.gmra.mxu0 %v698
    %v814 = vpop.f32.mrf.mxu0
    %v815 = vadd.f32 0.0, %v814
    %816 = vmatmul.f32.gmra.mxu0 %v700
    %v817 = vpop.f32.mrf.mxu0
    %v818 = vadd.f32 0.0, %v817
    %819 = vdwg.mxu0
    %820 = vmatpush.msra.mxu0 0.0
    %821 = vmatpush.msra.mxu0 0.0
    %822 = vmatpush.msra.mxu0 0.0
    %823 = vmatpush.msra.mxu0 0.0
    %824 = vmatpush.msra.mxu0 0.0
    %825 = vmatpush.msra.mxu0 0.0
    %826 = vmatpush.msra.mxu0 0.0
    %827 = vmatpush.msra.mxu0 0.0
    %828 = vmatpush.msra.mxu0 0.0
    %829 = vmatpush.msra.mxu0 0.0
    %830 = vmatpush.msra.mxu0 0.0
    %831 = vmatpush.msra.mxu0 %v796
    %832 = vmatpush.msra.mxu0 %v795
    %833 = vmatpush.msra.mxu0 %v794
    %834 = vmatpush.msra.mxu0 %v793
    %835 = vmatpush.msra.mxu0 %v792
    %836 = vmatmul.f32.gmra.mxu0 %v725
    %v837 = vpop.f32.mrf.mxu0
    %v838 = vadd.f32 %v815, %v837
    %839 = vmatmul.f32.gmra.mxu0 %v728
    %v840 = vpop.f32.mrf.mxu0
    %v841 = vadd.f32 %v818, %v840
    %842 = vdwg.mxu0
    %v843 = vmax.f32 %v771, %v838
    %v844 = vmax.f32 %v774, %v841
    %v845 = vld [vmem:[%s2] sm:$0x1]
    %v847 = vperm.slane %v845, 0
    %v849 = vadd.f32 %v843, %v847
    %v850 = vadd.f32 %v844, %v847
    %v851 = vmax.f32 %v849, 0.0
    %v852 = vmax.f32 %v850, 0.0
    %vm853 = vcmask 687104
    %854 = vst.msk [vmem:[#allocation2] sm:$0xff] %vm853, %v851
    %vm855 = vcmask 685056
    %856 = vst.msk [vmem:[#allocation2 + $0x8] sm:$0x3f] %vm855, %v852
    %v857 = vld [vmem:[#allocation2] sm:$0xff]
    %v858 = vld [vmem:[#allocation2 + $0x8] sm:$0x3]
    %v859 = vld [vmem:[%s7] sm:$0xff]
    %v860 = vld [vmem:[%s7 + $0x8] sm:$0xff]
    %v861 = vld [vmem:[%s7 + $0x10] sm:$0xff]
    %v862 = vld [vmem:[%s7 + $0x18] sm:$0xff]
    %v863 = vld [vmem:[%s7 + $0x20] sm:$0xff]
    %v864 = vld [vmem:[%s7 + $0x28] sm:$0xff]
    %v865 = vld [vmem:[%s7 + $0x30] sm:$0xff]
    %v866 = vld [vmem:[%s7 + $0x38] sm:$0xff]
    %v867 = vld [vmem:[%s7 + $0x40] sm:$0xff]
    %v868 = vld [vmem:[%s7 + $0x48] sm:$0xff]
    %v869 = vld [vmem:[%s7 + $0x50] sm:$0xff]
    %v870 = vld [vmem:[%s7 + $0x58] sm:$0xff]
    %v871 = vld [vmem:[%s7 + $0x60] sm:$0xff]
    %v872 = vld [vmem:[%s7 + $0x68] sm:$0xff]
    %v873 = vld [vmem:[%s7 + $0x70] sm:$0xff]
    %v874 = vld [vmem:[%s7 + $0x78] sm:$0xff]
    %v875 = vld [vmem:[%s7 + $0x80] sm:$0xff]
    %v876 = vld [vmem:[%s7 + $0x88] sm:$0xff]
    %v877 = vld [vmem:[%s7 + $0x90] sm:$0xff]
    %v878 = vld [vmem:[%s7 + $0x98] sm:$0xff]
    %v879 = vld [vmem:[%s7 + $0xa0] sm:$0xf]
    %v880 = vld [vmem:[%s7 + $0xa8] sm:$0xf]
    %v881 = vld [vmem:[#allocation2 + $0x1] sm:$0xff]
    %v882 = vld [vmem:[#allocation2 + $0x9] sm:$0x3]
    %s883 = scalar_lea.vmem %s7, 176
    %v884 = vld [vmem:[%s883] sm:$0xff]
    %v885 = vld [vmem:[%s883 + $0x8] sm:$0xff]
    %v886 = vld [vmem:[%s883 + $0x10] sm:$0xff]
    %v887 = vld [vmem:[%s883 + $0x18] sm:$0xff]
    %v888 = vld [vmem:[%s883 + $0x20] sm:$0xff]
    %v889 = vld [vmem:[%s883 + $0x28] sm:$0xff]
    %v890 = vld [vmem:[%s883 + $0x30] sm:$0xff]
    %v891 = vld [vmem:[%s883 + $0x38] sm:$0xff]
    %v892 = vld [vmem:[%s883 + $0x40] sm:$0xff]
    %v893 = vld [vmem:[%s883 + $0x48] sm:$0xff]
    %v894 = vld [vmem:[%s883 + $0x50] sm:$0xff]
    %v895 = vld [vmem:[%s883 + $0x58] sm:$0xff]
    %v896 = vld [vmem:[%s883 + $0x60] sm:$0xff]
    %v897 = vld [vmem:[%s883 + $0x68] sm:$0xff]
    %v898 = vld [vmem:[%s883 + $0x70] sm:$0xff]
    %v899 = vld [vmem:[%s883 + $0x78] sm:$0xff]
    %v900 = vld [vmem:[%s883 + $0x80] sm:$0xff]
    %v901 = vld [vmem:[%s883 + $0x88] sm:$0xff]
    %v902 = vld [vmem:[%s883 + $0x90] sm:$0xff]
    %v903 = vld [vmem:[%s883 + $0x98] sm:$0xff]
    %v904 = vld [vmem:[%s883 + $0xa0] sm:$0xf]
    %v905 = vld [vmem:[%s883 + $0xa8] sm:$0xf]
    %v907 = vsel %vm853, %v881, 0
    %v910 = vsel %vm853, %v882, 0
    %v913 = vsel %vm591, %v904, 0
    %v916 = vsel %vm591, %v905, 0
    %918 = vmatpush.msra.mxu0 0.0
    %919 = vmatpush.msra.mxu0 0.0
    %920 = vmatpush.msra.mxu0 0.0
    %921 = vmatpush.msra.mxu0 0.0
    %922 = vmatpush.msra.mxu0 0.0
    %923 = vmatpush.msra.mxu0 %v913
    %924 = vmatpush.msra.mxu0 %v902
    %925 = vmatpush.msra.mxu0 %v900
    %926 = vmatpush.msra.mxu0 %v898
    %927 = vmatpush.msra.mxu0 %v896
    %928 = vmatpush.msra.mxu0 %v894
    %929 = vmatpush.msra.mxu0 %v892
    %930 = vmatpush.msra.mxu0 %v890
    %931 = vmatpush.msra.mxu0 %v888
    %932 = vmatpush.msra.mxu0 %v886
    %933 = vmatpush.msra.mxu0 %v884
    %934 = vmatmul.f32.gmra.mxu0 %v907
    %v935 = vpop.f32.mrf.mxu0
    %v936 = vadd.f32 0.0, %v935
    %937 = vmatmul.f32.gmra.mxu0 %v910
    %v938 = vpop.f32.mrf.mxu0
    %v939 = vadd.f32 0.0, %v938
    %940 = vdwg.mxu0
    %941 = vmatpush.msra.mxu0 0.0
    %942 = vmatpush.msra.mxu0 0.0
    %943 = vmatpush.msra.mxu0 0.0
    %944 = vmatpush.msra.mxu0 0.0
    %945 = vmatpush.msra.mxu0 0.0
    %946 = vmatpush.msra.mxu0 %v916
    %947 = vmatpush.msra.mxu0 %v903
    %948 = vmatpush.msra.mxu0 %v901
    %949 = vmatpush.msra.mxu0 %v899
    %950 = vmatpush.msra.mxu0 %v897
    %951 = vmatpush.msra.mxu0 %v895
    %952 = vmatpush.msra.mxu0 %v893
    %953 = vmatpush.msra.mxu0 %v891
    %954 = vmatpush.msra.mxu0 %v889
    %955 = vmatpush.msra.mxu0 %v887
    %956 = vmatpush.msra.mxu0 %v885
    %957 = vmatmul.f32.gmra.mxu0 %v907
    %v958 = vpop.f32.mrf.mxu0
    %v959 = vadd.f32 0.0, %v958
    %960 = vmatmul.f32.gmra.mxu0 %v910
    %v961 = vpop.f32.mrf.mxu0
    %v962 = vadd.f32 0.0, %v961
    %963 = vdwg.mxu0
    %v965 = vsel %vm853, %v857, 0
    %v968 = vsel %vm853, %v858, 0
    %v971 = vsel %vm591, %v879, 0
    %v974 = vsel %vm591, %v880, 0
    %976 = vmatpush.msra.mxu0 0.0
    %977 = vmatpush.msra.mxu0 0.0
    %978 = vmatpush.msra.mxu0 0.0
    %979 = vmatpush.msra.mxu0 0.0
    %980 = vmatpush.msra.mxu0 0.0
    %981 = vmatpush.msra.mxu0 %v971
    %982 = vmatpush.msra.mxu0 %v877
    %983 = vmatpush.msra.mxu0 %v875
    %984 = vmatpush.msra.mxu0 %v873
    %985 = vmatpush.msra.mxu0 %v871
    %986 = vmatpush.msra.mxu0 %v869
    %987 = vmatpush.msra.mxu0 %v867
    %988 = vmatpush.msra.mxu0 %v865
    %989 = vmatpush.msra.mxu0 %v863
    %990 = vmatpush.msra.mxu0 %v861
    %991 = vmatpush.msra.mxu0 %v859
    %992 = vmatmul.f32.gmra.mxu0 %v965
    %v993 = vpop.f32.mrf.mxu0
    %v994 = vadd.f32 %v936, %v993
    %995 = vmatmul.f32.gmra.mxu0 %v968
    %v996 = vpop.f32.mrf.mxu0
    %v997 = vadd.f32 %v939, %v996
    %998 = vdwg.mxu0
    %999 = vmatpush.msra.mxu0 0.0
    %1000 = vmatpush.msra.mxu0 0.0
    %1001 = vmatpush.msra.mxu0 0.0
    %1002 = vmatpush.msra.mxu0 0.0
    %1003 = vmatpush.msra.mxu0 0.0
    %1004 = vmatpush.msra.mxu0 %v974
    %1005 = vmatpush.msra.mxu0 %v878
    %1006 = vmatpush.msra.mxu0 %v876
    %1007 = vmatpush.msra.mxu0 %v874
    %1008 = vmatpush.msra.mxu0 %v872
    %1009 = vmatpush.msra.mxu0 %v870
    %1010 = vmatpush.msra.mxu0 %v868
    %1011 = vmatpush.msra.mxu0 %v866
    %1012 = vmatpush.msra.mxu0 %v864
    %1013 = vmatpush.msra.mxu0 %v862
    %1014 = vmatpush.msra.mxu0 %v860
    %1015 = vmatmul.f32.gmra.mxu0 %v965
    %v1016 = vpop.f32.mrf.mxu0
    %v1017 = vadd.f32 %v959, %v1016
    %1018 = vmatmul.f32.gmra.mxu0 %v968
    %v1019 = vpop.f32.mrf.mxu0
    %v1020 = vadd.f32 %v962, %v1019
    %1021 = vdwg.mxu0
    %v1022 = vld [vmem:[#allocation2 + $0x2] sm:$0xff]
    %v1023 = vld [vmem:[#allocation2 + $0xa] sm:$0x3]
    %s1024 = scalar_lea.vmem %s7, 352
    %v1025 = vld [vmem:[%s1024] sm:$0xff]
    %v1026 = vld [vmem:[%s1024 + $0x8] sm:$0xff]
    %v1027 = vld [vmem:[%s1024 + $0x10] sm:$0xff]
    %v1028 = vld [vmem:[%s1024 + $0x18] sm:$0xff]
    %v1029 = vld [vmem:[%s1024 + $0x20] sm:$0xff]
    %v1030 = vld [vmem:[%s1024 + $0x28] sm:$0xff]
    %v1031 = vld [vmem:[%s1024 + $0x30] sm:$0xff]
    %v1032 = vld [vmem:[%s1024 + $0x38] sm:$0xff]
    %v1033 = vld [vmem:[%s1024 + $0x40] sm:$0xff]
    %v1034 = vld [vmem:[%s1024 + $0x48] sm:$0xff]
    %v1035 = vld [vmem:[%s1024 + $0x50] sm:$0xff]
    %v1036 = vld [vmem:[%s1024 + $0x58] sm:$0xff]
    %v1037 = vld [vmem:[%s1024 + $0x60] sm:$0xff]
    %v1038 = vld [vmem:[%s1024 + $0x68] sm:$0xff]
    %v1039 = vld [vmem:[%s1024 + $0x70] sm:$0xff]
    %v1040 = vld [vmem:[%s1024 + $0x78] sm:$0xff]
    %v1041 = vld [vmem:[%s1024 + $0x80] sm:$0xff]
    %v1042 = vld [vmem:[%s1024 + $0x88] sm:$0xff]
    %v1043 = vld [vmem:[%s1024 + $0x90] sm:$0xff]
    %v1044 = vld [vmem:[%s1024 + $0x98] sm:$0xff]
    %v1045 = vld [vmem:[%s1024 + $0xa0] sm:$0xf]
    %v1046 = vld [vmem:[%s1024 + $0xa8] sm:$0xf]
    %v1048 = vsel %vm853, %v1022, 0
    %v1051 = vsel %vm853, %v1023, 0
    %v1054 = vsel %vm591, %v1045, 0
    %v1057 = vsel %vm591, %v1046, 0
    %1059 = vmatpush.msra.mxu0 0.0
    %1060 = vmatpush.msra.mxu0 0.0
    %1061 = vmatpush.msra.mxu0 0.0
    %1062 = vmatpush.msra.mxu0 0.0
    %1063 = vmatpush.msra.mxu0 0.0
    %1064 = vmatpush.msra.mxu0 %v1054
    %1065 = vmatpush.msra.mxu0 %v1043
    %1066 = vmatpush.msra.mxu0 %v1041
    %1067 = vmatpush.msra.mxu0 %v1039
    %1068 = vmatpush.msra.mxu0 %v1037
    %1069 = vmatpush.msra.mxu0 %v1035
    %1070 = vmatpush.msra.mxu0 %v1033
    %1071 = vmatpush.msra.mxu0 %v1031
    %1072 = vmatpush.msra.mxu0 %v1029
    %1073 = vmatpush.msra.mxu0 %v1027
    %1074 = vmatpush.msra.mxu0 %v1025
    %1075 = vmatmul.f32.gmra.mxu0 %v1048
    %v1076 = vpop.f32.mrf.mxu0
    %v1077 = vadd.f32 0.0, %v1076
    %1078 = vmatmul.f32.gmra.mxu0 %v1051
    %v1079 = vpop.f32.mrf.mxu0
    %v1080 = vadd.f32 0.0, %v1079
    %1081 = vdwg.mxu0
    %1082 = vmatpush.msra.mxu0 0.0
    %1083 = vmatpush.msra.mxu0 0.0
    %1084 = vmatpush.msra.mxu0 0.0
    %1085 = vmatpush.msra.mxu0 0.0
    %1086 = vmatpush.msra.mxu0 0.0
    %1087 = vmatpush.msra.mxu0 %v1057
    %1088 = vmatpush.msra.mxu0 %v1044
    %1089 = vmatpush.msra.mxu0 %v1042
    %1090 = vmatpush.msra.mxu0 %v1040
    %1091 = vmatpush.msra.mxu0 %v1038
    %1092 = vmatpush.msra.mxu0 %v1036
    %1093 = vmatpush.msra.mxu0 %v1034
    %1094 = vmatpush.msra.mxu0 %v1032
    %1095 = vmatpush.msra.mxu0 %v1030
    %1096 = vmatpush.msra.mxu0 %v1028
    %1097 = vmatpush.msra.mxu0 %v1026
    %1098 = vmatmul.f32.gmra.mxu0 %v1048
    %v1099 = vpop.f32.mrf.mxu0
    %v1100 = vadd.f32 0.0, %v1099
    %1101 = vmatmul.f32.gmra.mxu0 %v1051
    %v1102 = vpop.f32.mrf.mxu0
    %v1103 = vadd.f32 0.0, %v1102
    %1104 = vdwg.mxu0
    %v1105 = vadd.f32 %v994, %v1077
    %v1106 = vadd.f32 %v1017, %v1100
    %v1107 = vadd.f32 %v997, %v1080
    %v1108 = vadd.f32 %v1020, %v1103
    %v1109 = vld [vmem:[#allocation2 + $0x3] sm:$0xff]
    %v1110 = vld [vmem:[#allocation2 + $0xb] sm:$0x3]
    %s1111 = scalar_lea.vmem %s7, 528
    %v1112 = vld [vmem:[%s1111] sm:$0xff]
    %v1113 = vld [vmem:[%s1111 + $0x8] sm:$0xff]
    %v1114 = vld [vmem:[%s1111 + $0x10] sm:$0xff]
    %v1115 = vld [vmem:[%s1111 + $0x18] sm:$0xff]
    %v1116 = vld [vmem:[%s1111 + $0x20] sm:$0xff]
    %v1117 = vld [vmem:[%s1111 + $0x28] sm:$0xff]
    %v1118 = vld [vmem:[%s1111 + $0x30] sm:$0xff]
    %v1119 = vld [vmem:[%s1111 + $0x38] sm:$0xff]
    %v1120 = vld [vmem:[%s1111 + $0x40] sm:$0xff]
    %v1121 = vld [vmem:[%s1111 + $0x48] sm:$0xff]
    %v1122 = vld [vmem:[%s1111 + $0x50] sm:$0xff]
    %v1123 = vld [vmem:[%s1111 + $0x58] sm:$0xff]
    %v1124 = vld [vmem:[%s1111 + $0x60] sm:$0xff]
    %v1125 = vld [vmem:[%s1111 + $0x68] sm:$0xff]
    %v1126 = vld [vmem:[%s1111 + $0x70] sm:$0xff]
    %v1127 = vld [vmem:[%s1111 + $0x78] sm:$0xff]
    %v1128 = vld [vmem:[%s1111 + $0x80] sm:$0xff]
    %v1129 = vld [vmem:[%s1111 + $0x88] sm:$0xff]
    %v1130 = vld [vmem:[%s1111 + $0x90] sm:$0xff]
    %v1131 = vld [vmem:[%s1111 + $0x98] sm:$0xff]
    %v1132 = vld [vmem:[%s1111 + $0xa0] sm:$0xf]
    %v1133 = vld [vmem:[%s1111 + $0xa8] sm:$0xf]
    %v1135 = vsel %vm853, %v1109, 0
    %v1138 = vsel %vm853, %v1110, 0
    %v1141 = vsel %vm591, %v1132, 0
    %v1144 = vsel %vm591, %v1133, 0
    %1146 = vmatpush.msra.mxu0 0.0
    %1147 = vmatpush.msra.mxu0 0.0
    %1148 = vmatpush.msra.mxu0 0.0
    %1149 = vmatpush.msra.mxu0 0.0
    %1150 = vmatpush.msra.mxu0 0.0
    %1151 = vmatpush.msra.mxu0 %v1141
    %1152 = vmatpush.msra.mxu0 %v1130
    %1153 = vmatpush.msra.mxu0 %v1128
    %1154 = vmatpush.msra.mxu0 %v1126
    %1155 = vmatpush.msra.mxu0 %v1124
    %1156 = vmatpush.msra.mxu0 %v1122
    %1157 = vmatpush.msra.mxu0 %v1120
    %1158 = vmatpush.msra.mxu0 %v1118
    %1159 = vmatpush.msra.mxu0 %v1116
    %1160 = vmatpush.msra.mxu0 %v1114
    %1161 = vmatpush.msra.mxu0 %v1112
    %1162 = vmatmul.f32.gmra.mxu0 %v1135
    %v1163 = vpop.f32.mrf.mxu0
    %v1164 = vadd.f32 0.0, %v1163
    %1165 = vmatmul.f32.gmra.mxu0 %v1138
    %v1166 = vpop.f32.mrf.mxu0
    %v1167 = vadd.f32 0.0, %v1166
    %1168 = vdwg.mxu0
    %1169 = vmatpush.msra.mxu0 0.0
    %1170 = vmatpush.msra.mxu0 0.0
    %1171 = vmatpush.msra.mxu0 0.0
    %1172 = vmatpush.msra.mxu0 0.0
    %1173 = vmatpush.msra.mxu0 0.0
    %1174 = vmatpush.msra.mxu0 %v1144
    %1175 = vmatpush.msra.mxu0 %v1131
    %1176 = vmatpush.msra.mxu0 %v1129
    %1177 = vmatpush.msra.mxu0 %v1127
    %1178 = vmatpush.msra.mxu0 %v1125
    %1179 = vmatpush.msra.mxu0 %v1123
    %1180 = vmatpush.msra.mxu0 %v1121
    %1181 = vmatpush.msra.mxu0 %v1119
    %1182 = vmatpush.msra.mxu0 %v1117
    %1183 = vmatpush.msra.mxu0 %v1115
    %1184 = vmatpush.msra.mxu0 %v1113
    %1185 = vmatmul.f32.gmra.mxu0 %v1135
    %v1186 = vpop.f32.mrf.mxu0
    %v1187 = vadd.f32 0.0, %v1186
    %1188 = vmatmul.f32.gmra.mxu0 %v1138
    %v1189 = vpop.f32.mrf.mxu0
    %v1190 = vadd.f32 0.0, %v1189
    %1191 = vdwg.mxu0
    %v1192 = vadd.f32 %v1105, %v1164
    %v1193 = vadd.f32 %v1106, %v1187
    %v1194 = vadd.f32 %v1107, %v1167
    %v1195 = vadd.f32 %v1108, %v1190
    %v1196 = vld [vmem:[#allocation2 + $0x4] sm:$0xff]
    %v1197 = vld [vmem:[#allocation2 + $0xc] sm:$0x3]
    %s1198 = scalar_lea.vmem %s7, 704
    %v1199 = vld [vmem:[%s1198] sm:$0xff]
    %v1200 = vld [vmem:[%s1198 + $0x8] sm:$0xff]
    %v1201 = vld [vmem:[%s1198 + $0x10] sm:$0xff]
    %v1202 = vld [vmem:[%s1198 + $0x18] sm:$0xff]
    %v1203 = vld [vmem:[%s1198 + $0x20] sm:$0xff]
    %v1204 = vld [vmem:[%s1198 + $0x28] sm:$0xff]
    %v1205 = vld [vmem:[%s1198 + $0x30] sm:$0xff]
    %v1206 = vld [vmem:[%s1198 + $0x38] sm:$0xff]
    %v1207 = vld [vmem:[%s1198 + $0x40] sm:$0xff]
    %v1208 = vld [vmem:[%s1198 + $0x48] sm:$0xff]
    %v1209 = vld [vmem:[%s1198 + $0x50] sm:$0xff]
    %v1210 = vld [vmem:[%s1198 + $0x58] sm:$0xff]
    %v1211 = vld [vmem:[%s1198 + $0x60] sm:$0xff]
    %v1212 = vld [vmem:[%s1198 + $0x68] sm:$0xff]
    %v1213 = vld [vmem:[%s1198 + $0x70] sm:$0xff]
    %v1214 = vld [vmem:[%s1198 + $0x78] sm:$0xff]
    %v1215 = vld [vmem:[%s1198 + $0x80] sm:$0xff]
    %v1216 = vld [vmem:[%s1198 + $0x88] sm:$0xff]
    %v1217 = vld [vmem:[%s1198 + $0x90] sm:$0xff]
    %v1218 = vld [vmem:[%s1198 + $0x98] sm:$0xff]
    %v1219 = vld [vmem:[%s1198 + $0xa0] sm:$0xf]
    %v1220 = vld [vmem:[%s1198 + $0xa8] sm:$0xf]
    %v1222 = vsel %vm853, %v1196, 0
    %v1225 = vsel %vm853, %v1197, 0
    %v1228 = vsel %vm591, %v1219, 0
    %v1231 = vsel %vm591, %v1220, 0
    %1233 = vmatpush.msra.mxu0 0.0
    %1234 = vmatpush.msra.mxu0 0.0
    %1235 = vmatpush.msra.mxu0 0.0
    %1236 = vmatpush.msra.mxu0 0.0
    %1237 = vmatpush.msra.mxu0 0.0
    %1238 = vmatpush.msra.mxu0 %v1228
    %1239 = vmatpush.msra.mxu0 %v1217
    %1240 = vmatpush.msra.mxu0 %v1215
    %1241 = vmatpush.msra.mxu0 %v1213
    %1242 = vmatpush.msra.mxu0 %v1211
    %1243 = vmatpush.msra.mxu0 %v1209
    %1244 = vmatpush.msra.mxu0 %v1207
    %1245 = vmatpush.msra.mxu0 %v1205
    %1246 = vmatpush.msra.mxu0 %v1203
    %1247 = vmatpush.msra.mxu0 %v1201
    %1248 = vmatpush.msra.mxu0 %v1199
    %1249 = vmatmul.f32.gmra.mxu0 %v1222
    %v1250 = vpop.f32.mrf.mxu0
    %v1251 = vadd.f32 0.0, %v1250
    %1252 = vmatmul.f32.gmra.mxu0 %v1225
    %v1253 = vpop.f32.mrf.mxu0
    %v1254 = vadd.f32 0.0, %v1253
    %1255 = vdwg.mxu0
    %1256 = vmatpush.msra.mxu0 0.0
    %1257 = vmatpush.msra.mxu0 0.0
    %1258 = vmatpush.msra.mxu0 0.0
    %1259 = vmatpush.msra.mxu0 0.0
    %1260 = vmatpush.msra.mxu0 0.0
    %1261 = vmatpush.msra.mxu0 %v1231
    %1262 = vmatpush.msra.mxu0 %v1218
    %1263 = vmatpush.msra.mxu0 %v1216
    %1264 = vmatpush.msra.mxu0 %v1214
    %1265 = vmatpush.msra.mxu0 %v1212
    %1266 = vmatpush.msra.mxu0 %v1210
    %1267 = vmatpush.msra.mxu0 %v1208
    %1268 = vmatpush.msra.mxu0 %v1206
    %1269 = vmatpush.msra.mxu0 %v1204
    %1270 = vmatpush.msra.mxu0 %v1202
    %1271 = vmatpush.msra.mxu0 %v1200
    %1272 = vmatmul.f32.gmra.mxu0 %v1222
    %v1273 = vpop.f32.mrf.mxu0
    %v1274 = vadd.f32 0.0, %v1273
    %1275 = vmatmul.f32.gmra.mxu0 %v1225
    %v1276 = vpop.f32.mrf.mxu0
    %v1277 = vadd.f32 0.0, %v1276
    %1278 = vdwg.mxu0
    %v1279 = vadd.f32 %v1192, %v1251
    %v1280 = vadd.f32 %v1193, %v1274
    %v1281 = vadd.f32 %v1194, %v1254
    %v1282 = vadd.f32 %v1195, %v1277
    %v1283 = vld [vmem:[%s9] sm:$0x1f]
    %vm1284 = vcmask 80896
    %v1286 = vsel %vm1284, %v1283, 0
    %vm1288 = vcmask 1041408
    %v1290 = vsel %vm1288, %v1281, 0
    %v1293 = vsel %vm1288, %v1282, 0
    %1295 = vmatpush.msra.mxu0 0.0
    %1296 = vmatpush.msra.mxu0 0.0
    %1297 = vmatpush.msra.mxu0 0.0
    %1298 = vmatpush.msra.mxu0 0.0
    %1299 = vmatpush.msra.mxu0 0.0
    %1300 = vmatpush.msra.mxu0 0.0
    %1301 = vmatpush.msra.mxu0 0.0
    %1302 = vmatpush.msra.mxu0 0.0
    %1303 = vmatpush.msra.mxu0 0.0
    %1304 = vmatpush.msra.mxu0 0.0
    %1305 = vmatpush.msra.mxu0 0.0
    %1306 = vmatpush.msra.mxu0 0.0
    %1307 = vmatpush.msra.mxu0 0.0
    %1308 = vmatpush.msra.mxu0 0.0
    %1309 = vmatpush.msra.mxu0 %v1290
    %1310 = vmatpush.msra.mxu0 %v1279
    %1311 = vmatmul.f32.gmra.mxu0 %v1286
    %v1312 = vpop.f32.mrf.mxu0
    %v1313 = vadd.f32 0.0, %v1312
    %1314 = vdwg.mxu0
    %1315 = vmatpush.msra.mxu0 0.0
    %1316 = vmatpush.msra.mxu0 0.0
    %1317 = vmatpush.msra.mxu0 0.0
    %1318 = vmatpush.msra.mxu0 0.0
    %1319 = vmatpush.msra.mxu0 0.0
    %1320 = vmatpush.msra.mxu0 0.0
    %1321 = vmatpush.msra.mxu0 0.0
    %1322 = vmatpush.msra.mxu0 0.0
    %1323 = vmatpush.msra.mxu0 0.0
    %1324 = vmatpush.msra.mxu0 0.0
    %1325 = vmatpush.msra.mxu0 0.0
    %1326 = vmatpush.msra.mxu0 0.0
    %1327 = vmatpush.msra.mxu0 0.0
    %1328 = vmatpush.msra.mxu0 0.0
    %1329 = vmatpush.msra.mxu0 %v1293
    %1330 = vmatpush.msra.mxu0 %v1280
    %1331 = vmatmul.f32.gmra.mxu0 %v1286
    %v1332 = vpop.f32.mrf.mxu0
    %v1333 = vadd.f32 0.0, %v1332
    %1334 = vdwg.mxu0
    %v1335 = vld [vmem:[%s10] sm:$0x1f]
    %v1337 = vsel %vm1284, %v1335, 0
    %1339 = vmatpush.msra.mxu0 0.0
    %1340 = vmatpush.msra.mxu0 0.0
    %1341 = vmatpush.msra.mxu0 0.0
    %1342 = vmatpush.msra.mxu0 0.0
    %1343 = vmatpush.msra.mxu0 0.0
    %1344 = vmatpush.msra.mxu0 0.0
    %1345 = vmatpush.msra.mxu0 0.0
    %1346 = vmatpush.msra.mxu0 0.0
    %1347 = vmatpush.msra.mxu0 0.0
    %1348 = vmatpush.msra.mxu0 0.0
    %1349 = vmatpush.msra.mxu0 0.0
    %1350 = vmatpush.msra.mxu0 0.0
    %1351 = vmatpush.msra.mxu0 0.0
    %1352 = vmatpush.msra.mxu0 0.0
    %1353 = vmatpush.msra.mxu0 %v1290
    %1354 = vmatpush.msra.mxu0 %v1279
    %1355 = vmatmul.f32.gmra.mxu0 %v1337
    %v1356 = vpop.f32.mrf.mxu0
    %v1357 = vadd.f32 0.0, %v1356
    %1358 = vdwg.mxu0
    %1359 = vmatpush.msra.mxu0 0.0
    %1360 = vmatpush.msra.mxu0 0.0
    %1361 = vmatpush.msra.mxu0 0.0
    %1362 = vmatpush.msra.mxu0 0.0
    %1363 = vmatpush.msra.mxu0 0.0
    %1364 = vmatpush.msra.mxu0 0.0
    %1365 = vmatpush.msra.mxu0 0.0
    %1366 = vmatpush.msra.mxu0 0.0
    %1367 = vmatpush.msra.mxu0 0.0
    %1368 = vmatpush.msra.mxu0 0.0
    %1369 = vmatpush.msra.mxu0 0.0
    %1370 = vmatpush.msra.mxu0 0.0
    %1371 = vmatpush.msra.mxu0 0.0
    %1372 = vmatpush.msra.mxu0 0.0
    %1373 = vmatpush.msra.mxu0 %v1293
    %1374 = vmatpush.msra.mxu0 %v1280
    %1375 = vmatmul.f32.gmra.mxu0 %v1337
    %v1376 = vpop.f32.mrf.mxu0
    %v1377 = vadd.f32 0.0, %v1376
    %1378 = vdwg.mxu0
    %v1379 = vmax.f32 %v1313, %v1357
    %v1380 = vmax.f32 %v1333, %v1377
    %v1381 = vld [vmem:[%s11] sm:$0xff]
    %v1382 = vld [vmem:[%s11 + $0x8] sm:$0xff]
    %v1383 = vld [vmem:[%s11 + $0x10] sm:$0xff]
    %v1384 = vld [vmem:[%s11 + $0x18] sm:$0xff]
    %v1385 = vld [vmem:[%s11 + $0x20] sm:$0xff]
    %v1386 = vld [vmem:[%s11 + $0x28] sm:$0xff]
    %v1387 = vld [vmem:[%s11 + $0x30] sm:$0xff]
    %v1388 = vld [vmem:[%s11 + $0x38] sm:$0xff]
    %v1389 = vld [vmem:[%s11 + $0x40] sm:$0xff]
    %v1390 = vld [vmem:[%s11 + $0x48] sm:$0xff]
    %v1391 = vld [vmem:[%s11 + $0x50] sm:$0xff]
    %v1392 = vld [vmem:[%s11 + $0x58] sm:$0xff]
    %v1393 = vld [vmem:[%s11 + $0x60] sm:$0xff]
    %v1394 = vld [vmem:[%s11 + $0x68] sm:$0xff]
    %v1395 = vld [vmem:[%s11 + $0x70] sm:$0xff]
    %v1396 = vld [vmem:[%s11 + $0x78] sm:$0xff]
    %v1397 = vld [vmem:[%s11 + $0x80] sm:$0xff]
    %v1398 = vld [vmem:[%s11 + $0x88] sm:$0xff]
    %v1399 = vld [vmem:[%s11 + $0x90] sm:$0xff]
    %v1400 = vld [vmem:[%s11 + $0x98] sm:$0xff]
    %vm1401 = vcmask 261120
    %v1403 = vsel %vm1401, %v1380, 0
    %1405 = vmatpush.msra.mxu0 %v1396
    %1406 = vmatpush.msra.mxu0 %v1395
    %1407 = vmatpush.msra.mxu0 %v1394
    %1408 = vmatpush.msra.mxu0 %v1393
    %1409 = vmatpush.msra.mxu0 %v1392
    %1410 = vmatpush.msra.mxu0 %v1391
    %1411 = vmatpush.msra.mxu0 %v1390
    %1412 = vmatpush.msra.mxu0 %v1389
    %1413 = vmatpush.msra.mxu0 %v1388
    %1414 = vmatpush.msra.mxu0 %v1387
    %1415 = vmatpush.msra.mxu0 %v1386
    %1416 = vmatpush.msra.mxu0 %v1385
    %1417 = vmatpush.msra.mxu0 %v1384
    %1418 = vmatpush.msra.mxu0 %v1383
    %1419 = vmatpush.msra.mxu0 %v1382
    %1420 = vmatpush.msra.mxu0 %v1381
    %1421 = vmatmul.f32.gmra.mxu0 %v1379
    %v1422 = vpop.f32.mrf.mxu0
    %v1423 = vadd.f32 0.0, %v1422
    %1424 = vdwg.mxu0
    %1425 = vmatpush.msra.mxu0 0.0
    %1426 = vmatpush.msra.mxu0 0.0
    %1427 = vmatpush.msra.mxu0 0.0
    %1428 = vmatpush.msra.mxu0 0.0
    %1429 = vmatpush.msra.mxu0 0.0
    %1430 = vmatpush.msra.mxu0 0.0
    %1431 = vmatpush.msra.mxu0 0.0
    %1432 = vmatpush.msra.mxu0 0.0
    %1433 = vmatpush.msra.mxu0 0.0
    %1434 = vmatpush.msra.mxu0 0.0
    %1435 = vmatpush.msra.mxu0 0.0
    %1436 = vmatpush.msra.mxu0 0.0
    %1437 = vmatpush.msra.mxu0 %v1400
    %1438 = vmatpush.msra.mxu0 %v1399
    %1439 = vmatpush.msra.mxu0 %v1398
    %1440 = vmatpush.msra.mxu0 %v1397
    %1441 = vmatmul.f32.gmra.mxu0 %v1403
    %v1442 = vpop.f32.mrf.mxu0
    %v1443 = vadd.f32 %v1423, %v1442
    %1444 = vdwg.mxu0
    %v1445 = vld [vmem:[%s12] sm:$0xff]
    %v1446 = vld [vmem:[%s12 + $0x8] sm:$0xff]
    %v1447 = vld [vmem:[%s12 + $0x10] sm:$0xff]
    %v1448 = vld [vmem:[%s12 + $0x18] sm:$0xff]
    %v1449 = vld [vmem:[%s12 + $0x20] sm:$0xff]
    %v1450 = vld [vmem:[%s12 + $0x28] sm:$0xff]
    %v1451 = vld [vmem:[%s12 + $0x30] sm:$0xff]
    %v1452 = vld [vmem:[%s12 + $0x38] sm:$0xff]
    %v1453 = vld [vmem:[%s12 + $0x40] sm:$0xff]
    %v1454 = vld [vmem:[%s12 + $0x48] sm:$0xff]
    %v1455 = vld [vmem:[%s12 + $0x50] sm:$0xff]
    %v1456 = vld [vmem:[%s12 + $0x58] sm:$0xff]
    %v1457 = vld [vmem:[%s12 + $0x60] sm:$0xff]
    %v1458 = vld [vmem:[%s12 + $0x68] sm:$0xff]
    %v1459 = vld [vmem:[%s12 + $0x70] sm:$0xff]
    %v1460 = vld [vmem:[%s12 + $0x78] sm:$0xff]
    %v1461 = vld [vmem:[%s12 + $0x80] sm:$0xff]
    %v1462 = vld [vmem:[%s12 + $0x88] sm:$0xff]
    %v1463 = vld [vmem:[%s12 + $0x90] sm:$0xff]
    %v1464 = vld [vmem:[%s12 + $0x98] sm:$0xff]
    %1465 = vmatpush.msra.mxu0 %v1460
    %1466 = vmatpush.msra.mxu0 %v1459
    %1467 = vmatpush.msra.mxu0 %v1458
    %1468 = vmatpush.msra.mxu0 %v1457
    %1469 = vmatpush.msra.mxu0 %v1456
    %1470 = vmatpush.msra.mxu0 %v1455
    %1471 = vmatpush.msra.mxu0 %v1454
    %1472 = vmatpush.msra.mxu0 %v1453
    %1473 = vmatpush.msra.mxu0 %v1452
    %1474 = vmatpush.msra.mxu0 %v1451
    %1475 = vmatpush.msra.mxu0 %v1450
    %1476 = vmatpush.msra.mxu0 %v1449
    %1477 = vmatpush.msra.mxu0 %v1448
    %1478 = vmatpush.msra.mxu0 %v1447
    %1479 = vmatpush.msra.mxu0 %v1446
    %1480 = vmatpush.msra.mxu0 %v1445
    %1481 = vmatmul.f32.gmra.mxu0 %v1379
    %v1482 = vpop.f32.mrf.mxu0
    %v1483 = vadd.f32 0.0, %v1482
    %1484 = vdwg.mxu0
    %1485 = vmatpush.msra.mxu0 0.0
    %1486 = vmatpush.msra.mxu0 0.0
    %1487 = vmatpush.msra.mxu0 0.0
    %1488 = vmatpush.msra.mxu0 0.0
    %1489 = vmatpush.msra.mxu0 0.0
    %1490 = vmatpush.msra.mxu0 0.0
    %1491 = vmatpush.msra.mxu0 0.0
    %1492 = vmatpush.msra.mxu0 0.0
    %1493 = vmatpush.msra.mxu0 0.0
    %1494 = vmatpush.msra.mxu0 0.0
    %1495 = vmatpush.msra.mxu0 0.0
    %1496 = vmatpush.msra.mxu0 0.0
    %1497 = vmatpush.msra.mxu0 %v1464
    %1498 = vmatpush.msra.mxu0 %v1463
    %1499 = vmatpush.msra.mxu0 %v1462
    %1500 = vmatpush.msra.mxu0 %v1461
    %1501 = vmatmul.f32.gmra.mxu0 %v1403
    %v1502 = vpop.f32.mrf.mxu0
    %v1503 = vadd.f32 %v1483, %v1502
    %1504 = vdwg.mxu0
    %v1505 = vmax.f32 %v1443, %v1503
    %v1506 = vld [vmem:[%s8] sm:$0x1]
    %v1508 = vperm.slane %v1506, 0
    %v1510 = vadd.f32 %v1505, %v1508
    %v1511 = vmax.f32 %v1510, 0.0
    %vm1512 = vcmask 651264
    %1513 = vst.msk [vmem:[#allocation3] sm:$0x1f] %vm1512, %v1511
    %v1514 = vld [vmem:[#allocation3] sm:$0x1]
    %v1515 = vld [vmem:[%s13] sm:$0xff]
    %v1516 = vld [vmem:[%s13 + $0x8] sm:$0xff]
    %v1517 = vld [vmem:[%s13 + $0x10] sm:$0xff]
    %v1518 = vld [vmem:[%s13 + $0x18] sm:$0xff]
    %v1519 = vld [vmem:[%s13 + $0x20] sm:$0xff]
    %v1520 = vld [vmem:[%s13 + $0x28] sm:$0xff]
    %v1521 = vld [vmem:[%s13 + $0x30] sm:$0xff]
    %v1522 = vld [vmem:[%s13 + $0x38] sm:$0xff]
    %v1523 = vld [vmem:[%s13 + $0x40] sm:$0xff]
    %v1524 = vld [vmem:[%s13 + $0x48] sm:$0xff]
    %v1525 = vld [vmem:[#allocation3 + $0x1] sm:$0x1]
    %s1526 = scalar_lea.vmem %s13, 80
    %v1527 = vld [vmem:[%s1526] sm:$0xff]
    %v1528 = vld [vmem:[%s1526 + $0x8] sm:$0xff]
    %v1529 = vld [vmem:[%s1526 + $0x10] sm:$0xff]
    %v1530 = vld [vmem:[%s1526 + $0x18] sm:$0xff]
    %v1531 = vld [vmem:[%s1526 + $0x20] sm:$0xff]
    %v1532 = vld [vmem:[%s1526 + $0x28] sm:$0xff]
    %v1533 = vld [vmem:[%s1526 + $0x30] sm:$0xff]
    %v1534 = vld [vmem:[%s1526 + $0x38] sm:$0xff]
    %v1535 = vld [vmem:[%s1526 + $0x40] sm:$0xff]
    %v1536 = vld [vmem:[%s1526 + $0x48] sm:$0xff]
    %vm1537 = vcmask 654336
    %v1539 = vsel %vm1537, %v1525, 0
    %1541 = vmatpush.msra.mxu0 0.0
    %1542 = vmatpush.msra.mxu0 0.0
    %1543 = vmatpush.msra.mxu0 0.0
    %1544 = vmatpush.msra.mxu0 0.0
    %1545 = vmatpush.msra.mxu0 0.0
    %1546 = vmatpush.msra.mxu0 0.0
    %1547 = vmatpush.msra.mxu0 %v1536
    %1548 = vmatpush.msra.mxu0 %v1535
    %1549 = vmatpush.msra.mxu0 %v1534
    %1550 = vmatpush.msra.mxu0 %v1533
    %1551 = vmatpush.msra.mxu0 %v1532
    %1552 = vmatpush.msra.mxu0 %v1531
    %1553 = vmatpush.msra.mxu0 %v1530
    %1554 = vmatpush.msra.mxu0 %v1529
    %1555 = vmatpush.msra.mxu0 %v1528
    %1556 = vmatpush.msra.mxu0 %v1527
    %1557 = vmatmul.f32.gmra.mxu0 %v1539
    %v1558 = vpop.f32.mrf.mxu0
    %v1559 = vadd.f32 0.0, %v1558
    %1560 = vdwg.mxu0
    %v1562 = vsel %vm1537, %v1514, 0
    %1564 = vmatpush.msra.mxu0 0.0
    %1565 = vmatpush.msra.mxu0 0.0
    %1566 = vmatpush.msra.mxu0 0.0
    %1567 = vmatpush.msra.mxu0 0.0
    %1568 = vmatpush.msra.mxu0 0.0
    %1569 = vmatpush.msra.mxu0 0.0
    %1570 = vmatpush.msra.mxu0 %v1524
    %1571 = vmatpush.msra.mxu0 %v1523
    %1572 = vmatpush.msra.mxu0 %v1522
    %1573 = vmatpush.msra.mxu0 %v1521
    %1574 = vmatpush.msra.mxu0 %v1520
    %1575 = vmatpush.msra.mxu0 %v1519
    %1576 = vmatpush.msra.mxu0 %v1518
    %1577 = vmatpush.msra.mxu0 %v1517
    %1578 = vmatpush.msra.mxu0 %v1516
    %1579 = vmatpush.msra.mxu0 %v1515
    %1580 = vmatmul.f32.gmra.mxu0 %v1562
    %v1581 = vpop.f32.mrf.mxu0
    %v1582 = vadd.f32 %v1559, %v1581
    %1583 = vdwg.mxu0
    %v1584 = vld [vmem:[#allocation3 + $0x2] sm:$0x1]
    %s1585 = scalar_lea.vmem %s13, 160
    %v1586 = vld [vmem:[%s1585] sm:$0xff]
    %v1587 = vld [vmem:[%s1585 + $0x8] sm:$0xff]
    %v1588 = vld [vmem:[%s1585 + $0x10] sm:$0xff]
    %v1589 = vld [vmem:[%s1585 + $0x18] sm:$0xff]
    %v1590 = vld [vmem:[%s1585 + $0x20] sm:$0xff]
    %v1591 = vld [vmem:[%s1585 + $0x28] sm:$0xff]
    %v1592 = vld [vmem:[%s1585 + $0x30] sm:$0xff]
    %v1593 = vld [vmem:[%s1585 + $0x38] sm:$0xff]
    %v1594 = vld [vmem:[%s1585 + $0x40] sm:$0xff]
    %v1595 = vld [vmem:[%s1585 + $0x48] sm:$0xff]
    %v1597 = vsel %vm1537, %v1584, 0
    %1599 = vmatpush.msra.mxu0 0.0
    %1600 = vmatpush.msra.mxu0 0.0
    %1601 = vmatpush.msra.mxu0 0.0
    %1602 = vmatpush.msra.mxu0 0.0
    %1603 = vmatpush.msra.mxu0 0.0
    %1604 = vmatpush.msra.mxu0 0.0
    %1605 = vmatpush.msra.mxu0 %v1595
    %1606 = vmatpush.msra.mxu0 %v1594
    %1607 = vmatpush.msra.mxu0 %v1593
    %1608 = vmatpush.msra.mxu0 %v1592
    %1609 = vmatpush.msra.mxu0 %v1591
    %1610 = vmatpush.msra.mxu0 %v1590
    %1611 = vmatpush.msra.mxu0 %v1589
    %1612 = vmatpush.msra.mxu0 %v1588
    %1613 = vmatpush.msra.mxu0 %v1587
    %1614 = vmatpush.msra.mxu0 %v1586
    %1615 = vmatmul.f32.gmra.mxu0 %v1597
    %v1616 = vpop.f32.mrf.mxu0
    %v1617 = vadd.f32 0.0, %v1616
    %1618 = vdwg.mxu0
    %v1619 = vadd.f32 %v1582, %v1617
    %v1620 = vld [vmem:[#allocation3 + $0x3] sm:$0x1]
    %s1621 = scalar_lea.vmem %s13, 240
    %v1622 = vld [vmem:[%s1621] sm:$0xff]
    %v1623 = vld [vmem:[%s1621 + $0x8] sm:$0xff]
    %v1624 = vld [vmem:[%s1621 + $0x10] sm:$0xff]
    %v1625 = vld [vmem:[%s1621 + $0x18] sm:$0xff]
    %v1626 = vld [vmem:[%s1621 + $0x20] sm:$0xff]
    %v1627 = vld [vmem:[%s1621 + $0x28] sm:$0xff]
    %v1628 = vld [vmem:[%s1621 + $0x30] sm:$0xff]
    %v1629 = vld [vmem:[%s1621 + $0x38] sm:$0xff]
    %v1630 = vld [vmem:[%s1621 + $0x40] sm:$0xff]
    %v1631 = vld [vmem:[%s1621 + $0x48] sm:$0xff]
    %v1633 = vsel %vm1537, %v1620, 0
    %1635 = vmatpush.msra.mxu0 0.0
    %1636 = vmatpush.msra.mxu0 0.0
    %1637 = vmatpush.msra.mxu0 0.0
    %1638 = vmatpush.msra.mxu0 0.0
    %1639 = vmatpush.msra.mxu0 0.0
    %1640 = vmatpush.msra.mxu0 0.0
    %1641 = vmatpush.msra.mxu0 %v1631
    %1642 = vmatpush.msra.mxu0 %v1630
    %1643 = vmatpush.msra.mxu0 %v1629
    %1644 = vmatpush.msra.mxu0 %v1628
    %1645 = vmatpush.msra.mxu0 %v1627
    %1646 = vmatpush.msra.mxu0 %v1626
    %1647 = vmatpush.msra.mxu0 %v1625
    %1648 = vmatpush.msra.mxu0 %v1624
    %1649 = vmatpush.msra.mxu0 %v1623
    %1650 = vmatpush.msra.mxu0 %v1622
    %1651 = vmatmul.f32.gmra.mxu0 %v1633
    %v1652 = vpop.f32.mrf.mxu0
    %v1653 = vadd.f32 0.0, %v1652
    %1654 = vdwg.mxu0
    %v1655 = vadd.f32 %v1619, %v1653
    %v1656 = vld [vmem:[#allocation3 + $0x4] sm:$0x1]
    %s1657 = scalar_lea.vmem %s13, 320
    %v1658 = vld [vmem:[%s1657] sm:$0xff]
    %v1659 = vld [vmem:[%s1657 + $0x8] sm:$0xff]
    %v1660 = vld [vmem:[%s1657 + $0x10] sm:$0xff]
    %v1661 = vld [vmem:[%s1657 + $0x18] sm:$0xff]
    %v1662 = vld [vmem:[%s1657 + $0x20] sm:$0xff]
    %v1663 = vld [vmem:[%s1657 + $0x28] sm:$0xff]
    %v1664 = vld [vmem:[%s1657 + $0x30] sm:$0xff]
    %v1665 = vld [vmem:[%s1657 + $0x38] sm:$0xff]
    %v1666 = vld [vmem:[%s1657 + $0x40] sm:$0xff]
    %v1667 = vld [vmem:[%s1657 + $0x48] sm:$0xff]
    %v1669 = vsel %vm1537, %v1656, 0
    %1671 = vmatpush.msra.mxu0 0.0
    %1672 = vmatpush.msra.mxu0 0.0
    %1673 = vmatpush.msra.mxu0 0.0
    %1674 = vmatpush.msra.mxu0 0.0
    %1675 = vmatpush.msra.mxu0 0.0
    %1676 = vmatpush.msra.mxu0 0.0
    %1677 = vmatpush.msra.mxu0 %v1667
    %1678 = vmatpush.msra.mxu0 %v1666
    %1679 = vmatpush.msra.mxu0 %v1665
    %1680 = vmatpush.msra.mxu0 %v1664
    %1681 = vmatpush.msra.mxu0 %v1663
    %1682 = vmatpush.msra.mxu0 %v1662
    %1683 = vmatpush.msra.mxu0 %v1661
    %1684 = vmatpush.msra.mxu0 %v1660
    %1685 = vmatpush.msra.mxu0 %v1659
    %1686 = vmatpush.msra.mxu0 %v1658
    %1687 = vmatmul.f32.gmra.mxu0 %v1669
    %v1688 = vpop.f32.mrf.mxu0
    %v1689 = vadd.f32 0.0, %v1688
    %1690 = vdwg.mxu0
    %v1691 = vadd.f32 %v1655, %v1689
    %v1692 = vld [vmem:[%s14] sm:$0x1]
    %v1693 = vadd.f32 %v1691, %v1692
    %v1694 = vmax.f32 %v1693, 0.0
    %v1695 = vld [vmem:[%s15] sm:$0xff]
    %v1696 = vld [vmem:[%s15 + $0x8] sm:$0xff]
    %v1697 = vld [vmem:[%s15 + $0x10] sm:$0xff]
    %v1698 = vld [vmem:[%s15 + $0x18] sm:$0xff]
    %v1699 = vld [vmem:[%s15 + $0x20] sm:$0xff]
    %v1700 = vld [vmem:[%s15 + $0x28] sm:$0xff]
    %v1701 = vld [vmem:[%s15 + $0x30] sm:$0xff]
    %v1702 = vld [vmem:[%s15 + $0x38] sm:$0xff]
    %v1703 = vld [vmem:[%s15 + $0x40] sm:$0xff]
    %v1704 = vld [vmem:[%s15 + $0x48] sm:$0xff]
    %v1705 = vld [vmem:[%s15 + $0x50] sm:$0xff]
    %v1706 = vld [vmem:[%s15 + $0x58] sm:$0xff]
    %v1707 = vld [vmem:[%s15 + $0x60] sm:$0xff]
    %v1708 = vld [vmem:[%s15 + $0x68] sm:$0xff]
    %v1709 = vld [vmem:[%s15 + $0x70] sm:$0xff]
    %v1710 = vld [vmem:[%s16] sm:$0x1]
    %vm1711 = vcmask 982016
    %v1713 = vsel %vm1711, %v1694, 0
    %1715 = vmatpush.msra.mxu0 0.0
    %1716 = vmatpush.msra.mxu0 %v1709
    %1717 = vmatpush.msra.mxu0 %v1708
    %1718 = vmatpush.msra.mxu0 %v1707
    %1719 = vmatpush.msra.mxu0 %v1706
    %1720 = vmatpush.msra.mxu0 %v1705
    %1721 = vmatpush.msra.mxu0 %v1704
    %1722 = vmatpush.msra.mxu0 %v1703
    %1723 = vmatpush.msra.mxu0 %v1702
    %1724 = vmatpush.msra.mxu0 %v1701
    %1725 = vmatpush.msra.mxu0 %v1700
    %1726 = vmatpush.msra.mxu0 %v1699
    %1727 = vmatpush.msra.mxu0 %v1698
    %1728 = vmatpush.msra.mxu0 %v1697
    %1729 = vmatpush.msra.mxu0 %v1696
    %1730 = vmatpush.msra.mxu0 %v1695
    %1731 = vmatmul.f32.gmra.mxu0 %v1713
    %v1732 = vpop.f32.mrf.mxu0
    %v1733 = vadd.f32 %v1710, %v1732
    %1734 = vdwg.mxu0
    %v1735 = vmax.f32 %v1733, 0.0
    %v1736 = vld [vmem:[%s17] sm:$0xff]
    %v1737 = vld [vmem:[%s17 + $0x8] sm:$0xff]
    %v1738 = vld [vmem:[%s17 + $0x10] sm:$0xff]
    %v1739 = vld [vmem:[%s17 + $0x18] sm:$0xff]
    %v1740 = vld [vmem:[%s17 + $0x20] sm:$0xff]
    %v1741 = vld [vmem:[%s17 + $0x28] sm:$0xff]
    %v1742 = vld [vmem:[%s17 + $0x30] sm:$0xff]
    %v1743 = vld [vmem:[%s17 + $0x38] sm:$0xff]
    %v1744 = vld [vmem:[%s17 + $0x40] sm:$0xff]
    %v1745 = vld [vmem:[%s17 + $0x48] sm:$0xff]
    %v1746 = vld [vmem:[%s17 + $0x50] sm:$0xf]
    %v1747 = vld [vmem:[%s18] sm:$0x1]
    %v1749 = vsel %vm853, %v1735, 0
    %v1752 = vsel %vm591, %v1746, 0
    %1754 = vmatpush.msra.mxu0 0.0
    %1755 = vmatpush.msra.mxu0 0.0
    %1756 = vmatpush.msra.mxu0 0.0
    %1757 = vmatpush.msra.mxu0 0.0
    %1758 = vmatpush.msra.mxu0 0.0
    %1759 = vmatpush.msra.mxu0 %v1752
    %1760 = vmatpush.msra.mxu0 %v1745
    %1761 = vmatpush.msra.mxu0 %v1744
    %1762 = vmatpush.msra.mxu0 %v1743
    %1763 = vmatpush.msra.mxu0 %v1742
    %1764 = vmatpush.msra.mxu0 %v1741
    %1765 = vmatpush.msra.mxu0 %v1740
    %1766 = vmatpush.msra.mxu0 %v1739
    %1767 = vmatpush.msra.mxu0 %v1738
    %1768 = vmatpush.msra.mxu0 %v1737
    %1769 = vmatpush.msra.mxu0 %v1736
    %1770 = vmatmul.f32.gmra.mxu0 %v1749
    %v1771 = vpop.f32.mrf.mxu0
    %v1772 = vadd.f32 %v1747, %v1771
    %1773 = vdwg.mxu0
    %vm1774 = vcmask 73728
    %1775 = vst.msk [vmem:[#allocation4] sm:$0x1] %vm1774, %v1772
    %s1776 = scalar_lea.vmem %s0, 32
    %v1777 = vld [vmem:[%s1776] sm:$0xff]
    %v1778 = vld [vmem:[%s1776 + $0x8] sm:$0xff]
    %v1779 = vld [vmem:[%s1776 + $0x10] sm:$0xff]
    %v1780 = vld [vmem:[%s1776 + $0x18] sm:$0xf]
    %v1781 = vld [vmem:[%s1] sm:$0xff]
    %v1782 = vld [vmem:[%s1 + $0x8] sm:$0xff]
    %v1783 = vld [vmem:[%s1 + $0x10] sm:$0xff]
    %v1784 = vld [vmem:[%s1 + $0x18] sm:$0xff]
    %v1785 = vld [vmem:[%s1 + $0x20] sm:$0xff]
    %v1786 = vld [vmem:[%s1 + $0x28] sm:$0xff]
    %v1787 = vld [vmem:[%s1 + $0x30] sm:$0xff]
    %v1788 = vld [vmem:[%s1 + $0x38] sm:$0xff]
    %v1789 = vld [vmem:[%s1 + $0x40] sm:$0xff]
    %v1790 = vld [vmem:[%s1 + $0x48] sm:$0xff]
    %v1791 = vld [vmem:[%s1 + $0x50] sm:$0xff]
    %v1792 = vld [vmem:[%s1 + $0x58] sm:$0xff]
    %v1793 = vld [vmem:[%s1 + $0x60] sm:$0xff]
    %v1794 = vld [vmem:[%s1 + $0x68] sm:$0xff]
    %v1795 = vld [vmem:[%s1 + $0x70] sm:$0xff]
    %v1796 = vld [vmem:[%s1 + $0x78] sm:$0xff]
    %v1797 = vld [vmem:[%s1 + $0x80] sm:$0xff]
    %v1798 = vld [vmem:[%s1 + $0x88] sm:$0xff]
    %v1799 = vld [vmem:[%s1 + $0x90] sm:$0xff]
    %v1800 = vld [vmem:[%s1 + $0x98] sm:$0xff]
    %v1801 = vld [vmem:[%s1 + $0xa0] sm:$0xff]
    %v1802 = vld [vmem:[%s1 + $0xa8] sm:$0xff]
    %v1803 = vld [vmem:[%s1 + $0xb0] sm:$0xff]
    %v1804 = vld [vmem:[%s1 + $0xb8] sm:$0xff]
    %v1805 = vld [vmem:[%s1776 + $0x1] sm:$0xff]
    %v1806 = vld [vmem:[%s1776 + $0x9] sm:$0xff]
    %v1807 = vld [vmem:[%s1776 + $0x11] sm:$0xff]
    %v1808 = vld [vmem:[%s1776 + $0x19] sm:$0xf]
    %v1809 = vld [vmem:[%s95] sm:$0xff]
    %v1810 = vld [vmem:[%s95 + $0x8] sm:$0xff]
    %v1811 = vld [vmem:[%s95 + $0x10] sm:$0xff]
    %v1812 = vld [vmem:[%s95 + $0x18] sm:$0xff]
    %v1813 = vld [vmem:[%s95 + $0x20] sm:$0xff]
    %v1814 = vld [vmem:[%s95 + $0x28] sm:$0xff]
    %v1815 = vld [vmem:[%s95 + $0x30] sm:$0xff]
    %v1816 = vld [vmem:[%s95 + $0x38] sm:$0xff]
    %v1817 = vld [vmem:[%s95 + $0x40] sm:$0xff]
    %v1818 = vld [vmem:[%s95 + $0x48] sm:$0xff]
    %v1819 = vld [vmem:[%s95 + $0x50] sm:$0xff]
    %v1820 = vld [vmem:[%s95 + $0x58] sm:$0xff]
    %v1821 = vld [vmem:[%s95 + $0x60] sm:$0xff]
    %v1822 = vld [vmem:[%s95 + $0x68] sm:$0xff]
    %v1823 = vld [vmem:[%s95 + $0x70] sm:$0xff]
    %v1824 = vld [vmem:[%s95 + $0x78] sm:$0xff]
    %v1825 = vld [vmem:[%s95 + $0x80] sm:$0xff]
    %v1826 = vld [vmem:[%s95 + $0x88] sm:$0xff]
    %v1827 = vld [vmem:[%s95 + $0x90] sm:$0xff]
    %v1828 = vld [vmem:[%s95 + $0x98] sm:$0xff]
    %v1829 = vld [vmem:[%s95 + $0xa0] sm:$0xff]
    %v1830 = vld [vmem:[%s95 + $0xa8] sm:$0xff]
    %v1831 = vld [vmem:[%s95 + $0xb0] sm:$0xff]
    %v1832 = vld [vmem:[%s95 + $0xb8] sm:$0xff]
    %v1834 = vsel %vm120, %v1805, 0
    %v1837 = vsel %vm120, %v1806, 0
    %v1840 = vsel %vm120, %v1807, 0
    %v1843 = vsel %vm120, %v1808, 0
    %1845 = vmatpush.msra.mxu0 0.0
    %1846 = vmatpush.msra.mxu0 0.0
    %1847 = vmatpush.msra.mxu0 0.0
    %1848 = vmatpush.msra.mxu0 0.0
    %1849 = vmatpush.msra.mxu0 %v1831
    %1850 = vmatpush.msra.mxu0 %v1829
    %1851 = vmatpush.msra.mxu0 %v1827
    %1852 = vmatpush.msra.mxu0 %v1825
    %1853 = vmatpush.msra.mxu0 %v1823
    %1854 = vmatpush.msra.mxu0 %v1821
    %1855 = vmatpush.msra.mxu0 %v1819
    %1856 = vmatpush.msra.mxu0 %v1817
    %1857 = vmatpush.msra.mxu0 %v1815
    %1858 = vmatpush.msra.mxu0 %v1813
    %1859 = vmatpush.msra.mxu0 %v1811
    %1860 = vmatpush.msra.mxu0 %v1809
    %1861 = vmatmul.f32.gmra.mxu0 %v1834
    %v1862 = vpop.f32.mrf.mxu0
    %v1863 = vadd.f32 0.0, %v1862
    %1864 = vmatmul.f32.gmra.mxu0 %v1837
    %v1865 = vpop.f32.mrf.mxu0
    %v1866 = vadd.f32 0.0, %v1865
    %1867 = vmatmul.f32.gmra.mxu0 %v1840
    %v1868 = vpop.f32.mrf.mxu0
    %v1869 = vadd.f32 0.0, %v1868
    %1870 = vmatmul.f32.gmra.mxu0 %v1843
    %v1871 = vpop.f32.mrf.mxu0
    %v1872 = vadd.f32 0.0, %v1871
    %1873 = vdwg.mxu0
    %1874 = vmatpush.msra.mxu0 0.0
    %1875 = vmatpush.msra.mxu0 0.0
    %1876 = vmatpush.msra.mxu0 0.0
    %1877 = vmatpush.msra.mxu0 0.0
    %1878 = vmatpush.msra.mxu0 %v1832
    %1879 = vmatpush.msra.mxu0 %v1830
    %1880 = vmatpush.msra.mxu0 %v1828
    %1881 = vmatpush.msra.mxu0 %v1826
    %1882 = vmatpush.msra.mxu0 %v1824
    %1883 = vmatpush.msra.mxu0 %v1822
    %1884 = vmatpush.msra.mxu0 %v1820
    %1885 = vmatpush.msra.mxu0 %v1818
    %1886 = vmatpush.msra.mxu0 %v1816
    %1887 = vmatpush.msra.mxu0 %v1814
    %1888 = vmatpush.msra.mxu0 %v1812
    %1889 = vmatpush.msra.mxu0 %v1810
    %1890 = vmatmul.f32.gmra.mxu0 %v1834
    %v1891 = vpop.f32.mrf.mxu0
    %v1892 = vadd.f32 0.0, %v1891
    %1893 = vmatmul.f32.gmra.mxu0 %v1837
    %v1894 = vpop.f32.mrf.mxu0
    %v1895 = vadd.f32 0.0, %v1894
    %1896 = vmatmul.f32.gmra.mxu0 %v1840
    %v1897 = vpop.f32.mrf.mxu0
    %v1898 = vadd.f32 0.0, %v1897
    %1899 = vmatmul.f32.gmra.mxu0 %v1843
    %v1900 = vpop.f32.mrf.mxu0
    %v1901 = vadd.f32 0.0, %v1900
    %1902 = vdwg.mxu0
    %v1904 = vsel %vm120, %v1777, 0
    %v1907 = vsel %vm120, %v1778, 0
    %v1910 = vsel %vm120, %v1779, 0
    %v1913 = vsel %vm120, %v1780, 0
    %1915 = vmatpush.msra.mxu0 0.0
    %1916 = vmatpush.msra.mxu0 0.0
    %1917 = vmatpush.msra.mxu0 0.0
    %1918 = vmatpush.msra.mxu0 0.0
    %1919 = vmatpush.msra.mxu0 %v1803
    %1920 = vmatpush.msra.mxu0 %v1801
    %1921 = vmatpush.msra.mxu0 %v1799
    %1922 = vmatpush.msra.mxu0 %v1797
    %1923 = vmatpush.msra.mxu0 %v1795
    %1924 = vmatpush.msra.mxu0 %v1793
    %1925 = vmatpush.msra.mxu0 %v1791
    %1926 = vmatpush.msra.mxu0 %v1789
    %1927 = vmatpush.msra.mxu0 %v1787
    %1928 = vmatpush.msra.mxu0 %v1785
    %1929 = vmatpush.msra.mxu0 %v1783
    %1930 = vmatpush.msra.mxu0 %v1781
    %1931 = vmatmul.f32.gmra.mxu0 %v1904
    %v1932 = vpop.f32.mrf.mxu0
    %v1933 = vadd.f32 %v1863, %v1932
    %1934 = vmatmul.f32.gmra.mxu0 %v1907
    %v1935 = vpop.f32.mrf.mxu0
    %v1936 = vadd.f32 %v1866, %v1935
    %1937 = vmatmul.f32.gmra.mxu0 %v1910
    %v1938 = vpop.f32.mrf.mxu0
    %v1939 = vadd.f32 %v1869, %v1938
    %1940 = vmatmul.f32.gmra.mxu0 %v1913
    %v1941 = vpop.f32.mrf.mxu0
    %v1942 = vadd.f32 %v1872, %v1941
    %1943 = vdwg.mxu0
    %1944 = vmatpush.msra.mxu0 0.0
    %1945 = vmatpush.msra.mxu0 0.0
    %1946 = vmatpush.msra.mxu0 0.0
    %1947 = vmatpush.msra.mxu0 0.0
    %1948 = vmatpush.msra.mxu0 %v1804
    %1949 = vmatpush.msra.mxu0 %v1802
    %1950 = vmatpush.msra.mxu0 %v1800
    %1951 = vmatpush.msra.mxu0 %v1798
    %1952 = vmatpush.msra.mxu0 %v1796
    %1953 = vmatpush.msra.mxu0 %v1794
    %1954 = vmatpush.msra.mxu0 %v1792
    %1955 = vmatpush.msra.mxu0 %v1790
    %1956 = vmatpush.msra.mxu0 %v1788
    %1957 = vmatpush.msra.mxu0 %v1786
    %1958 = vmatpush.msra.mxu0 %v1784
    %1959 = vmatpush.msra.mxu0 %v1782
    %1960 = vmatmul.f32.gmra.mxu0 %v1904
    %v1961 = vpop.f32.mrf.mxu0
    %v1962 = vadd.f32 %v1892, %v1961
    %1963 = vmatmul.f32.gmra.mxu0 %v1907
    %v1964 = vpop.f32.mrf.mxu0
    %v1965 = vadd.f32 %v1895, %v1964
    %1966 = vmatmul.f32.gmra.mxu0 %v1910
    %v1967 = vpop.f32.mrf.mxu0
    %v1968 = vadd.f32 %v1898, %v1967
    %1969 = vmatmul.f32.gmra.mxu0 %v1913
    %v1970 = vpop.f32.mrf.mxu0
    %v1971 = vadd.f32 %v1901, %v1970
    %1972 = vdwg.mxu0
    %v1973 = vld [vmem:[%s1776 + $0x2] sm:$0xff]
    %v1974 = vld [vmem:[%s1776 + $0xa] sm:$0xff]
    %v1975 = vld [vmem:[%s1776 + $0x12] sm:$0xff]
    %v1976 = vld [vmem:[%s1776 + $0x1a] sm:$0xf]
    %v1977 = vld [vmem:[%s265] sm:$0xff]
    %v1978 = vld [vmem:[%s265 + $0x8] sm:$0xff]
    %v1979 = vld [vmem:[%s265 + $0x10] sm:$0xff]
    %v1980 = vld [vmem:[%s265 + $0x18] sm:$0xff]
    %v1981 = vld [vmem:[%s265 + $0x20] sm:$0xff]
    %v1982 = vld [vmem:[%s265 + $0x28] sm:$0xff]
    %v1983 = vld [vmem:[%s265 + $0x30] sm:$0xff]
    %v1984 = vld [vmem:[%s265 + $0x38] sm:$0xff]
    %v1985 = vld [vmem:[%s265 + $0x40] sm:$0xff]
    %v1986 = vld [vmem:[%s265 + $0x48] sm:$0xff]
    %v1987 = vld [vmem:[%s265 + $0x50] sm:$0xff]
    %v1988 = vld [vmem:[%s265 + $0x58] sm:$0xff]
    %v1989 = vld [vmem:[%s265 + $0x60] sm:$0xff]
    %v1990 = vld [vmem:[%s265 + $0x68] sm:$0xff]
    %v1991 = vld [vmem:[%s265 + $0x70] sm:$0xff]
    %v1992 = vld [vmem:[%s265 + $0x78] sm:$0xff]
    %v1993 = vld [vmem:[%s265 + $0x80] sm:$0xff]
    %v1994 = vld [vmem:[%s265 + $0x88] sm:$0xff]
    %v1995 = vld [vmem:[%s265 + $0x90] sm:$0xff]
    %v1996 = vld [vmem:[%s265 + $0x98] sm:$0xff]
    %v1997 = vld [vmem:[%s265 + $0xa0] sm:$0xff]
    %v1998 = vld [vmem:[%s265 + $0xa8] sm:$0xff]
    %v1999 = vld [vmem:[%s265 + $0xb0] sm:$0xff]
    %v2000 = vld [vmem:[%s265 + $0xb8] sm:$0xff]
    %v2002 = vsel %vm120, %v1973, 0
    %v2005 = vsel %vm120, %v1974, 0
    %v2008 = vsel %vm120, %v1975, 0
    %v2011 = vsel %vm120, %v1976, 0
    %2013 = vmatpush.msra.mxu0 0.0
    %2014 = vmatpush.msra.mxu0 0.0
    %2015 = vmatpush.msra.mxu0 0.0
    %2016 = vmatpush.msra.mxu0 0.0
    %2017 = vmatpush.msra.mxu0 %v1999
    %2018 = vmatpush.msra.mxu0 %v1997
    %2019 = vmatpush.msra.mxu0 %v1995
    %2020 = vmatpush.msra.mxu0 %v1993
    %2021 = vmatpush.msra.mxu0 %v1991
    %2022 = vmatpush.msra.mxu0 %v1989
    %2023 = vmatpush.msra.mxu0 %v1987
    %2024 = vmatpush.msra.mxu0 %v1985
    %2025 = vmatpush.msra.mxu0 %v1983
    %2026 = vmatpush.msra.mxu0 %v1981
    %2027 = vmatpush.msra.mxu0 %v1979
    %2028 = vmatpush.msra.mxu0 %v1977
    %2029 = vmatmul.f32.gmra.mxu0 %v2002
    %v2030 = vpop.f32.mrf.mxu0
    %v2031 = vadd.f32 0.0, %v2030
    %2032 = vmatmul.f32.gmra.mxu0 %v2005
    %v2033 = vpop.f32.mrf.mxu0
    %v2034 = vadd.f32 0.0, %v2033
    %2035 = vmatmul.f32.gmra.mxu0 %v2008
    %v2036 = vpop.f32.mrf.mxu0
    %v2037 = vadd.f32 0.0, %v2036
    %2038 = vmatmul.f32.gmra.mxu0 %v2011
    %v2039 = vpop.f32.mrf.mxu0
    %v2040 = vadd.f32 0.0, %v2039
    %2041 = vdwg.mxu0
    %2042 = vmatpush.msra.mxu0 0.0
    %2043 = vmatpush.msra.mxu0 0.0
    %2044 = vmatpush.msra.mxu0 0.0
    %2045 = vmatpush.msra.mxu0 0.0
    %2046 = vmatpush.msra.mxu0 %v2000
    %2047 = vmatpush.msra.mxu0 %v1998
    %2048 = vmatpush.msra.mxu0 %v1996
    %2049 = vmatpush.msra.mxu0 %v1994
    %2050 = vmatpush.msra.mxu0 %v1992
    %2051 = vmatpush.msra.mxu0 %v1990
    %2052 = vmatpush.msra.mxu0 %v1988
    %2053 = vmatpush.msra.mxu0 %v1986
    %2054 = vmatpush.msra.mxu0 %v1984
    %2055 = vmatpush.msra.mxu0 %v1982
    %2056 = vmatpush.msra.mxu0 %v1980
    %2057 = vmatpush.msra.mxu0 %v1978
    %2058 = vmatmul.f32.gmra.mxu0 %v2002
    %v2059 = vpop.f32.mrf.mxu0
    %v2060 = vadd.f32 0.0, %v2059
    %2061 = vmatmul.f32.gmra.mxu0 %v2005
    %v2062 = vpop.f32.mrf.mxu0
    %v2063 = vadd.f32 0.0, %v2062
    %2064 = vmatmul.f32.gmra.mxu0 %v2008
    %v2065 = vpop.f32.mrf.mxu0
    %v2066 = vadd.f32 0.0, %v2065
    %2067 = vmatmul.f32.gmra.mxu0 %v2011
    %v2068 = vpop.f32.mrf.mxu0
    %v2069 = vadd.f32 0.0, %v2068
    %2070 = vdwg.mxu0
    %v2071 = vadd.f32 %v1933, %v2031
    %v2072 = vadd.f32 %v1962, %v2060
    %v2073 = vadd.f32 %v1936, %v2034
    %v2074 = vadd.f32 %v1965, %v2063
    %v2075 = vadd.f32 %v1939, %v2037
    %v2076 = vadd.f32 %v1968, %v2066
    %v2077 = vadd.f32 %v1942, %v2040
    %v2078 = vadd.f32 %v1971, %v2069
    %v2079 = vld [vmem:[%s1776 + $0x3] sm:$0xff]
    %v2080 = vld [vmem:[%s1776 + $0xb] sm:$0xff]
    %v2081 = vld [vmem:[%s1776 + $0x13] sm:$0xff]
    %v2082 = vld [vmem:[%s1776 + $0x1b] sm:$0xf]
    %v2083 = vld [vmem:[%s372] sm:$0xff]
    %v2084 = vld [vmem:[%s372 + $0x8] sm:$0xff]
    %v2085 = vld [vmem:[%s372 + $0x10] sm:$0xff]
    %v2086 = vld [vmem:[%s372 + $0x18] sm:$0xff]
    %v2087 = vld [vmem:[%s372 + $0x20] sm:$0xff]
    %v2088 = vld [vmem:[%s372 + $0x28] sm:$0xff]
    %v2089 = vld [vmem:[%s372 + $0x30] sm:$0xff]
    %v2090 = vld [vmem:[%s372 + $0x38] sm:$0xff]
    %v2091 = vld [vmem:[%s372 + $0x40] sm:$0xff]
    %v2092 = vld [vmem:[%s372 + $0x48] sm:$0xff]
    %v2093 = vld [vmem:[%s372 + $0x50] sm:$0xff]
    %v2094 = vld [vmem:[%s372 + $0x58] sm:$0xff]
    %v2095 = vld [vmem:[%s372 + $0x60] sm:$0xff]
    %v2096 = vld [vmem:[%s372 + $0x68] sm:$0xff]
    %v2097 = vld [vmem:[%s372 + $0x70] sm:$0xff]
    %v2098 = vld [vmem:[%s372 + $0x78] sm:$0xff]
    %v2099 = vld [vmem:[%s372 + $0x80] sm:$0xff]
    %v2100 = vld [vmem:[%s372 + $0x88] sm:$0xff]
    %v2101 = vld [vmem:[%s372 + $0x90] sm:$0xff]
    %v2102 = vld [vmem:[%s372 + $0x98] sm:$0xff]
    %v2103 = vld [vmem:[%s372 + $0xa0] sm:$0xff]
    %v2104 = vld [vmem:[%s372 + $0xa8] sm:$0xff]
    %v2105 = vld [vmem:[%s372 + $0xb0] sm:$0xff]
    %v2106 = vld [vmem:[%s372 + $0xb8] sm:$0xff]
    %v2108 = vsel %vm120, %v2079, 0
    %v2111 = vsel %vm120, %v2080, 0
    %v2114 = vsel %vm120, %v2081, 0
    %v2117 = vsel %vm120, %v2082, 0
    %2119 = vmatpush.msra.mxu0 0.0
    %2120 = vmatpush.msra.mxu0 0.0
    %2121 = vmatpush.msra.mxu0 0.0
    %2122 = vmatpush.msra.mxu0 0.0
    %2123 = vmatpush.msra.mxu0 %v2105
    %2124 = vmatpush.msra.mxu0 %v2103
    %2125 = vmatpush.msra.mxu0 %v2101
    %2126 = vmatpush.msra.mxu0 %v2099
    %2127 = vmatpush.msra.mxu0 %v2097
    %2128 = vmatpush.msra.mxu0 %v2095
    %2129 = vmatpush.msra.mxu0 %v2093
    %2130 = vmatpush.msra.mxu0 %v2091
    %2131 = vmatpush.msra.mxu0 %v2089
    %2132 = vmatpush.msra.mxu0 %v2087
    %2133 = vmatpush.msra.mxu0 %v2085
    %2134 = vmatpush.msra.mxu0 %v2083
    %2135 = vmatmul.f32.gmra.mxu0 %v2108
    %v2136 = vpop.f32.mrf.mxu0
    %v2137 = vadd.f32 0.0, %v2136
    %2138 = vmatmul.f32.gmra.mxu0 %v2111
    %v2139 = vpop.f32.mrf.mxu0
    %v2140 = vadd.f32 0.0, %v2139
    %2141 = vmatmul.f32.gmra.mxu0 %v2114
    %v2142 = vpop.f32.mrf.mxu0
    %v2143 = vadd.f32 0.0, %v2142
    %2144 = vmatmul.f32.gmra.mxu0 %v2117
    %v2145 = vpop.f32.mrf.mxu0
    %v2146 = vadd.f32 0.0, %v2145
    %2147 = vdwg.mxu0
    %2148 = vmatpush.msra.mxu0 0.0
    %2149 = vmatpush.msra.mxu0 0.0
    %2150 = vmatpush.msra.mxu0 0.0
    %2151 = vmatpush.msra.mxu0 0.0
    %2152 = vmatpush.msra.mxu0 %v2106
    %2153 = vmatpush.msra.mxu0 %v2104
    %2154 = vmatpush.msra.mxu0 %v2102
    %2155 = vmatpush.msra.mxu0 %v2100
    %2156 = vmatpush.msra.mxu0 %v2098
    %2157 = vmatpush.msra.mxu0 %v2096
    %2158 = vmatpush.msra.mxu0 %v2094
    %2159 = vmatpush.msra.mxu0 %v2092
    %2160 = vmatpush.msra.mxu0 %v2090
    %2161 = vmatpush.msra.mxu0 %v2088
    %2162 = vmatpush.msra.mxu0 %v2086
    %2163 = vmatpush.msra.mxu0 %v2084
    %2164 = vmatmul.f32.gmra.mxu0 %v2108
    %v2165 = vpop.f32.mrf.mxu0
    %v2166 = vadd.f32 0.0, %v2165
    %2167 = vmatmul.f32.gmra.mxu0 %v2111
    %v2168 = vpop.f32.mrf.mxu0
    %v2169 = vadd.f32 0.0, %v2168
    %2170 = vmatmul.f32.gmra.mxu0 %v2114
    %v2171 = vpop.f32.mrf.mxu0
    %v2172 = vadd.f32 0.0, %v2171
    %2173 = vmatmul.f32.gmra.mxu0 %v2117
    %v2174 = vpop.f32.mrf.mxu0
    %v2175 = vadd.f32 0.0, %v2174
    %2176 = vdwg.mxu0
    %v2177 = vadd.f32 %v2071, %v2137
    %v2178 = vadd.f32 %v2072, %v2166
    %v2179 = vadd.f32 %v2073, %v2140
    %v2180 = vadd.f32 %v2074, %v2169
    %v2181 = vadd.f32 %v2075, %v2143
    %v2182 = vadd.f32 %v2076, %v2172
    %v2183 = vadd.f32 %v2077, %v2146
    %v2184 = vadd.f32 %v2078, %v2175
    %v2185 = vld [vmem:[%s1776 + $0x4] sm:$0xff]
    %v2186 = vld [vmem:[%s1776 + $0xc] sm:$0xff]
    %v2187 = vld [vmem:[%s1776 + $0x14] sm:$0xff]
    %v2188 = vld [vmem:[%s1776 + $0x1c] sm:$0xf]
    %v2189 = vld [vmem:[%s479] sm:$0xff]
    %v2190 = vld [vmem:[%s479 + $0x8] sm:$0xff]
    %v2191 = vld [vmem:[%s479 + $0x10] sm:$0xff]
    %v2192 = vld [vmem:[%s479 + $0x18] sm:$0xff]
    %v2193 = vld [vmem:[%s479 + $0x20] sm:$0xff]
    %v2194 = vld [vmem:[%s479 + $0x28] sm:$0xff]
    %v2195 = vld [vmem:[%s479 + $0x30] sm:$0xff]
    %v2196 = vld [vmem:[%s479 + $0x38] sm:$0xff]
    %v2197 = vld [vmem:[%s479 + $0x40] sm:$0xff]
    %v2198 = vld [vmem:[%s479 + $0x48] sm:$0xff]
    %v2199 = vld [vmem:[%s479 + $0x50] sm:$0xff]
    %v2200 = vld [vmem:[%s479 + $0x58] sm:$0xff]
    %v2201 = vld [vmem:[%s479 + $0x60] sm:$0xff]
    %v2202 = vld [vmem:[%s479 + $0x68] sm:$0xff]
    %v2203 = vld [vmem:[%s479 + $0x70] sm:$0xff]
    %v2204 = vld [vmem:[%s479 + $0x78] sm:$0xff]
    %v2205 = vld [vmem:[%s479 + $0x80] sm:$0xff]
    %v2206 = vld [vmem:[%s479 + $0x88] sm:$0xff]
    %v2207 = vld [vmem:[%s479 + $0x90] sm:$0xff]
    %v2208 = vld [vmem:[%s479 + $0x98] sm:$0xff]
    %v2209 = vld [vmem:[%s479 + $0xa0] sm:$0xff]
    %v2210 = vld [vmem:[%s479 + $0xa8] sm:$0xff]
    %v2211 = vld [vmem:[%s479 + $0xb0] sm:$0xff]
    %v2212 = vld [vmem:[%s479 + $0xb8] sm:$0xff]
    %v2214 = vsel %vm120, %v2185, 0
    %v2217 = vsel %vm120, %v2186, 0
    %v2220 = vsel %vm120, %v2187, 0
    %v2223 = vsel %vm120, %v2188, 0
    %2225 = vmatpush.msra.mxu0 0.0
    %2226 = vmatpush.msra.mxu0 0.0
    %2227 = vmatpush.msra.mxu0 0.0
    %2228 = vmatpush.msra.mxu0 0.0
    %2229 = vmatpush.msra.mxu0 %v2211
    %2230 = vmatpush.msra.mxu0 %v2209
    %2231 = vmatpush.msra.mxu0 %v2207
    %2232 = vmatpush.msra.mxu0 %v2205
    %2233 = vmatpush.msra.mxu0 %v2203
    %2234 = vmatpush.msra.mxu0 %v2201
    %2235 = vmatpush.msra.mxu0 %v2199
    %2236 = vmatpush.msra.mxu0 %v2197
    %2237 = vmatpush.msra.mxu0 %v2195
    %2238 = vmatpush.msra.mxu0 %v2193
    %2239 = vmatpush.msra.mxu0 %v2191
    %2240 = vmatpush.msra.mxu0 %v2189
    %2241 = vmatmul.f32.gmra.mxu0 %v2214
    %v2242 = vpop.f32.mrf.mxu0
    %v2243 = vadd.f32 0.0, %v2242
    %2244 = vmatmul.f32.gmra.mxu0 %v2217
    %v2245 = vpop.f32.mrf.mxu0
    %v2246 = vadd.f32 0.0, %v2245
    %2247 = vmatmul.f32.gmra.mxu0 %v2220
    %v2248 = vpop.f32.mrf.mxu0
    %v2249 = vadd.f32 0.0, %v2248
    %2250 = vmatmul.f32.gmra.mxu0 %v2223
    %v2251 = vpop.f32.mrf.mxu0
    %v2252 = vadd.f32 0.0, %v2251
    %2253 = vdwg.mxu0
    %2254 = vmatpush.msra.mxu0 0.0
    %2255 = vmatpush.msra.mxu0 0.0
    %2256 = vmatpush.msra.mxu0 0.0
    %2257 = vmatpush.msra.mxu0 0.0
    %2258 = vmatpush.msra.mxu0 %v2212
    %2259 = vmatpush.msra.mxu0 %v2210
    %2260 = vmatpush.msra.mxu0 %v2208
    %2261 = vmatpush.msra.mxu0 %v2206
    %2262 = vmatpush.msra.mxu0 %v2204
    %2263 = vmatpush.msra.mxu0 %v2202
    %2264 = vmatpush.msra.mxu0 %v2200
    %2265 = vmatpush.msra.mxu0 %v2198
    %2266 = vmatpush.msra.mxu0 %v2196
    %2267 = vmatpush.msra.mxu0 %v2194
    %2268 = vmatpush.msra.mxu0 %v2192
    %2269 = vmatpush.msra.mxu0 %v2190
    %2270 = vmatmul.f32.gmra.mxu0 %v2214
    %v2271 = vpop.f32.mrf.mxu0
    %v2272 = vadd.f32 0.0, %v2271
    %2273 = vmatmul.f32.gmra.mxu0 %v2217
    %v2274 = vpop.f32.mrf.mxu0
    %v2275 = vadd.f32 0.0, %v2274
    %2276 = vmatmul.f32.gmra.mxu0 %v2220
    %v2277 = vpop.f32.mrf.mxu0
    %v2278 = vadd.f32 0.0, %v2277
    %2279 = vmatmul.f32.gmra.mxu0 %v2223
    %v2280 = vpop.f32.mrf.mxu0
    %v2281 = vadd.f32 0.0, %v2280
    %2282 = vdwg.mxu0
    %v2283 = vadd.f32 %v2177, %v2243
    %v2284 = vadd.f32 %v2178, %v2272
    %v2285 = vadd.f32 %v2179, %v2246
    %v2286 = vadd.f32 %v2180, %v2275
    %v2287 = vadd.f32 %v2181, %v2249
    %v2288 = vadd.f32 %v2182, %v2278
    %v2289 = vadd.f32 %v2183, %v2252
    %v2290 = vadd.f32 %v2184, %v2281
    %v2291 = vld [vmem:[%s3] sm:$0xff]
    %v2292 = vld [vmem:[%s3 + $0x8] sm:$0x3f]
    %v2294 = vsel %vm584, %v2291, 0
    %v2297 = vsel %vm584, %v2292, 0
    %v2300 = vsel %vm591, %v2289, 0
    %v2303 = vsel %vm591, %v2290, 0
    %2305 = vmatpush.msra.mxu0 0.0
    %2306 = vmatpush.msra.mxu0 0.0
    %2307 = vmatpush.msra.mxu0 0.0
    %2308 = vmatpush.msra.mxu0 0.0
    %2309 = vmatpush.msra.mxu0 0.0
    %2310 = vmatpush.msra.mxu0 0.0
    %2311 = vmatpush.msra.mxu0 0.0
    %2312 = vmatpush.msra.mxu0 0.0
    %2313 = vmatpush.msra.mxu0 0.0
    %2314 = vmatpush.msra.mxu0 0.0
    %2315 = vmatpush.msra.mxu0 0.0
    %2316 = vmatpush.msra.mxu0 0.0
    %2317 = vmatpush.msra.mxu0 %v2300
    %2318 = vmatpush.msra.mxu0 %v2287
    %2319 = vmatpush.msra.mxu0 %v2285
    %2320 = vmatpush.msra.mxu0 %v2283
    %2321 = vmatmul.f32.gmra.mxu0 %v2294
    %v2322 = vpop.f32.mrf.mxu0
    %v2323 = vadd.f32 0.0, %v2322
    %2324 = vmatmul.f32.gmra.mxu0 %v2297
    %v2325 = vpop.f32.mrf.mxu0
    %v2326 = vadd.f32 0.0, %v2325
    %2327 = vdwg.mxu0
    %2328 = vmatpush.msra.mxu0 0.0
    %2329 = vmatpush.msra.mxu0 0.0
    %2330 = vmatpush.msra.mxu0 0.0
    %2331 = vmatpush.msra.mxu0 0.0
    %2332 = vmatpush.msra.mxu0 0.0
    %2333 = vmatpush.msra.mxu0 0.0
    %2334 = vmatpush.msra.mxu0 0.0
    %2335 = vmatpush.msra.mxu0 0.0
    %2336 = vmatpush.msra.mxu0 0.0
    %2337 = vmatpush.msra.mxu0 0.0
    %2338 = vmatpush.msra.mxu0 0.0
    %2339 = vmatpush.msra.mxu0 0.0
    %2340 = vmatpush.msra.mxu0 %v2303
    %2341 = vmatpush.msra.mxu0 %v2288
    %2342 = vmatpush.msra.mxu0 %v2286
    %2343 = vmatpush.msra.mxu0 %v2284
    %2344 = vmatmul.f32.gmra.mxu0 %v2294
    %v2345 = vpop.f32.mrf.mxu0
    %v2346 = vadd.f32 0.0, %v2345
    %2347 = vmatmul.f32.gmra.mxu0 %v2297
    %v2348 = vpop.f32.mrf.mxu0
    %v2349 = vadd.f32 0.0, %v2348
    %2350 = vdwg.mxu0
    %v2351 = vld [vmem:[%s4] sm:$0xff]
    %v2352 = vld [vmem:[%s4 + $0x8] sm:$0x3f]
    %v2354 = vsel %vm584, %v2351, 0
    %v2357 = vsel %vm584, %v2352, 0
    %2359 = vmatpush.msra.mxu0 0.0
    %2360 = vmatpush.msra.mxu0 0.0
    %2361 = vmatpush.msra.mxu0 0.0
    %2362 = vmatpush.msra.mxu0 0.0
    %2363 = vmatpush.msra.mxu0 0.0
    %2364 = vmatpush.msra.mxu0 0.0
    %2365 = vmatpush.msra.mxu0 0.0
    %2366 = vmatpush.msra.mxu0 0.0
    %2367 = vmatpush.msra.mxu0 0.0
    %2368 = vmatpush.msra.mxu0 0.0
    %2369 = vmatpush.msra.mxu0 0.0
    %2370 = vmatpush.msra.mxu0 0.0
    %2371 = vmatpush.msra.mxu0 %v2300
    %2372 = vmatpush.msra.mxu0 %v2287
    %2373 = vmatpush.msra.mxu0 %v2285
    %2374 = vmatpush.msra.mxu0 %v2283
    %2375 = vmatmul.f32.gmra.mxu0 %v2354
    %v2376 = vpop.f32.mrf.mxu0
    %v2377 = vadd.f32 0.0, %v2376
    %2378 = vmatmul.f32.gmra.mxu0 %v2357
    %v2379 = vpop.f32.mrf.mxu0
    %v2380 = vadd.f32 0.0, %v2379
    %2381 = vdwg.mxu0
    %2382 = vmatpush.msra.mxu0 0.0
    %2383 = vmatpush.msra.mxu0 0.0
    %2384 = vmatpush.msra.mxu0 0.0
    %2385 = vmatpush.msra.mxu0 0.0
    %2386 = vmatpush.msra.mxu0 0.0
    %2387 = vmatpush.msra.mxu0 0.0
    %2388 = vmatpush.msra.mxu0 0.0
    %2389 = vmatpush.msra.mxu0 0.0
    %2390 = vmatpush.msra.mxu0 0.0
    %2391 = vmatpush.msra.mxu0 0.0
    %2392 = vmatpush.msra.mxu0 0.0
    %2393 = vmatpush.msra.mxu0 0.0
    %2394 = vmatpush.msra.mxu0 %v2303
    %2395 = vmatpush.msra.mxu0 %v2288
    %2396 = vmatpush.msra.mxu0 %v2286
    %2397 = vmatpush.msra.mxu0 %v2284
    %2398 = vmatmul.f32.gmra.mxu0 %v2354
    %v2399 = vpop.f32.mrf.mxu0
    %v2400 = vadd.f32 0.0, %v2399
    %2401 = vmatmul.f32.gmra.mxu0 %v2357
    %v2402 = vpop.f32.mrf.mxu0
    %v2403 = vadd.f32 0.0, %v2402
    %2404 = vdwg.mxu0
    %v2405 = vmax.f32 %v2323, %v2377
    %v2406 = vmax.f32 %v2346, %v2400
    %v2407 = vmax.f32 %v2326, %v2380
    %v2408 = vmax.f32 %v2349, %v2403
    %v2409 = vld [vmem:[%s5] sm:$0xff]
    %v2410 = vld [vmem:[%s5 + $0x8] sm:$0xff]
    %v2411 = vld [vmem:[%s5 + $0x10] sm:$0xff]
    %v2412 = vld [vmem:[%s5 + $0x18] sm:$0xff]
    %v2413 = vld [vmem:[%s5 + $0x20] sm:$0xff]
    %v2414 = vld [vmem:[%s5 + $0x28] sm:$0xff]
    %v2415 = vld [vmem:[%s5 + $0x30] sm:$0xff]
    %v2416 = vld [vmem:[%s5 + $0x38] sm:$0xff]
    %v2417 = vld [vmem:[%s5 + $0x40] sm:$0xff]
    %v2418 = vld [vmem:[%s5 + $0x48] sm:$0xff]
    %v2419 = vld [vmem:[%s5 + $0x50] sm:$0xff]
    %v2420 = vld [vmem:[%s5 + $0x58] sm:$0xff]
    %v2421 = vld [vmem:[%s5 + $0x60] sm:$0xff]
    %v2422 = vld [vmem:[%s5 + $0x68] sm:$0xff]
    %v2423 = vld [vmem:[%s5 + $0x70] sm:$0xff]
    %v2424 = vld [vmem:[%s5 + $0x78] sm:$0xff]
    %v2425 = vld [vmem:[%s5 + $0x80] sm:$0xff]
    %v2426 = vld [vmem:[%s5 + $0x88] sm:$0xff]
    %v2427 = vld [vmem:[%s5 + $0x90] sm:$0xff]
    %v2428 = vld [vmem:[%s5 + $0x98] sm:$0xff]
    %v2429 = vld [vmem:[%s5 + $0xa0] sm:$0xff]
    %v2431 = vsel %vm723, %v2406, 0
    %v2434 = vsel %vm723, %v2408, 0
    %2436 = vmatpush.msra.mxu0 %v2424
    %2437 = vmatpush.msra.mxu0 %v2423
    %2438 = vmatpush.msra.mxu0 %v2422
    %2439 = vmatpush.msra.mxu0 %v2421
    %2440 = vmatpush.msra.mxu0 %v2420
    %2441 = vmatpush.msra.mxu0 %v2419
    %2442 = vmatpush.msra.mxu0 %v2418
    %2443 = vmatpush.msra.mxu0 %v2417
    %2444 = vmatpush.msra.mxu0 %v2416
    %2445 = vmatpush.msra.mxu0 %v2415
    %2446 = vmatpush.msra.mxu0 %v2414
    %2447 = vmatpush.msra.mxu0 %v2413
    %2448 = vmatpush.msra.mxu0 %v2412
    %2449 = vmatpush.msra.mxu0 %v2411
    %2450 = vmatpush.msra.mxu0 %v2410
    %2451 = vmatpush.msra.mxu0 %v2409
    %2452 = vmatmul.f32.gmra.mxu0 %v2405
    %v2453 = vpop.f32.mrf.mxu0
    %v2454 = vadd.f32 0.0, %v2453
    %2455 = vmatmul.f32.gmra.mxu0 %v2407
    %v2456 = vpop.f32.mrf.mxu0
    %v2457 = vadd.f32 0.0, %v2456
    %2458 = vdwg.mxu0
    %2459 = vmatpush.msra.mxu0 0.0
    %2460 = vmatpush.msra.mxu0 0.0
    %2461 = vmatpush.msra.mxu0 0.0
    %2462 = vmatpush.msra.mxu0 0.0
    %2463 = vmatpush.msra.mxu0 0.0
    %2464 = vmatpush.msra.mxu0 0.0
    %2465 = vmatpush.msra.mxu0 0.0
    %2466 = vmatpush.msra.mxu0 0.0
    %2467 = vmatpush.msra.mxu0 0.0
    %2468 = vmatpush.msra.mxu0 0.0
    %2469 = vmatpush.msra.mxu0 0.0
    %2470 = vmatpush.msra.mxu0 %v2429
    %2471 = vmatpush.msra.mxu0 %v2428
    %2472 = vmatpush.msra.mxu0 %v2427
    %2473 = vmatpush.msra.mxu0 %v2426
    %2474 = vmatpush.msra.mxu0 %v2425
    %2475 = vmatmul.f32.gmra.mxu0 %v2431
    %v2476 = vpop.f32.mrf.mxu0
    %v2477 = vadd.f32 %v2454, %v2476
    %2478 = vmatmul.f32.gmra.mxu0 %v2434
    %v2479 = vpop.f32.mrf.mxu0
    %v2480 = vadd.f32 %v2457, %v2479
    %2481 = vdwg.mxu0
    %v2482 = vld [vmem:[%s6] sm:$0xff]
    %v2483 = vld [vmem:[%s6 + $0x8] sm:$0xff]
    %v2484 = vld [vmem:[%s6 + $0x10] sm:$0xff]
    %v2485 = vld [vmem:[%s6 + $0x18] sm:$0xff]
    %v2486 = vld [vmem:[%s6 + $0x20] sm:$0xff]
    %v2487 = vld [vmem:[%s6 + $0x28] sm:$0xff]
    %v2488 = vld [vmem:[%s6 + $0x30] sm:$0xff]
    %v2489 = vld [vmem:[%s6 + $0x38] sm:$0xff]
    %v2490 = vld [vmem:[%s6 + $0x40] sm:$0xff]
    %v2491 = vld [vmem:[%s6 + $0x48] sm:$0xff]
    %v2492 = vld [vmem:[%s6 + $0x50] sm:$0xff]
    %v2493 = vld [vmem:[%s6 + $0x58] sm:$0xff]
    %v2494 = vld [vmem:[%s6 + $0x60] sm:$0xff]
    %v2495 = vld [vmem:[%s6 + $0x68] sm:$0xff]
    %v2496 = vld [vmem:[%s6 + $0x70] sm:$0xff]
    %v2497 = vld [vmem:[%s6 + $0x78] sm:$0xff]
    %v2498 = vld [vmem:[%s6 + $0x80] sm:$0xff]
    %v2499 = vld [vmem:[%s6 + $0x88] sm:$0xff]
    %v2500 = vld [vmem:[%s6 + $0x90] sm:$0xff]
    %v2501 = vld [vmem:[%s6 + $0x98] sm:$0xff]
    %v2502 = vld [vmem:[%s6 + $0xa0] sm:$0xff]
    %2503 = vmatpush.msra.mxu0 %v2497
    %2504 = vmatpush.msra.mxu0 %v2496
    %2505 = vmatpush.msra.mxu0 %v2495
    %2506 = vmatpush.msra.mxu0 %v2494
    %2507 = vmatpush.msra.mxu0 %v2493
    %2508 = vmatpush.msra.mxu0 %v2492
    %2509 = vmatpush.msra.mxu0 %v2491
    %2510 = vmatpush.msra.mxu0 %v2490
    %2511 = vmatpush.msra.mxu0 %v2489
    %2512 = vmatpush.msra.mxu0 %v2488
    %2513 = vmatpush.msra.mxu0 %v2487
    %2514 = vmatpush.msra.mxu0 %v2486
    %2515 = vmatpush.msra.mxu0 %v2485
    %2516 = vmatpush.msra.mxu0 %v2484
    %2517 = vmatpush.msra.mxu0 %v2483
    %2518 = vmatpush.msra.mxu0 %v2482
    %2519 = vmatmul.f32.gmra.mxu0 %v2405
    %v2520 = vpop.f32.mrf.mxu0
    %v2521 = vadd.f32 0.0, %v2520
    %2522 = vmatmul.f32.gmra.mxu0 %v2407
    %v2523 = vpop.f32.mrf.mxu0
    %v2524 = vadd.f32 0.0, %v2523
    %2525 = vdwg.mxu0
    %2526 = vmatpush.msra.mxu0 0.0
    %2527 = vmatpush.msra.mxu0 0.0
    %2528 = vmatpush.msra.mxu0 0.0
    %2529 = vmatpush.msra.mxu0 0.0
    %2530 = vmatpush.msra.mxu0 0.0
    %2531 = vmatpush.msra.mxu0 0.0
    %2532 = vmatpush.msra.mxu0 0.0
    %2533 = vmatpush.msra.mxu0 0.0
    %2534 = vmatpush.msra.mxu0 0.0
    %2535 = vmatpush.msra.mxu0 0.0
    %2536 = vmatpush.msra.mxu0 0.0
    %2537 = vmatpush.msra.mxu0 %v2502
    %2538 = vmatpush.msra.mxu0 %v2501
    %2539 = vmatpush.msra.mxu0 %v2500
    %2540 = vmatpush.msra.mxu0 %v2499
    %2541 = vmatpush.msra.mxu0 %v2498
    %2542 = vmatmul.f32.gmra.mxu0 %v2431
    %v2543 = vpop.f32.mrf.mxu0
    %v2544 = vadd.f32 %v2521, %v2543
    %2545 = vmatmul.f32.gmra.mxu0 %v2434
    %v2546 = vpop.f32.mrf.mxu0
    %v2547 = vadd.f32 %v2524, %v2546
    %2548 = vdwg.mxu0
    %v2549 = vmax.f32 %v2477, %v2544
    %v2550 = vmax.f32 %v2480, %v2547
    %v2551 = vld [vmem:[%s2] sm:$0x1]
    %v2553 = vperm.slane %v2551, 0
    %v2555 = vadd.f32 %v2549, %v2553
    %v2556 = vadd.f32 %v2550, %v2553
    %v2557 = vmax.f32 %v2555, 0.0
    %v2558 = vmax.f32 %v2556, 0.0
    %2559 = vst.msk [vmem:[#allocation2] sm:$0xff] %vm853, %v2557
    %2560 = vst.msk [vmem:[#allocation2 + $0x8] sm:$0x3f] %vm855, %v2558
    %v2561 = vld [vmem:[#allocation2] sm:$0xff]
    %v2562 = vld [vmem:[#allocation2 + $0x8] sm:$0x3]
    %v2563 = vld [vmem:[%s7] sm:$0xff]
    %v2564 = vld [vmem:[%s7 + $0x8] sm:$0xff]
    %v2565 = vld [vmem:[%s7 + $0x10] sm:$0xff]
    %v2566 = vld [vmem:[%s7 + $0x18] sm:$0xff]
    %v2567 = vld [vmem:[%s7 + $0x20] sm:$0xff]
    %v2568 = vld [vmem:[%s7 + $0x28] sm:$0xff]
    %v2569 = vld [vmem:[%s7 + $0x30] sm:$0xff]
    %v2570 = vld [vmem:[%s7 + $0x38] sm:$0xff]
    %v2571 = vld [vmem:[%s7 + $0x40] sm:$0xff]
    %v2572 = vld [vmem:[%s7 + $0x48] sm:$0xff]
    %v2573 = vld [vmem:[%s7 + $0x50] sm:$0xff]
    %v2574 = vld [vmem:[%s7 + $0x58] sm:$0xff]
    %v2575 = vld [vmem:[%s7 + $0x60] sm:$0xff]
    %v2576 = vld [vmem:[%s7 + $0x68] sm:$0xff]
    %v2577 = vld [vmem:[%s7 + $0x70] sm:$0xff]
    %v2578 = vld [vmem:[%s7 + $0x78] sm:$0xff]
    %v2579 = vld [vmem:[%s7 + $0x80] sm:$0xff]
    %v2580 = vld [vmem:[%s7 + $0x88] sm:$0xff]
    %v2581 = vld [vmem:[%s7 + $0x90] sm:$0xff]
    %v2582 = vld [vmem:[%s7 + $0x98] sm:$0xff]
    %v2583 = vld [vmem:[%s7 + $0xa0] sm:$0xf]
    %v2584 = vld [vmem:[%s7 + $0xa8] sm:$0xf]
    %v2585 = vld [vmem:[#allocation2 + $0x1] sm:$0xff]
    %v2586 = vld [vmem:[#allocation2 + $0x9] sm:$0x3]
    %v2587 = vld [vmem:[%s883] sm:$0xff]
    %v2588 = vld [vmem:[%s883 + $0x8] sm:$0xff]
    %v2589 = vld [vmem:[%s883 + $0x10] sm:$0xff]
    %v2590 = vld [vmem:[%s883 + $0x18] sm:$0xff]
    %v2591 = vld [vmem:[%s883 + $0x20] sm:$0xff]
    %v2592 = vld [vmem:[%s883 + $0x28] sm:$0xff]
    %v2593 = vld [vmem:[%s883 + $0x30] sm:$0xff]
    %v2594 = vld [vmem:[%s883 + $0x38] sm:$0xff]
    %v2595 = vld [vmem:[%s883 + $0x40] sm:$0xff]
    %v2596 = vld [vmem:[%s883 + $0x48] sm:$0xff]
    %v2597 = vld [vmem:[%s883 + $0x50] sm:$0xff]
    %v2598 = vld [vmem:[%s883 + $0x58] sm:$0xff]
    %v2599 = vld [vmem:[%s883 + $0x60] sm:$0xff]
    %v2600 = vld [vmem:[%s883 + $0x68] sm:$0xff]
    %v2601 = vld [vmem:[%s883 + $0x70] sm:$0xff]
    %v2602 = vld [vmem:[%s883 + $0x78] sm:$0xff]
    %v2603 = vld [vmem:[%s883 + $0x80] sm:$0xff]
    %v2604 = vld [vmem:[%s883 + $0x88] sm:$0xff]
    %v2605 = vld [vmem:[%s883 + $0x90] sm:$0xff]
    %v2606 = vld [vmem:[%s883 + $0x98] sm:$0xff]
    %v2607 = vld [vmem:[%s883 + $0xa0] sm:$0xf]
    %v2608 = vld [vmem:[%s883 + $0xa8] sm:$0xf]
    %v2610 = vsel %vm853, %v2585, 0
    %v2613 = vsel %vm853, %v2586, 0
    %v2616 = vsel %vm591, %v2607, 0
    %v2619 = vsel %vm591, %v2608, 0
    %2621 = vmatpush.msra.mxu0 0.0
    %2622 = vmatpush.msra.mxu0 0.0
    %2623 = vmatpush.msra.mxu0 0.0
    %2624 = vmatpush.msra.mxu0 0.0
    %2625 = vmatpush.msra.mxu0 0.0
    %2626 = vmatpush.msra.mxu0 %v2616
    %2627 = vmatpush.msra.mxu0 %v2605
    %2628 = vmatpush.msra.mxu0 %v2603
    %2629 = vmatpush.msra.mxu0 %v2601
    %2630 = vmatpush.msra.mxu0 %v2599
    %2631 = vmatpush.msra.mxu0 %v2597
    %2632 = vmatpush.msra.mxu0 %v2595
    %2633 = vmatpush.msra.mxu0 %v2593
    %2634 = vmatpush.msra.mxu0 %v2591
    %2635 = vmatpush.msra.mxu0 %v2589
    %2636 = vmatpush.msra.mxu0 %v2587
    %2637 = vmatmul.f32.gmra.mxu0 %v2610
    %v2638 = vpop.f32.mrf.mxu0
    %v2639 = vadd.f32 0.0, %v2638
    %2640 = vmatmul.f32.gmra.mxu0 %v2613
    %v2641 = vpop.f32.mrf.mxu0
    %v2642 = vadd.f32 0.0, %v2641
    %2643 = vdwg.mxu0
    %2644 = vmatpush.msra.mxu0 0.0
    %2645 = vmatpush.msra.mxu0 0.0
    %2646 = vmatpush.msra.mxu0 0.0
    %2647 = vmatpush.msra.mxu0 0.0
    %2648 = vmatpush.msra.mxu0 0.0
    %2649 = vmatpush.msra.mxu0 %v2619
    %2650 = vmatpush.msra.mxu0 %v2606
    %2651 = vmatpush.msra.mxu0 %v2604
    %2652 = vmatpush.msra.mxu0 %v2602
    %2653 = vmatpush.msra.mxu0 %v2600
    %2654 = vmatpush.msra.mxu0 %v2598
    %2655 = vmatpush.msra.mxu0 %v2596
    %2656 = vmatpush.msra.mxu0 %v2594
    %2657 = vmatpush.msra.mxu0 %v2592
    %2658 = vmatpush.msra.mxu0 %v2590
    %2659 = vmatpush.msra.mxu0 %v2588
    %2660 = vmatmul.f32.gmra.mxu0 %v2610
    %v2661 = vpop.f32.mrf.mxu0
    %v2662 = vadd.f32 0.0, %v2661
    %2663 = vmatmul.f32.gmra.mxu0 %v2613
    %v2664 = vpop.f32.mrf.mxu0
    %v2665 = vadd.f32 0.0, %v2664
    %2666 = vdwg.mxu0
    %v2668 = vsel %vm853, %v2561, 0
    %v2671 = vsel %vm853, %v2562, 0
    %v2674 = vsel %vm591, %v2583, 0
    %v2677 = vsel %vm591, %v2584, 0
    %2679 = vmatpush.msra.mxu0 0.0
    %2680 = vmatpush.msra.mxu0 0.0
    %2681 = vmatpush.msra.mxu0 0.0
    %2682 = vmatpush.msra.mxu0 0.0
    %2683 = vmatpush.msra.mxu0 0.0
    %2684 = vmatpush.msra.mxu0 %v2674
    %2685 = vmatpush.msra.mxu0 %v2581
    %2686 = vmatpush.msra.mxu0 %v2579
    %2687 = vmatpush.msra.mxu0 %v2577
    %2688 = vmatpush.msra.mxu0 %v2575
    %2689 = vmatpush.msra.mxu0 %v2573
    %2690 = vmatpush.msra.mxu0 %v2571
    %2691 = vmatpush.msra.mxu0 %v2569
    %2692 = vmatpush.msra.mxu0 %v2567
    %2693 = vmatpush.msra.mxu0 %v2565
    %2694 = vmatpush.msra.mxu0 %v2563
    %2695 = vmatmul.f32.gmra.mxu0 %v2668
    %v2696 = vpop.f32.mrf.mxu0
    %v2697 = vadd.f32 %v2639, %v2696
    %2698 = vmatmul.f32.gmra.mxu0 %v2671
    %v2699 = vpop.f32.mrf.mxu0
    %v2700 = vadd.f32 %v2642, %v2699
    %2701 = vdwg.mxu0
    %2702 = vmatpush.msra.mxu0 0.0
    %2703 = vmatpush.msra.mxu0 0.0
    %2704 = vmatpush.msra.mxu0 0.0
    %2705 = vmatpush.msra.mxu0 0.0
    %2706 = vmatpush.msra.mxu0 0.0
    %2707 = vmatpush.msra.mxu0 %v2677
    %2708 = vmatpush.msra.mxu0 %v2582
    %2709 = vmatpush.msra.mxu0 %v2580
    %2710 = vmatpush.msra.mxu0 %v2578
    %2711 = vmatpush.msra.mxu0 %v2576
    %2712 = vmatpush.msra.mxu0 %v2574
    %2713 = vmatpush.msra.mxu0 %v2572
    %2714 = vmatpush.msra.mxu0 %v2570
    %2715 = vmatpush.msra.mxu0 %v2568
    %2716 = vmatpush.msra.mxu0 %v2566
    %2717 = vmatpush.msra.mxu0 %v2564
    %2718 = vmatmul.f32.gmra.mxu0 %v2668
    %v2719 = vpop.f32.mrf.mxu0
    %v2720 = vadd.f32 %v2662, %v2719
    %2721 = vmatmul.f32.gmra.mxu0 %v2671
    %v2722 = vpop.f32.mrf.mxu0
    %v2723 = vadd.f32 %v2665, %v2722
    %2724 = vdwg.mxu0
    %v2725 = vld [vmem:[#allocation2 + $0x2] sm:$0xff]
    %v2726 = vld [vmem:[#allocation2 + $0xa] sm:$0x3]
    %v2727 = vld [vmem:[%s1024] sm:$0xff]
    %v2728 = vld [vmem:[%s1024 + $0x8] sm:$0xff]
    %v2729 = vld [vmem:[%s1024 + $0x10] sm:$0xff]
    %v2730 = vld [vmem:[%s1024 + $0x18] sm:$0xff]
    %v2731 = vld [vmem:[%s1024 + $0x20] sm:$0xff]
    %v2732 = vld [vmem:[%s1024 + $0x28] sm:$0xff]
    %v2733 = vld [vmem:[%s1024 + $0x30] sm:$0xff]
    %v2734 = vld [vmem:[%s1024 + $0x38] sm:$0xff]
    %v2735 = vld [vmem:[%s1024 + $0x40] sm:$0xff]
    %v2736 = vld [vmem:[%s1024 + $0x48] sm:$0xff]
    %v2737 = vld [vmem:[%s1024 + $0x50] sm:$0xff]
    %v2738 = vld [vmem:[%s1024 + $0x58] sm:$0xff]
    %v2739 = vld [vmem:[%s1024 + $0x60] sm:$0xff]
    %v2740 = vld [vmem:[%s1024 + $0x68] sm:$0xff]
    %v2741 = vld [vmem:[%s1024 + $0x70] sm:$0xff]
    %v2742 = vld [vmem:[%s1024 + $0x78] sm:$0xff]
    %v2743 = vld [vmem:[%s1024 + $0x80] sm:$0xff]
    %v2744 = vld [vmem:[%s1024 + $0x88] sm:$0xff]
    %v2745 = vld [vmem:[%s1024 + $0x90] sm:$0xff]
    %v2746 = vld [vmem:[%s1024 + $0x98] sm:$0xff]
    %v2747 = vld [vmem:[%s1024 + $0xa0] sm:$0xf]
    %v2748 = vld [vmem:[%s1024 + $0xa8] sm:$0xf]
    %v2750 = vsel %vm853, %v2725, 0
    %v2753 = vsel %vm853, %v2726, 0
    %v2756 = vsel %vm591, %v2747, 0
    %v2759 = vsel %vm591, %v2748, 0
    %2761 = vmatpush.msra.mxu0 0.0
    %2762 = vmatpush.msra.mxu0 0.0
    %2763 = vmatpush.msra.mxu0 0.0
    %2764 = vmatpush.msra.mxu0 0.0
    %2765 = vmatpush.msra.mxu0 0.0
    %2766 = vmatpush.msra.mxu0 %v2756
    %2767 = vmatpush.msra.mxu0 %v2745
    %2768 = vmatpush.msra.mxu0 %v2743
    %2769 = vmatpush.msra.mxu0 %v2741
    %2770 = vmatpush.msra.mxu0 %v2739
    %2771 = vmatpush.msra.mxu0 %v2737
    %2772 = vmatpush.msra.mxu0 %v2735
    %2773 = vmatpush.msra.mxu0 %v2733
    %2774 = vmatpush.msra.mxu0 %v2731
    %2775 = vmatpush.msra.mxu0 %v2729
    %2776 = vmatpush.msra.mxu0 %v2727
    %2777 = vmatmul.f32.gmra.mxu0 %v2750
    %v2778 = vpop.f32.mrf.mxu0
    %v2779 = vadd.f32 0.0, %v2778
    %2780 = vmatmul.f32.gmra.mxu0 %v2753
    %v2781 = vpop.f32.mrf.mxu0
    %v2782 = vadd.f32 0.0, %v2781
    %2783 = vdwg.mxu0
    %2784 = vmatpush.msra.mxu0 0.0
    %2785 = vmatpush.msra.mxu0 0.0
    %2786 = vmatpush.msra.mxu0 0.0
    %2787 = vmatpush.msra.mxu0 0.0
    %2788 = vmatpush.msra.mxu0 0.0
    %2789 = vmatpush.msra.mxu0 %v2759
    %2790 = vmatpush.msra.mxu0 %v2746
    %2791 = vmatpush.msra.mxu0 %v2744
    %2792 = vmatpush.msra.mxu0 %v2742
    %2793 = vmatpush.msra.mxu0 %v2740
    %2794 = vmatpush.msra.mxu0 %v2738
    %2795 = vmatpush.msra.mxu0 %v2736
    %2796 = vmatpush.msra.mxu0 %v2734
    %2797 = vmatpush.msra.mxu0 %v2732
    %2798 = vmatpush.msra.mxu0 %v2730
    %2799 = vmatpush.msra.mxu0 %v2728
    %2800 = vmatmul.f32.gmra.mxu0 %v2750
    %v2801 = vpop.f32.mrf.mxu0
    %v2802 = vadd.f32 0.0, %v2801
    %2803 = vmatmul.f32.gmra.mxu0 %v2753
    %v2804 = vpop.f32.mrf.mxu0
    %v2805 = vadd.f32 0.0, %v2804
    %2806 = vdwg.mxu0
    %v2807 = vadd.f32 %v2697, %v2779
    %v2808 = vadd.f32 %v2720, %v2802
    %v2809 = vadd.f32 %v2700, %v2782
    %v2810 = vadd.f32 %v2723, %v2805
    %v2811 = vld [vmem:[#allocation2 + $0x3] sm:$0xff]
    %v2812 = vld [vmem:[#allocation2 + $0xb] sm:$0x3]
    %v2813 = vld [vmem:[%s1111] sm:$0xff]
    %v2814 = vld [vmem:[%s1111 + $0x8] sm:$0xff]
    %v2815 = vld [vmem:[%s1111 + $0x10] sm:$0xff]
    %v2816 = vld [vmem:[%s1111 + $0x18] sm:$0xff]
    %v2817 = vld [vmem:[%s1111 + $0x20] sm:$0xff]
    %v2818 = vld [vmem:[%s1111 + $0x28] sm:$0xff]
    %v2819 = vld [vmem:[%s1111 + $0x30] sm:$0xff]
    %v2820 = vld [vmem:[%s1111 + $0x38] sm:$0xff]
    %v2821 = vld [vmem:[%s1111 + $0x40] sm:$0xff]
    %v2822 = vld [vmem:[%s1111 + $0x48] sm:$0xff]
    %v2823 = vld [vmem:[%s1111 + $0x50] sm:$0xff]
    %v2824 = vld [vmem:[%s1111 + $0x58] sm:$0xff]
    %v2825 = vld [vmem:[%s1111 + $0x60] sm:$0xff]
    %v2826 = vld [vmem:[%s1111 + $0x68] sm:$0xff]
    %v2827 = vld [vmem:[%s1111 + $0x70] sm:$0xff]
    %v2828 = vld [vmem:[%s1111 + $0x78] sm:$0xff]
    %v2829 = vld [vmem:[%s1111 + $0x80] sm:$0xff]
    %v2830 = vld [vmem:[%s1111 + $0x88] sm:$0xff]
    %v2831 = vld [vmem:[%s1111 + $0x90] sm:$0xff]
    %v2832 = vld [vmem:[%s1111 + $0x98] sm:$0xff]
    %v2833 = vld [vmem:[%s1111 + $0xa0] sm:$0xf]
    %v2834 = vld [vmem:[%s1111 + $0xa8] sm:$0xf]
    %v2836 = vsel %vm853, %v2811, 0
    %v2839 = vsel %vm853, %v2812, 0
    %v2842 = vsel %vm591, %v2833, 0
    %v2845 = vsel %vm591, %v2834, 0
    %2847 = vmatpush.msra.mxu0 0.0
    %2848 = vmatpush.msra.mxu0 0.0
    %2849 = vmatpush.msra.mxu0 0.0
    %2850 = vmatpush.msra.mxu0 0.0
    %2851 = vmatpush.msra.mxu0 0.0
    %2852 = vmatpush.msra.mxu0 %v2842
    %2853 = vmatpush.msra.mxu0 %v2831
    %2854 = vmatpush.msra.mxu0 %v2829
    %2855 = vmatpush.msra.mxu0 %v2827
    %2856 = vmatpush.msra.mxu0 %v2825
    %2857 = vmatpush.msra.mxu0 %v2823
    %2858 = vmatpush.msra.mxu0 %v2821
    %2859 = vmatpush.msra.mxu0 %v2819
    %2860 = vmatpush.msra.mxu0 %v2817
    %2861 = vmatpush.msra.mxu0 %v2815
    %2862 = vmatpush.msra.mxu0 %v2813
    %2863 = vmatmul.f32.gmra.mxu0 %v2836
    %v2864 = vpop.f32.mrf.mxu0
    %v2865 = vadd.f32 0.0, %v2864
    %2866 = vmatmul.f32.gmra.mxu0 %v2839
    %v2867 = vpop.f32.mrf.mxu0
    %v2868 = vadd.f32 0.0, %v2867
    %2869 = vdwg.mxu0
    %2870 = vmatpush.msra.mxu0 0.0
    %2871 = vmatpush.msra.mxu0 0.0
    %2872 = vmatpush.msra.mxu0 0.0
    %2873 = vmatpush.msra.mxu0 0.0
    %2874 = vmatpush.msra.mxu0 0.0
    %2875 = vmatpush.msra.mxu0 %v2845
    %2876 = vmatpush.msra.mxu0 %v2832
    %2877 = vmatpush.msra.mxu0 %v2830
    %2878 = vmatpush.msra.mxu0 %v2828
    %2879 = vmatpush.msra.mxu0 %v2826
    %2880 = vmatpush.msra.mxu0 %v2824
    %2881 = vmatpush.msra.mxu0 %v2822
    %2882 = vmatpush.msra.mxu0 %v2820
    %2883 = vmatpush.msra.mxu0 %v2818
    %2884 = vmatpush.msra.mxu0 %v2816
    %2885 = vmatpush.msra.mxu0 %v2814
    %2886 = vmatmul.f32.gmra.mxu0 %v2836
    %v2887 = vpop.f32.mrf.mxu0
    %v2888 = vadd.f32 0.0, %v2887
    %2889 = vmatmul.f32.gmra.mxu0 %v2839
    %v2890 = vpop.f32.mrf.mxu0
    %v2891 = vadd.f32 0.0, %v2890
    %2892 = vdwg.mxu0
    %v2893 = vadd.f32 %v2807, %v2865
    %v2894 = vadd.f32 %v2808, %v2888
    %v2895 = vadd.f32 %v2809, %v2868
    %v2896 = vadd.f32 %v2810, %v2891
    %v2897 = vld [vmem:[#allocation2 + $0x4] sm:$0xff]
    %v2898 = vld [vmem:[#allocation2 + $0xc] sm:$0x3]
    %v2899 = vld [vmem:[%s1198] sm:$0xff]
    %v2900 = vld [vmem:[%s1198 + $0x8] sm:$0xff]
    %v2901 = vld [vmem:[%s1198 + $0x10] sm:$0xff]
    %v2902 = vld [vmem:[%s1198 + $0x18] sm:$0xff]
    %v2903 = vld [vmem:[%s1198 + $0x20] sm:$0xff]
    %v2904 = vld [vmem:[%s1198 + $0x28] sm:$0xff]
    %v2905 = vld [vmem:[%s1198 + $0x30] sm:$0xff]
    %v2906 = vld [vmem:[%s1198 + $0x38] sm:$0xff]
    %v2907 = vld [vmem:[%s1198 + $0x40] sm:$0xff]
    %v2908 = vld [vmem:[%s1198 + $0x48] sm:$0xff]
    %v2909 = vld [vmem:[%s1198 + $0x50] sm:$0xff]
    %v2910 = vld [vmem:[%s1198 + $0x58] sm:$0xff]
    %v2911 = vld [vmem:[%s1198 + $0x60] sm:$0xff]
    %v2912 = vld [vmem:[%s1198 + $0x68] sm:$0xff]
    %v2913 = vld [vmem:[%s1198 + $0x70] sm:$0xff]
    %v2914 = vld [vmem:[%s1198 + $0x78] sm:$0xff]
    %v2915 = vld [vmem:[%s1198 + $0x80] sm:$0xff]
    %v2916 = vld [vmem:[%s1198 + $0x88] sm:$0xff]
    %v2917 = vld [vmem:[%s1198 + $0x90] sm:$0xff]
    %v2918 = vld [vmem:[%s1198 + $0x98] sm:$0xff]
    %v2919 = vld [vmem:[%s1198 + $0xa0] sm:$0xf]
    %v2920 = vld [vmem:[%s1198 + $0xa8] sm:$0xf]
    %v2922 = vsel %vm853, %v2897, 0
    %v2925 = vsel %vm853, %v2898, 0
    %v2928 = vsel %vm591, %v2919, 0
    %v2931 = vsel %vm591, %v2920, 0
    %2933 = vmatpush.msra.mxu0 0.0
    %2934 = vmatpush.msra.mxu0 0.0
    %2935 = vmatpush.msra.mxu0 0.0
    %2936 = vmatpush.msra.mxu0 0.0
    %2937 = vmatpush.msra.mxu0 0.0
    %2938 = vmatpush.msra.mxu0 %v2928
    %2939 = vmatpush.msra.mxu0 %v2917
    %2940 = vmatpush.msra.mxu0 %v2915
    %2941 = vmatpush.msra.mxu0 %v2913
    %2942 = vmatpush.msra.mxu0 %v2911
    %2943 = vmatpush.msra.mxu0 %v2909
    %2944 = vmatpush.msra.mxu0 %v2907
    %2945 = vmatpush.msra.mxu0 %v2905
    %2946 = vmatpush.msra.mxu0 %v2903
    %2947 = vmatpush.msra.mxu0 %v2901
    %2948 = vmatpush.msra.mxu0 %v2899
    %2949 = vmatmul.f32.gmra.mxu0 %v2922
    %v2950 = vpop.f32.mrf.mxu0
    %v2951 = vadd.f32 0.0, %v2950
    %2952 = vmatmul.f32.gmra.mxu0 %v2925
    %v2953 = vpop.f32.mrf.mxu0
    %v2954 = vadd.f32 0.0, %v2953
    %2955 = vdwg.mxu0
    %2956 = vmatpush.msra.mxu0 0.0
    %2957 = vmatpush.msra.mxu0 0.0
    %2958 = vmatpush.msra.mxu0 0.0
    %2959 = vmatpush.msra.mxu0 0.0
    %2960 = vmatpush.msra.mxu0 0.0
    %2961 = vmatpush.msra.mxu0 %v2931
    %2962 = vmatpush.msra.mxu0 %v2918
    %2963 = vmatpush.msra.mxu0 %v2916
    %2964 = vmatpush.msra.mxu0 %v2914
    %2965 = vmatpush.msra.mxu0 %v2912
    %2966 = vmatpush.msra.mxu0 %v2910
    %2967 = vmatpush.msra.mxu0 %v2908
    %2968 = vmatpush.msra.mxu0 %v2906
    %2969 = vmatpush.msra.mxu0 %v2904
    %2970 = vmatpush.msra.mxu0 %v2902
    %2971 = vmatpush.msra.mxu0 %v2900
    %2972 = vmatmul.f32.gmra.mxu0 %v2922
    %v2973 = vpop.f32.mrf.mxu0
    %v2974 = vadd.f32 0.0, %v2973
    %2975 = vmatmul.f32.gmra.mxu0 %v2925
    %v2976 = vpop.f32.mrf.mxu0
    %v2977 = vadd.f32 0.0, %v2976
    %2978 = vdwg.mxu0
    %v2979 = vadd.f32 %v2893, %v2951
    %v2980 = vadd.f32 %v2894, %v2974
    %v2981 = vadd.f32 %v2895, %v2954
    %v2982 = vadd.f32 %v2896, %v2977
    %v2983 = vld [vmem:[%s9] sm:$0x1f]
    %v2985 = vsel %vm1284, %v2983, 0
    %v2988 = vsel %vm1288, %v2981, 0
    %v2991 = vsel %vm1288, %v2982, 0
    %2993 = vmatpush.msra.mxu0 0.0
    %2994 = vmatpush.msra.mxu0 0.0
    %2995 = vmatpush.msra.mxu0 0.0
    %2996 = vmatpush.msra.mxu0 0.0
    %2997 = vmatpush.msra.mxu0 0.0
    %2998 = vmatpush.msra.mxu0 0.0
    %2999 = vmatpush.msra.mxu0 0.0
    %3000 = vmatpush.msra.mxu0 0.0
    %3001 = vmatpush.msra.mxu0 0.0
    %3002 = vmatpush.msra.mxu0 0.0
    %3003 = vmatpush.msra.mxu0 0.0
    %3004 = vmatpush.msra.mxu0 0.0
    %3005 = vmatpush.msra.mxu0 0.0
    %3006 = vmatpush.msra.mxu0 0.0
    %3007 = vmatpush.msra.mxu0 %v2988
    %3008 = vmatpush.msra.mxu0 %v2979
    %3009 = vmatmul.f32.gmra.mxu0 %v2985
    %v3010 = vpop.f32.mrf.mxu0
    %v3011 = vadd.f32 0.0, %v3010
    %3012 = vdwg.mxu0
    %3013 = vmatpush.msra.mxu0 0.0
    %3014 = vmatpush.msra.mxu0 0.0
    %3015 = vmatpush.msra.mxu0 0.0
    %3016 = vmatpush.msra.mxu0 0.0
    %3017 = vmatpush.msra.mxu0 0.0
    %3018 = vmatpush.msra.mxu0 0.0
    %3019 = vmatpush.msra.mxu0 0.0
    %3020 = vmatpush.msra.mxu0 0.0
    %3021 = vmatpush.msra.mxu0 0.0
    %3022 = vmatpush.msra.mxu0 0.0
    %3023 = vmatpush.msra.mxu0 0.0
    %3024 = vmatpush.msra.mxu0 0.0
    %3025 = vmatpush.msra.mxu0 0.0
    %3026 = vmatpush.msra.mxu0 0.0
    %3027 = vmatpush.msra.mxu0 %v2991
    %3028 = vmatpush.msra.mxu0 %v2980
    %3029 = vmatmul.f32.gmra.mxu0 %v2985
    %v3030 = vpop.f32.mrf.mxu0
    %v3031 = vadd.f32 0.0, %v3030
    %3032 = vdwg.mxu0
    %v3033 = vld [vmem:[%s10] sm:$0x1f]
    %v3035 = vsel %vm1284, %v3033, 0
    %3037 = vmatpush.msra.mxu0 0.0
    %3038 = vmatpush.msra.mxu0 0.0
    %3039 = vmatpush.msra.mxu0 0.0
    %3040 = vmatpush.msra.mxu0 0.0
    %3041 = vmatpush.msra.mxu0 0.0
    %3042 = vmatpush.msra.mxu0 0.0
    %3043 = vmatpush.msra.mxu0 0.0
    %3044 = vmatpush.msra.mxu0 0.0
    %3045 = vmatpush.msra.mxu0 0.0
    %3046 = vmatpush.msra.mxu0 0.0
    %3047 = vmatpush.msra.mxu0 0.0
    %3048 = vmatpush.msra.mxu0 0.0
    %3049 = vmatpush.msra.mxu0 0.0
    %3050 = vmatpush.msra.mxu0 0.0
    %3051 = vmatpush.msra.mxu0 %v2988
    %3052 = vmatpush.msra.mxu0 %v2979
    %3053 = vmatmul.f32.gmra.mxu0 %v3035
    %v3054 = vpop.f32.mrf.mxu0
    %v3055 = vadd.f32 0.0, %v3054
    %3056 = vdwg.mxu0
    %3057 = vmatpush.msra.mxu0 0.0
    %3058 = vmatpush.msra.mxu0 0.0
    %3059 = vmatpush.msra.mxu0 0.0
    %3060 = vmatpush.msra.mxu0 0.0
    %3061 = vmatpush.msra.mxu0 0.0
    %3062 = vmatpush.msra.mxu0 0.0
    %3063 = vmatpush.msra.mxu0 0.0
    %3064 = vmatpush.msra.mxu0 0.0
    %3065 = vmatpush.msra.mxu0 0.0
    %3066 = vmatpush.msra.mxu0 0.0
    %3067 = vmatpush.msra.mxu0 0.0
    %3068 = vmatpush.msra.mxu0 0.0
    %3069 = vmatpush.msra.mxu0 0.0
    %3070 = vmatpush.msra.mxu0 0.0
    %3071 = vmatpush.msra.mxu0 %v2991
    %3072 = vmatpush.msra.mxu0 %v2980
    %3073 = vmatmul.f32.gmra.mxu0 %v3035
    %v3074 = vpop.f32.mrf.mxu0
    %v3075 = vadd.f32 0.0, %v3074
    %3076 = vdwg.mxu0
    %v3077 = vmax.f32 %v3011, %v3055
    %v3078 = vmax.f32 %v3031, %v3075
    %v3079 = vld [vmem:[%s11] sm:$0xff]
    %v3080 = vld [vmem:[%s11 + $0x8] sm:$0xff]
    %v3081 = vld [vmem:[%s11 + $0x10] sm:$0xff]
    %v3082 = vld [vmem:[%s11 + $0x18] sm:$0xff]
    %v3083 = vld [vmem:[%s11 + $0x20] sm:$0xff]
    %v3084 = vld [vmem:[%s11 + $0x28] sm:$0xff]
    %v3085 = vld [vmem:[%s11 + $0x30] sm:$0xff]
    %v3086 = vld [vmem:[%s11 + $0x38] sm:$0xff]
    %v3087 = vld [vmem:[%s11 + $0x40] sm:$0xff]
    %v3088 = vld [vmem:[%s11 + $0x48] sm:$0xff]
    %v3089 = vld [vmem:[%s11 + $0x50] sm:$0xff]
    %v3090 = vld [vmem:[%s11 + $0x58] sm:$0xff]
    %v3091 = vld [vmem:[%s11 + $0x60] sm:$0xff]
    %v3092 = vld [vmem:[%s11 + $0x68] sm:$0xff]
    %v3093 = vld [vmem:[%s11 + $0x70] sm:$0xff]
    %v3094 = vld [vmem:[%s11 + $0x78] sm:$0xff]
    %v3095 = vld [vmem:[%s11 + $0x80] sm:$0xff]
    %v3096 = vld [vmem:[%s11 + $0x88] sm:$0xff]
    %v3097 = vld [vmem:[%s11 + $0x90] sm:$0xff]
    %v3098 = vld [vmem:[%s11 + $0x98] sm:$0xff]
    %v3100 = vsel %vm1401, %v3078, 0
    %3102 = vmatpush.msra.mxu0 %v3094
    %3103 = vmatpush.msra.mxu0 %v3093
    %3104 = vmatpush.msra.mxu0 %v3092
    %3105 = vmatpush.msra.mxu0 %v3091
    %3106 = vmatpush.msra.mxu0 %v3090
    %3107 = vmatpush.msra.mxu0 %v3089
    %3108 = vmatpush.msra.mxu0 %v3088
    %3109 = vmatpush.msra.mxu0 %v3087
    %3110 = vmatpush.msra.mxu0 %v3086
    %3111 = vmatpush.msra.mxu0 %v3085
    %3112 = vmatpush.msra.mxu0 %v3084
    %3113 = vmatpush.msra.mxu0 %v3083
    %3114 = vmatpush.msra.mxu0 %v3082
    %3115 = vmatpush.msra.mxu0 %v3081
    %3116 = vmatpush.msra.mxu0 %v3080
    %3117 = vmatpush.msra.mxu0 %v3079
    %3118 = vmatmul.f32.gmra.mxu0 %v3077
    %v3119 = vpop.f32.mrf.mxu0
    %v3120 = vadd.f32 0.0, %v3119
    %3121 = vdwg.mxu0
    %3122 = vmatpush.msra.mxu0 0.0
    %3123 = vmatpush.msra.mxu0 0.0
    %3124 = vmatpush.msra.mxu0 0.0
    %3125 = vmatpush.msra.mxu0 0.0
    %3126 = vmatpush.msra.mxu0 0.0
    %3127 = vmatpush.msra.mxu0 0.0
    %3128 = vmatpush.msra.mxu0 0.0
    %3129 = vmatpush.msra.mxu0 0.0
    %3130 = vmatpush.msra.mxu0 0.0
    %3131 = vmatpush.msra.mxu0 0.0
    %3132 = vmatpush.msra.mxu0 0.0
    %3133 = vmatpush.msra.mxu0 0.0
    %3134 = vmatpush.msra.mxu0 %v3098
    %3135 = vmatpush.msra.mxu0 %v3097
    %3136 = vmatpush.msra.mxu0 %v3096
    %3137 = vmatpush.msra.mxu0 %v3095
    %3138 = vmatmul.f32.gmra.mxu0 %v3100
    %v3139 = vpop.f32.mrf.mxu0
    %v3140 = vadd.f32 %v3120, %v3139
    %3141 = vdwg.mxu0
    %v3142 = vld [vmem:[%s12] sm:$0xff]
    %v3143 = vld [vmem:[%s12 + $0x8] sm:$0xff]
    %v3144 = vld [vmem:[%s12 + $0x10] sm:$0xff]
    %v3145 = vld [vmem:[%s12 + $0x18] sm:$0xff]
    %v3146 = vld [vmem:[%s12 + $0x20] sm:$0xff]
    %v3147 = vld [vmem:[%s12 + $0x28] sm:$0xff]
    %v3148 = vld [vmem:[%s12 + $0x30] sm:$0xff]
    %v3149 = vld [vmem:[%s12 + $0x38] sm:$0xff]
    %v3150 = vld [vmem:[%s12 + $0x40] sm:$0xff]
    %v3151 = vld [vmem:[%s12 + $0x48] sm:$0xff]
    %v3152 = vld [vmem:[%s12 + $0x50] sm:$0xff]
    %v3153 = vld [vmem:[%s12 + $0x58] sm:$0xff]
    %v3154 = vld [vmem:[%s12 + $0x60] sm:$0xff]
    %v3155 = vld [vmem:[%s12 + $0x68] sm:$0xff]
    %v3156 = vld [vmem:[%s12 + $0x70] sm:$0xff]
    %v3157 = vld [vmem:[%s12 + $0x78] sm:$0xff]
    %v3158 = vld [vmem:[%s12 + $0x80] sm:$0xff]
    %v3159 = vld [vmem:[%s12 + $0x88] sm:$0xff]
    %v3160 = vld [vmem:[%s12 + $0x90] sm:$0xff]
    %v3161 = vld [vmem:[%s12 + $0x98] sm:$0xff]
    %3162 = vmatpush.msra.mxu0 %v3157
    %3163 = vmatpush.msra.mxu0 %v3156
    %3164 = vmatpush.msra.mxu0 %v3155
    %3165 = vmatpush.msra.mxu0 %v3154
    %3166 = vmatpush.msra.mxu0 %v3153
    %3167 = vmatpush.msra.mxu0 %v3152
    %3168 = vmatpush.msra.mxu0 %v3151
    %3169 = vmatpush.msra.mxu0 %v3150
    %3170 = vmatpush.msra.mxu0 %v3149
    %3171 = vmatpush.msra.mxu0 %v3148
    %3172 = vmatpush.msra.mxu0 %v3147
    %3173 = vmatpush.msra.mxu0 %v3146
    %3174 = vmatpush.msra.mxu0 %v3145
    %3175 = vmatpush.msra.mxu0 %v3144
    %3176 = vmatpush.msra.mxu0 %v3143
    %3177 = vmatpush.msra.mxu0 %v3142
    %3178 = vmatmul.f32.gmra.mxu0 %v3077
    %v3179 = vpop.f32.mrf.mxu0
    %v3180 = vadd.f32 0.0, %v3179
    %3181 = vdwg.mxu0
    %3182 = vmatpush.msra.mxu0 0.0
    %3183 = vmatpush.msra.mxu0 0.0
    %3184 = vmatpush.msra.mxu0 0.0
    %3185 = vmatpush.msra.mxu0 0.0
    %3186 = vmatpush.msra.mxu0 0.0
    %3187 = vmatpush.msra.mxu0 0.0
    %3188 = vmatpush.msra.mxu0 0.0
    %3189 = vmatpush.msra.mxu0 0.0
    %3190 = vmatpush.msra.mxu0 0.0
    %3191 = vmatpush.msra.mxu0 0.0
    %3192 = vmatpush.msra.mxu0 0.0
    %3193 = vmatpush.msra.mxu0 0.0
    %3194 = vmatpush.msra.mxu0 %v3161
    %3195 = vmatpush.msra.mxu0 %v3160
    %3196 = vmatpush.msra.mxu0 %v3159
    %3197 = vmatpush.msra.mxu0 %v3158
    %3198 = vmatmul.f32.gmra.mxu0 %v3100
    %v3199 = vpop.f32.mrf.mxu0
    %v3200 = vadd.f32 %v3180, %v3199
    %3201 = vdwg.mxu0
    %v3202 = vmax.f32 %v3140, %v3200
    %v3203 = vld [vmem:[%s8] sm:$0x1]
    %v3205 = vperm.slane %v3203, 0
    %v3207 = vadd.f32 %v3202, %v3205
    %v3208 = vmax.f32 %v3207, 0.0
    %3209 = vst.msk [vmem:[#allocation3] sm:$0x1f] %vm1512, %v3208
    %v3210 = vld [vmem:[#allocation3] sm:$0x1]
    %v3211 = vld [vmem:[%s13] sm:$0xff]
    %v3212 = vld [vmem:[%s13 + $0x8] sm:$0xff]
    %v3213 = vld [vmem:[%s13 + $0x10] sm:$0xff]
    %v3214 = vld [vmem:[%s13 + $0x18] sm:$0xff]
    %v3215 = vld [vmem:[%s13 + $0x20] sm:$0xff]
    %v3216 = vld [vmem:[%s13 + $0x28] sm:$0xff]
    %v3217 = vld [vmem:[%s13 + $0x30] sm:$0xff]
    %v3218 = vld [vmem:[%s13 + $0x38] sm:$0xff]
    %v3219 = vld [vmem:[%s13 + $0x40] sm:$0xff]
    %v3220 = vld [vmem:[%s13 + $0x48] sm:$0xff]
    %v3221 = vld [vmem:[#allocation3 + $0x1] sm:$0x1]
    %v3222 = vld [vmem:[%s1526] sm:$0xff]
    %v3223 = vld [vmem:[%s1526 + $0x8] sm:$0xff]
    %v3224 = vld [vmem:[%s1526 + $0x10] sm:$0xff]
    %v3225 = vld [vmem:[%s1526 + $0x18] sm:$0xff]
    %v3226 = vld [vmem:[%s1526 + $0x20] sm:$0xff]
    %v3227 = vld [vmem:[%s1526 + $0x28] sm:$0xff]
    %v3228 = vld [vmem:[%s1526 + $0x30] sm:$0xff]
    %v3229 = vld [vmem:[%s1526 + $0x38] sm:$0xff]
    %v3230 = vld [vmem:[%s1526 + $0x40] sm:$0xff]
    %v3231 = vld [vmem:[%s1526 + $0x48] sm:$0xff]
    %v3233 = vsel %vm1537, %v3221, 0
    %3235 = vmatpush.msra.mxu0 0.0
    %3236 = vmatpush.msra.mxu0 0.0
    %3237 = vmatpush.msra.mxu0 0.0
    %3238 = vmatpush.msra.mxu0 0.0
    %3239 = vmatpush.msra.mxu0 0.0
    %3240 = vmatpush.msra.mxu0 0.0
    %3241 = vmatpush.msra.mxu0 %v3231
    %3242 = vmatpush.msra.mxu0 %v3230
    %3243 = vmatpush.msra.mxu0 %v3229
    %3244 = vmatpush.msra.mxu0 %v3228
    %3245 = vmatpush.msra.mxu0 %v3227
    %3246 = vmatpush.msra.mxu0 %v3226
    %3247 = vmatpush.msra.mxu0 %v3225
    %3248 = vmatpush.msra.mxu0 %v3224
    %3249 = vmatpush.msra.mxu0 %v3223
    %3250 = vmatpush.msra.mxu0 %v3222
    %3251 = vmatmul.f32.gmra.mxu0 %v3233
    %v3252 = vpop.f32.mrf.mxu0
    %v3253 = vadd.f32 0.0, %v3252
    %3254 = vdwg.mxu0
    %v3256 = vsel %vm1537, %v3210, 0
    %3258 = vmatpush.msra.mxu0 0.0
    %3259 = vmatpush.msra.mxu0 0.0
    %3260 = vmatpush.msra.mxu0 0.0
    %3261 = vmatpush.msra.mxu0 0.0
    %3262 = vmatpush.msra.mxu0 0.0
    %3263 = vmatpush.msra.mxu0 0.0
    %3264 = vmatpush.msra.mxu0 %v3220
    %3265 = vmatpush.msra.mxu0 %v3219
    %3266 = vmatpush.msra.mxu0 %v3218
    %3267 = vmatpush.msra.mxu0 %v3217
    %3268 = vmatpush.msra.mxu0 %v3216
    %3269 = vmatpush.msra.mxu0 %v3215
    %3270 = vmatpush.msra.mxu0 %v3214
    %3271 = vmatpush.msra.mxu0 %v3213
    %3272 = vmatpush.msra.mxu0 %v3212
    %3273 = vmatpush.msra.mxu0 %v3211
    %3274 = vmatmul.f32.gmra.mxu0 %v3256
    %v3275 = vpop.f32.mrf.mxu0
    %v3276 = vadd.f32 %v3253, %v3275
    %3277 = vdwg.mxu0
    %v3278 = vld [vmem:[#allocation3 + $0x2] sm:$0x1]
    %v3279 = vld [vmem:[%s1585] sm:$0xff]
    %v3280 = vld [vmem:[%s1585 + $0x8] sm:$0xff]
    %v3281 = vld [vmem:[%s1585 + $0x10] sm:$0xff]
    %v3282 = vld [vmem:[%s1585 + $0x18] sm:$0xff]
    %v3283 = vld [vmem:[%s1585 + $0x20] sm:$0xff]
    %v3284 = vld [vmem:[%s1585 + $0x28] sm:$0xff]
    %v3285 = vld [vmem:[%s1585 + $0x30] sm:$0xff]
    %v3286 = vld [vmem:[%s1585 + $0x38] sm:$0xff]
    %v3287 = vld [vmem:[%s1585 + $0x40] sm:$0xff]
    %v3288 = vld [vmem:[%s1585 + $0x48] sm:$0xff]
    %v3290 = vsel %vm1537, %v3278, 0
    %3292 = vmatpush.msra.mxu0 0.0
    %3293 = vmatpush.msra.mxu0 0.0
    %3294 = vmatpush.msra.mxu0 0.0
    %3295 = vmatpush.msra.mxu0 0.0
    %3296 = vmatpush.msra.mxu0 0.0
    %3297 = vmatpush.msra.mxu0 0.0
    %3298 = vmatpush.msra.mxu0 %v3288
    %3299 = vmatpush.msra.mxu0 %v3287
    %3300 = vmatpush.msra.mxu0 %v3286
    %3301 = vmatpush.msra.mxu0 %v3285
    %3302 = vmatpush.msra.mxu0 %v3284
    %3303 = vmatpush.msra.mxu0 %v3283
    %3304 = vmatpush.msra.mxu0 %v3282
    %3305 = vmatpush.msra.mxu0 %v3281
    %3306 = vmatpush.msra.mxu0 %v3280
    %3307 = vmatpush.msra.mxu0 %v3279
    %3308 = vmatmul.f32.gmra.mxu0 %v3290
    %v3309 = vpop.f32.mrf.mxu0
    %v3310 = vadd.f32 0.0, %v3309
    %3311 = vdwg.mxu0
    %v3312 = vadd.f32 %v3276, %v3310
    %v3313 = vld [vmem:[#allocation3 + $0x3] sm:$0x1]
    %v3314 = vld [vmem:[%s1621] sm:$0xff]
    %v3315 = vld [vmem:[%s1621 + $0x8] sm:$0xff]
    %v3316 = vld [vmem:[%s1621 + $0x10] sm:$0xff]
    %v3317 = vld [vmem:[%s1621 + $0x18] sm:$0xff]
    %v3318 = vld [vmem:[%s1621 + $0x20] sm:$0xff]
    %v3319 = vld [vmem:[%s1621 + $0x28] sm:$0xff]
    %v3320 = vld [vmem:[%s1621 + $0x30] sm:$0xff]
    %v3321 = vld [vmem:[%s1621 + $0x38] sm:$0xff]
    %v3322 = vld [vmem:[%s1621 + $0x40] sm:$0xff]
    %v3323 = vld [vmem:[%s1621 + $0x48] sm:$0xff]
    %v3325 = vsel %vm1537, %v3313, 0
    %3327 = vmatpush.msra.mxu0 0.0
    %3328 = vmatpush.msra.mxu0 0.0
    %3329 = vmatpush.msra.mxu0 0.0
    %3330 = vmatpush.msra.mxu0 0.0
    %3331 = vmatpush.msra.mxu0 0.0
    %3332 = vmatpush.msra.mxu0 0.0
    %3333 = vmatpush.msra.mxu0 %v3323
    %3334 = vmatpush.msra.mxu0 %v3322
    %3335 = vmatpush.msra.mxu0 %v3321
    %3336 = vmatpush.msra.mxu0 %v3320
    %3337 = vmatpush.msra.mxu0 %v3319
    %3338 = vmatpush.msra.mxu0 %v3318
    %3339 = vmatpush.msra.mxu0 %v3317
    %3340 = vmatpush.msra.mxu0 %v3316
    %3341 = vmatpush.msra.mxu0 %v3315
    %3342 = vmatpush.msra.mxu0 %v3314
    %3343 = vmatmul.f32.gmra.mxu0 %v3325
    %v3344 = vpop.f32.mrf.mxu0
    %v3345 = vadd.f32 0.0, %v3344
    %3346 = vdwg.mxu0
    %v3347 = vadd.f32 %v3312, %v3345
    %v3348 = vld [vmem:[#allocation3 + $0x4] sm:$0x1]
    %v3349 = vld [vmem:[%s1657] sm:$0xff]
    %v3350 = vld [vmem:[%s1657 + $0x8] sm:$0xff]
    %v3351 = vld [vmem:[%s1657 + $0x10] sm:$0xff]
    %v3352 = vld [vmem:[%s1657 + $0x18] sm:$0xff]
    %v3353 = vld [vmem:[%s1657 + $0x20] sm:$0xff]
    %v3354 = vld [vmem:[%s1657 + $0x28] sm:$0xff]
    %v3355 = vld [vmem:[%s1657 + $0x30] sm:$0xff]
    %v3356 = vld [vmem:[%s1657 + $0x38] sm:$0xff]
    %v3357 = vld [vmem:[%s1657 + $0x40] sm:$0xff]
    %v3358 = vld [vmem:[%s1657 + $0x48] sm:$0xff]
    %v3360 = vsel %vm1537, %v3348, 0
    %3362 = vmatpush.msra.mxu0 0.0
    %3363 = vmatpush.msra.mxu0 0.0
    %3364 = vmatpush.msra.mxu0 0.0
    %3365 = vmatpush.msra.mxu0 0.0
    %3366 = vmatpush.msra.mxu0 0.0
    %3367 = vmatpush.msra.mxu0 0.0
    %3368 = vmatpush.msra.mxu0 %v3358
    %3369 = vmatpush.msra.mxu0 %v3357
    %3370 = vmatpush.msra.mxu0 %v3356
    %3371 = vmatpush.msra.mxu0 %v3355
    %3372 = vmatpush.msra.mxu0 %v3354
    %3373 = vmatpush.msra.mxu0 %v3353
    %3374 = vmatpush.msra.mxu0 %v3352
    %3375 = vmatpush.msra.mxu0 %v3351
    %3376 = vmatpush.msra.mxu0 %v3350
    %3377 = vmatpush.msra.mxu0 %v3349
    %3378 = vmatmul.f32.gmra.mxu0 %v3360
    %v3379 = vpop.f32.mrf.mxu0
    %v3380 = vadd.f32 0.0, %v3379
    %3381 = vdwg.mxu0
    %v3382 = vadd.f32 %v3347, %v3380
    %v3383 = vld [vmem:[%s14] sm:$0x1]
    %v3384 = vadd.f32 %v3382, %v3383
    %v3385 = vmax.f32 %v3384, 0.0
    %v3386 = vld [vmem:[%s15] sm:$0xff]
    %v3387 = vld [vmem:[%s15 + $0x8] sm:$0xff]
    %v3388 = vld [vmem:[%s15 + $0x10] sm:$0xff]
    %v3389 = vld [vmem:[%s15 + $0x18] sm:$0xff]
    %v3390 = vld [vmem:[%s15 + $0x20] sm:$0xff]
    %v3391 = vld [vmem:[%s15 + $0x28] sm:$0xff]
    %v3392 = vld [vmem:[%s15 + $0x30] sm:$0xff]
    %v3393 = vld [vmem:[%s15 + $0x38] sm:$0xff]
    %v3394 = vld [vmem:[%s15 + $0x40] sm:$0xff]
    %v3395 = vld [vmem:[%s15 + $0x48] sm:$0xff]
    %v3396 = vld [vmem:[%s15 + $0x50] sm:$0xff]
    %v3397 = vld [vmem:[%s15 + $0x58] sm:$0xff]
    %v3398 = vld [vmem:[%s15 + $0x60] sm:$0xff]
    %v3399 = vld [vmem:[%s15 + $0x68] sm:$0xff]
    %v3400 = vld [vmem:[%s15 + $0x70] sm:$0xff]
    %v3401 = vld [vmem:[%s16] sm:$0x1]
    %v3403 = vsel %vm1711, %v3385, 0
    %3405 = vmatpush.msra.mxu0 0.0
    %3406 = vmatpush.msra.mxu0 %v3400
    %3407 = vmatpush.msra.mxu0 %v3399
    %3408 = vmatpush.msra.mxu0 %v3398
    %3409 = vmatpush.msra.mxu0 %v3397
    %3410 = vmatpush.msra.mxu0 %v3396
    %3411 = vmatpush.msra.mxu0 %v3395
    %3412 = vmatpush.msra.mxu0 %v3394
    %3413 = vmatpush.msra.mxu0 %v3393
    %3414 = vmatpush.msra.mxu0 %v3392
    %3415 = vmatpush.msra.mxu0 %v3391
    %3416 = vmatpush.msra.mxu0 %v3390
    %3417 = vmatpush.msra.mxu0 %v3389
    %3418 = vmatpush.msra.mxu0 %v3388
    %3419 = vmatpush.msra.mxu0 %v3387
    %3420 = vmatpush.msra.mxu0 %v3386
    %3421 = vmatmul.f32.gmra.mxu0 %v3403
    %v3422 = vpop.f32.mrf.mxu0
    %v3423 = vadd.f32 %v3401, %v3422
    %3424 = vdwg.mxu0
    %v3425 = vmax.f32 %v3423, 0.0
    %v3426 = vld [vmem:[%s17] sm:$0xff]
    %v3427 = vld [vmem:[%s17 + $0x8] sm:$0xff]
    %v3428 = vld [vmem:[%s17 + $0x10] sm:$0xff]
    %v3429 = vld [vmem:[%s17 + $0x18] sm:$0xff]
    %v3430 = vld [vmem:[%s17 + $0x20] sm:$0xff]
    %v3431 = vld [vmem:[%s17 + $0x28] sm:$0xff]
    %v3432 = vld [vmem:[%s17 + $0x30] sm:$0xff]
    %v3433 = vld [vmem:[%s17 + $0x38] sm:$0xff]
    %v3434 = vld [vmem:[%s17 + $0x40] sm:$0xff]
    %v3435 = vld [vmem:[%s17 + $0x48] sm:$0xff]
    %v3436 = vld [vmem:[%s17 + $0x50] sm:$0xf]
    %v3437 = vld [vmem:[%s18] sm:$0x1]
    %v3439 = vsel %vm853, %v3425, 0
    %v3442 = vsel %vm591, %v3436, 0
    %3444 = vmatpush.msra.mxu0 0.0
    %3445 = vmatpush.msra.mxu0 0.0
    %3446 = vmatpush.msra.mxu0 0.0
    %3447 = vmatpush.msra.mxu0 0.0
    %3448 = vmatpush.msra.mxu0 0.0
    %3449 = vmatpush.msra.mxu0 %v3442
    %3450 = vmatpush.msra.mxu0 %v3435
    %3451 = vmatpush.msra.mxu0 %v3434
    %3452 = vmatpush.msra.mxu0 %v3433
    %3453 = vmatpush.msra.mxu0 %v3432
    %3454 = vmatpush.msra.mxu0 %v3431
    %3455 = vmatpush.msra.mxu0 %v3430
    %3456 = vmatpush.msra.mxu0 %v3429
    %3457 = vmatpush.msra.mxu0 %v3428
    %3458 = vmatpush.msra.mxu0 %v3427
    %3459 = vmatpush.msra.mxu0 %v3426
    %3460 = vmatmul.f32.gmra.mxu0 %v3439
    %v3461 = vpop.f32.mrf.mxu0
    %v3462 = vadd.f32 %v3437, %v3461
    %3463 = vdwg.mxu0
    %3464 = vst.msk [vmem:[#allocation4 + $0x1] sm:$0x1] %vm1774, %v3462
    // Predicated region
    $region78: #{net_forward.1} parent=1 // pred_check
      _
    $region79: #{net_forward.1} parent=1 // pred_check_branch
      %3466 = sbr.rel (0) target = $region81
    $region80: #{net_forward.1} parent=1 // pred_region
      %3468 = vsyncadd [#allocation5], 0
      %s3470 = sshll.u32 [#allocation4], 4
      %s3471 = int_to_ptr.vmem [resolvable:$true] %s3470
      %s3472 = sshll.u32 %s19, 4
      %s3473 = int_to_ptr.hbm [resolvable:$true] %s3472
      %3475 = dma.vmem_to_hbm [thread:$0]  %s3471, 32, %s3473, [#allocation5]
    $region81: #{net_forward.1} parent=1 // pred_fallthru
      _
    // Predicated region
    $region82: #{net_forward.1} parent=1 // pred_check
      _
    $region83: #{net_forward.1} parent=1 // pred_check_branch
      %3477 = sbr.rel (0) target = $region85
    $region84: #{net_forward.1} parent=1 // pred_region
      %3479 = dma.done [#allocation5], 32
    $region85: #{net_forward.1} parent=1 // pred_fallthru
      _
    %3480 = vsyncpa [#allocation5], 1

</llo_original>
